<compile_context>
chip_gen: v6e
topology: v6e:2x2x1
jax: 0.10.0
libtpu: 0.0.40
codegen_flags: <defaults>
</compile_context>

<pallas_src>
import jax
import jax.numpy as jnp
import numpy as np
from jax.experimental import pallas as pl
from jax.experimental.pallas import tpu as pltpu

# ---------------- small config consistent with the module ----------------
B = 2            # batch
T = 8            # sequence length (small for test)
N_HEADS = 4
HEAD_DIM = 8
DIM = N_HEADS * HEAD_DIM      # 32
N_SPLATS = 4                  # n_splats_per_head
LN_EPS = 1e-5


# ------------------------- fully fused GSA kernel ------------------------
def fused_gsa_kernel(coef_ref, diag_ref, imp_ref,          # SMEM (H*S,)
                     x_ref,                                 # VMEM (B*T, D)
                     wqkv_ref, bqkv_ref,                    # VMEM (D, 3D), (1, 3D)
                     cenb_ref,                              # VMEM (H*S, D) block-diag centers
                     avg_ref,                               # VMEM (D, D) block-diag 1/hd
                     lnw_ref, lnb_ref,                      # VMEM (1, D) per-head tiled
                     eye_ref,                               # VMEM (T, T) f32 identity
                     wout_ref, bout_ref,                    # VMEM (D, D), (1, D)
                     o_ref,                                 # VMEM (B*T, D)
                     comb_ref):                             # scratch VMEM (B*T, D) f32
    # --- qkv projection (one MXU matmul, stays in VMEM) ---
    x = x_ref[...]                                          # (B*T, D)
    qkv = jnp.dot(x, wqkv_ref[...],
                  preferred_element_type=jnp.float32) + bqkv_ref[...]  # (B*T, 3D)

    avg = avg_ref[...]                                      # (D, D) hoisted
    ln_w = lnw_ref[...]                                     # (1, D)
    ln_b = lnb_ref[...]                                     # (1, D)

    def seg_ln(t):                                          # (B*T, D) segmented LN
        # per-head mean / var via block-diagonal averaging matmul (MXU),
        # full-width VPU normalization -- no per-head slices, no XLU reductions.
        mu = jnp.dot(t, avg, preferred_element_type=jnp.float32)
        d = t - mu
        var = jnp.dot(d * d, avg, preferred_element_type=jnp.float32)
        return d * jax.lax.rsqrt(var + LN_EPS) * ln_w + ln_b

    qn = seg_ln(qkv[:, 0:DIM])                              # (B*T, D)
    kn = seg_ln(qkv[:, DIM:2 * DIM])                        # (B*T, D)
    v_slab = qkv[:, 2 * DIM:3 * DIM]                        # (B*T, D)

    eye_f = eye_ref[...]                                    # (T, T)
    cen_block = cenb_ref[...]                               # (H*S, D)
    dn = (((1,), (1,)), ((), ()))                           # contract last dims (A @ B^T)

    for b in range(B):                                      # static loops (small)
        r0 = b * T
        kn_b = kn[r0:r0 + T, :]                             # (T, D)
        # all splat-center corrections for this batch in ONE matmul:
        #   kc_all[h*S+s, t] = <centers[h,s], kn_b[t, head-h block]>
        kc_all = jax.lax.dot_general(cen_block, kn_b, dn,
                                     preferred_element_type=jnp.float32)  # (H*S, T)
        for h in range(N_HEADS):
            c0 = h * HEAD_DIM
            q = qn[r0:r0 + T, c0:c0 + HEAD_DIM]             # (T, hd)
            k = kn_b[:, c0:c0 + HEAD_DIM]                   # (T, hd)
            v = v_slab[r0:r0 + T, c0:c0 + HEAD_DIM]         # (T, hd)

            # shared q k^T for this head -- one MXU matmul for all splats
            qk = jax.lax.dot_general(q, k, dn,
                                     preferred_element_type=jnp.float32)  # (T, T)

            p_acc = jnp.zeros((T, T), jnp.float32)
            for s in range(N_SPLATS):
                idx = h * N_SPLATS + s
                kc = kc_all[idx:idx + 1, :]                 # (1, T) column correction
                # row-constant (q.c, c.c) terms cancel in the row softmax and
                # are dropped; the identity bump is one FMA against eye_f.
                scores = coef_ref[idx] * (qk - kc) + diag_ref[idx] * eye_f
                m = jnp.max(scores, axis=-1, keepdims=True)
                e = jnp.exp(scores - m)
                # exact normalization (approx reciprocal failed tolerance)
                p = e / jnp.sum(e, axis=-1, keepdims=True)
                p_acc = p_acc + imp_ref[idx] * p            # fold importance here
            # ONE p@v per (b, h); write directly into the combined VMEM slab.
            comb_ref[r0:r0 + T, c0:c0 + HEAD_DIM] = jnp.dot(
                p_acc, v, preferred_element_type=jnp.float32)

    # --- output projection from the assembled slab ---
    out = jnp.dot(comb_ref[...], wout_ref[...],
                  preferred_element_type=jnp.float32) + bout_ref[...]
    o_ref[...] = out.astype(o_ref.dtype)


# ----------------------------- full forward ------------------------------
def gsa_attention_forward(x, p):
    Bb, Tt, D = x.shape
    # tiny per-splat scalars precomputed once, flattened to 1D for SMEM
    scales = jnp.clip(jnp.exp(p["log_scale"]), 1e-4, 10.0)            # (H, S)
    coef = (p["amplitude"] / (scales * scales)).reshape(-1)           # amp / s^2
    diag = (0.01 * p["amplitude"]).reshape(-1)                        # identity comp.
    imp = jax.nn.softmax(p["amplitude"], axis=-1).reshape(-1)         # splat importance

    # block-diagonal center matrix: row (h*S+s) carries centers[h,s] in head-h's
    # column block and zeros elsewhere -> one matmul computes every c.k^T.
    cen_block = (p["centers"][:, :, None, :] *
                 jnp.eye(N_HEADS, dtype=jnp.float32)[:, None, :, None]
                 ).reshape(N_HEADS * N_SPLATS, D)

    # block-diagonal averaging matrix for the segmented (per-head) LayerNorm.
    avg_mat = jnp.kron(jnp.eye(N_HEADS, dtype=jnp.float32),
                       jnp.ones((HEAD_DIM, HEAD_DIM), jnp.float32) / HEAD_DIM)

    ln_w_t = jnp.tile(p["ln_w"], (N_HEADS,)).reshape(1, D)
    ln_b_t = jnp.tile(p["ln_b"], (N_HEADS,)).reshape(1, D)
    eye_f = jnp.eye(Tt, dtype=jnp.float32)

    smem = pl.BlockSpec(memory_space=pltpu.MemorySpace.SMEM)
    vmem = pl.BlockSpec(memory_space=pltpu.MemorySpace.VMEM)

    out = pl.pallas_call(
        fused_gsa_kernel,
        out_shape=jax.ShapeDtypeStruct((Bb * Tt, D), jnp.float32),
        in_specs=[smem, smem, smem,                 # coef, diag, imp
                  vmem,                             # x
                  vmem, vmem,                       # w_qkv, b_qkv
                  vmem,                             # block-diag centers
                  vmem,                             # block-diag averaging matrix
                  vmem, vmem,                       # ln_w, ln_b (tiled)
                  vmem,                             # identity mask
                  vmem, vmem],                      # w_out, b_out
        out_specs=vmem,
        scratch_shapes=[pltpu.VMEM((Bb * Tt, D), jnp.float32)],
    )(coef, diag, imp,
      x.reshape(Bb * Tt, D),
      p["w_qkv"], p["b_qkv"].reshape(1, 3 * D),
      cen_block, avg_mat,
      ln_w_t, ln_b_t, eye_f,
      p["w_out"], p["b_out"].reshape(1, D))
    return out.reshape(Bb, Tt, D)


# -------------------------- pure-JAX reference ---------------------------
def reference_forward(x, p):
    Bb, Tt, D = x.shape
    qkv = x @ p["w_qkv"] + p["b_qkv"]
    q, k, v = jnp.split(qkv, 3, axis=-1)

    def to_heads(t):
        return t.reshape(Bb, Tt, N_HEADS, HEAD_DIM).transpose(0, 2, 1, 3)

    q, k, v = to_heads(q), to_heads(k), to_heads(v)

    def ln(t):
        mu = jnp.mean(t, -1, keepdims=True)
        var = jnp.mean(jnp.square(t - mu), -1, keepdims=True)
        return (t - mu) * jax.lax.rsqrt(var + LN_EPS) * p["ln_w"] + p["ln_b"]

    q, k = ln(q), ln(k)
    scales = jnp.clip(jnp.exp(p["log_scale"]), 1e-4, 10.0)
    amps = p["amplitude"]
    imps = jax.nn.softmax(amps, axis=-1)
    cen = p["centers"]

    qc = (q[:, :, None] - cen[None, :, :, None]) / scales[None, :, :, None, None]
    kc = (k[:, :, None] - cen[None, :, :, None]) / scales[None, :, :, None, None]
    scores = jnp.einsum("bhstd,bhsud->bhstu", qc, kc) * amps[None, :, :, None, None]
    scores = scores + 0.01 * amps[None, :, :, None, None] * jnp.eye(Tt)
    pmat = jax.nn.softmax(scores, axis=-1)
    outs = jnp.einsum("bhstu,bhud->bhstd", pmat, v)
    head_out = jnp.sum(imps[None, :, :, None, None] * outs, axis=2)  # (B,H,T,hd)
    combined = head_out.transpose(0, 2, 1, 3).reshape(Bb, Tt, D)
    return combined @ p["w_out"] + p["b_out"]


# ----------------------------- parameter init ----------------------------
def init_params(key):
    ks = jax.random.split(key, 8)
    p = {}
    p["w_qkv"] = jax.random.normal(ks[0], (DIM, 3 * DIM), jnp.float32) / np.sqrt(DIM)
    p["b_qkv"] = 0.02 * jax.random.normal(ks[1], (3 * DIM,), jnp.float32)
    p["w_out"] = jax.random.normal(ks[2], (DIM, DIM), jnp.float32) / np.sqrt(DIM)
    p["b_out"] = 0.02 * jax.random.normal(ks[3], (DIM,), jnp.float32)
    # splat params: center ~ 0.5*randn(hd), log_scale ~ 0.5*randn, amplitude ~ U[0,2)
    p["centers"] = 0.5 * jax.random.normal(ks[4], (N_HEADS, N_SPLATS, HEAD_DIM), jnp.float32)
    p["log_scale"] = 0.5 * jax.random.normal(ks[5], (N_HEADS, N_SPLATS), jnp.float32)
    p["amplitude"] = 2.0 * jax.random.uniform(ks[6], (N_HEADS, N_SPLATS), jnp.float32)
    # LayerNorm(head_dim) params (perturbed from default 1/0 to exercise them)
    p["ln_w"] = jnp.ones((HEAD_DIM,), jnp.float32) \
        + 0.1 * jax.random.normal(ks[7], (HEAD_DIM,), jnp.float32)
    p["ln_b"] = 0.05 * jnp.ones((HEAD_DIM,), jnp.float32)
    return p


if __name__ == "__main__":
    key = jax.random.PRNGKey(0)
    pkey, xkey = jax.random.split(key)
    params = init_params(pkey)
    x = jax.random.normal(xkey, (B, T, DIM), jnp.float32)

    fwd = jax.jit(gsa_attention_forward)
    out = jax.block_until_ready(fwd(x, params))
    ref = jax.block_until_ready(reference_forward(x, params))
    np.testing.assert_allclose(np.asarray(out), np.asarray(ref), atol=2e-3, rtol=2e-3)
    print("KERNEL_OK")
</pallas_src>

<mosaic_0001>
module attributes {stable_mosaic.version = 11 : i64} {
  func.func @fused_gsa_kernel(%arg0: memref<16xf32, #tpu.memory_space<smem>>, %arg1: memref<16xf32, #tpu.memory_space<smem>>, %arg2: memref<16xf32, #tpu.memory_space<smem>>, %arg3: memref<16x32xf32, #tpu.memory_space<vmem>>, %arg4: memref<32x96xf32, #tpu.memory_space<vmem>>, %arg5: memref<1x96xf32, #tpu.memory_space<vmem>>, %arg6: memref<16x32xf32, #tpu.memory_space<vmem>>, %arg7: memref<32x32xf32, #tpu.memory_space<vmem>>, %arg8: memref<1x32xf32, #tpu.memory_space<vmem>>, %arg9: memref<1x32xf32, #tpu.memory_space<vmem>>, %arg10: memref<8x8xf32, #tpu.memory_space<vmem>>, %arg11: memref<32x32xf32, #tpu.memory_space<vmem>>, %arg12: memref<1x32xf32, #tpu.memory_space<vmem>>, %arg13: memref<16x32xf32, #tpu.memory_space<vmem>>, %arg14: memref<16x32xf32, #tpu.memory_space<vmem>>) attributes {dimension_semantics = [], scalar_prefetch = 0 : i64, scratch_operands = 1 : i64, tpu.core_type = #tpu.core_type<tc>} {
    %c0 = arith.constant 0 : index
    %c0_0 = arith.constant 0 : index
    %0 = vector.load %arg3[%c0, %c0_0] : memref<16x32xf32, #tpu.memory_space<vmem>>, vector<16x32xf32>
    %c0_1 = arith.constant 0 : index
    %c0_2 = arith.constant 0 : index
    %1 = vector.load %arg4[%c0_1, %c0_2] : memref<32x96xf32, #tpu.memory_space<vmem>>, vector<32x96xf32>
    %cst = arith.constant dense<0.000000e+00> : vector<16x96xf32>
    %2 = tpu.matmul %0, %1, %cst {dimension_numbers = #tpu.dot_dimension_numbers<[1], [0], [0], [1], [0, 0, 1, 1], [], []>} : vector<16x32xf32>, vector<32x96xf32>, vector<16x96xf32> -> vector<16x96xf32>
    %c0_3 = arith.constant 0 : index
    %c0_4 = arith.constant 0 : index
    %3 = vector.load %arg5[%c0_3, %c0_4] : memref<1x96xf32, #tpu.memory_space<vmem>>, vector<1x96xf32>
    %4 = vector.broadcast %3 : vector<1x96xf32> to vector<16x96xf32>
    %5 = arith.addf %2, %4 : vector<16x96xf32>
    %c0_5 = arith.constant 0 : index
    %c0_6 = arith.constant 0 : index
    %6 = vector.load %arg7[%c0_5, %c0_6] : memref<32x32xf32, #tpu.memory_space<vmem>>, vector<32x32xf32>
    %c0_7 = arith.constant 0 : index
    %c0_8 = arith.constant 0 : index
    %7 = vector.load %arg8[%c0_7, %c0_8] : memref<1x32xf32, #tpu.memory_space<vmem>>, vector<1x32xf32>
    %c0_9 = arith.constant 0 : index
    %c0_10 = arith.constant 0 : index
    %8 = vector.load %arg9[%c0_9, %c0_10] : memref<1x32xf32, #tpu.memory_space<vmem>>, vector<1x32xf32>
    %9 = vector.extract_strided_slice %5 {offsets = [0, 0], sizes = [16, 32], strides = [1, 1]} : vector<16x96xf32> to vector<16x32xf32>
    %cst_11 = arith.constant dense<0.000000e+00> : vector<16x32xf32>
    %10 = tpu.matmul %9, %6, %cst_11 {dimension_numbers = #tpu.dot_dimension_numbers<[1], [0], [0], [1], [0, 0, 1, 1], [], []>} : vector<16x32xf32>, vector<32x32xf32>, vector<16x32xf32> -> vector<16x32xf32>
    %11 = arith.subf %9, %10 : vector<16x32xf32>
    %12 = arith.mulf %11, %11 : vector<16x32xf32>
    %cst_12 = arith.constant dense<0.000000e+00> : vector<16x32xf32>
    %13 = tpu.matmul %12, %6, %cst_12 {dimension_numbers = #tpu.dot_dimension_numbers<[1], [0], [0], [1], [0, 0, 1, 1], [], []>} : vector<16x32xf32>, vector<32x32xf32>, vector<16x32xf32> -> vector<16x32xf32>
    %cst_13 = arith.constant 9.99999974E-6 : f32
    %14 = vector.broadcast %cst_13 : f32 to vector<16x32xf32>
    %15 = arith.addf %13, %14 : vector<16x32xf32>
    %16 = math.rsqrt %15 : vector<16x32xf32>
    %17 = arith.mulf %11, %16 : vector<16x32xf32>
    %18 = vector.broadcast %7 : vector<1x32xf32> to vector<16x32xf32>
    %19 = arith.mulf %17, %18 : vector<16x32xf32>
    %20 = vector.broadcast %8 : vector<1x32xf32> to vector<16x32xf32>
    %21 = arith.addf %19, %20 : vector<16x32xf32>
    %22 = vector.extract_strided_slice %5 {offsets = [0, 32], sizes = [16, 32], strides = [1, 1]} : vector<16x96xf32> to vector<16x32xf32>
    %cst_14 = arith.constant dense<0.000000e+00> : vector<16x32xf32>
    %23 = tpu.matmul %22, %6, %cst_14 {dimension_numbers = #tpu.dot_dimension_numbers<[1], [0], [0], [1], [0, 0, 1, 1], [], []>} : vector<16x32xf32>, vector<32x32xf32>, vector<16x32xf32> -> vector<16x32xf32>
    %24 = arith.subf %22, %23 : vector<16x32xf32>
    %25 = arith.mulf %24, %24 : vector<16x32xf32>
    %cst_15 = arith.constant dense<0.000000e+00> : vector<16x32xf32>
    %26 = tpu.matmul %25, %6, %cst_15 {dimension_numbers = #tpu.dot_dimension_numbers<[1], [0], [0], [1], [0, 0, 1, 1], [], []>} : vector<16x32xf32>, vector<32x32xf32>, vector<16x32xf32> -> vector<16x32xf32>
    %cst_16 = arith.constant 9.99999974E-6 : f32
    %27 = vector.broadcast %cst_16 : f32 to vector<16x32xf32>
    %28 = arith.addf %26, %27 : vector<16x32xf32>
    %29 = math.rsqrt %28 : vector<16x32xf32>
    %30 = arith.mulf %24, %29 : vector<16x32xf32>
    %31 = vector.broadcast %7 : vector<1x32xf32> to vector<16x32xf32>
    %32 = arith.mulf %30, %31 : vector<16x32xf32>
    %33 = vector.broadcast %8 : vector<1x32xf32> to vector<16x32xf32>
    %34 = arith.addf %32, %33 : vector<16x32xf32>
    %35 = vector.extract_strided_slice %5 {offsets = [0, 64], sizes = [16, 32], strides = [1, 1]} : vector<16x96xf32> to vector<16x32xf32>
    %c0_17 = arith.constant 0 : index
    %c0_18 = arith.constant 0 : index
    %36 = vector.load %arg10[%c0_17, %c0_18] : memref<8x8xf32, #tpu.memory_space<vmem>>, vector<8x8xf32>
    %c0_19 = arith.constant 0 : index
    %c0_20 = arith.constant 0 : index
    %37 = vector.load %arg6[%c0_19, %c0_20] : memref<16x32xf32, #tpu.memory_space<vmem>>, vector<16x32xf32>
    %38 = vector.extract_strided_slice %34 {offsets = [0, 0], sizes = [8, 32], strides = [1, 1]} : vector<16x32xf32> to vector<8x32xf32>
    %cst_21 = arith.constant dense<0.000000e+00> : vector<16x8xf32>
    %39 = tpu.matmul %37, %38, %cst_21 {dimension_numbers = #tpu.dot_dimension_numbers<[1], [1], [0], [0], [0, 0, 1, 0], [], []>} : vector<16x32xf32>, vector<8x32xf32>, vector<16x8xf32> -> vector<16x8xf32>
    %40 = vector.extract_strided_slice %21 {offsets = [0, 0], sizes = [8, 8], strides = [1, 1]} : vector<16x32xf32> to vector<8x8xf32>
    %41 = vector.extract_strided_slice %38 {offsets = [0, 0], sizes = [8, 8], strides = [1, 1]} : vector<8x32xf32> to vector<8x8xf32>
    %42 = vector.extract_strided_slice %35 {offsets = [0, 0], sizes = [8, 8], strides = [1, 1]} : vector<16x32xf32> to vector<8x8xf32>
    %cst_22 = arith.constant dense<0.000000e+00> : vector<8x8xf32>
    %43 = tpu.matmul %40, %41, %cst_22 {dimension_numbers = #tpu.dot_dimension_numbers<[1], [1], [0], [0], [0, 0, 1, 0], [], []>} : vector<8x8xf32>, vector<8x8xf32>, vector<8x8xf32> -> vector<8x8xf32>
    %cst_23 = arith.constant 0.000000e+00 : f32
    %44 = vector.broadcast %cst_23 : f32 to vector<8x8xf32>
    %45 = vector.extract_strided_slice %39 {offsets = [0, 0], sizes = [1, 8], strides = [1, 1]} : vector<16x8xf32> to vector<1x8xf32>
    %c0_24 = arith.constant 0 : index
    %46 = memref.load %arg0[%c0_24] : memref<16xf32, #tpu.memory_space<smem>>
    %47 = vector.broadcast %45 : vector<1x8xf32> to vector<8x8xf32>
    %48 = arith.subf %43, %47 : vector<8x8xf32>
    %49 = vector.broadcast %46 : f32 to vector<8x8xf32>
    %50 = arith.mulf %49, %48 : vector<8x8xf32>
    %c0_25 = arith.constant 0 : index
    %51 = memref.load %arg1[%c0_25] : memref<16xf32, #tpu.memory_space<smem>>
    %52 = vector.broadcast %51 : f32 to vector<8x8xf32>
    %53 = arith.mulf %52, %36 : vector<8x8xf32>
    %54 = arith.addf %50, %53 : vector<8x8xf32>
    %cst_26 = arith.constant dense<0xFF800000> : vector<8xf32>
    %55 = vector.multi_reduction <maximumf>, %54, %cst_26 [1] : vector<8x8xf32> to vector<8xf32>
    %56 = vector.shape_cast %55 : vector<8xf32> to vector<8x1xf32>
    %57 = vector.broadcast %56 : vector<8x1xf32> to vector<8x8xf32>
    %58 = arith.subf %54, %57 : vector<8x8xf32>
    %59 = math.exp %58 : vector<8x8xf32>
    %cst_27 = arith.constant dense<0.000000e+00> : vector<8xf32>
    %60 = vector.multi_reduction <add>, %59, %cst_27 [1] : vector<8x8xf32> to vector<8xf32>
    %61 = vector.shape_cast %60 : vector<8xf32> to vector<8x1xf32>
    %62 = vector.broadcast %61 : vector<8x1xf32> to vector<8x8xf32>
    %63 = arith.divf %59, %62 : vector<8x8xf32>
    %c0_28 = arith.constant 0 : index
    %64 = memref.load %arg2[%c0_28] : memref<16xf32, #tpu.memory_space<smem>>
    %65 = vector.broadcast %64 : f32 to vector<8x8xf32>
    %66 = arith.mulf %65, %63 : vector<8x8xf32>
    %67 = arith.addf %44, %66 : vector<8x8xf32>
    %68 = vector.extract_strided_slice %39 {offsets = [1, 0], sizes = [1, 8], strides = [1, 1]} : vector<16x8xf32> to vector<1x8xf32>
    %c1 = arith.constant 1 : index
    %69 = memref.load %arg0[%c1] : memref<16xf32, #tpu.memory_space<smem>>
    %70 = vector.broadcast %68 : vector<1x8xf32> to vector<8x8xf32>
    %71 = arith.subf %43, %70 : vector<8x8xf32>
    %72 = vector.broadcast %69 : f32 to vector<8x8xf32>
    %73 = arith.mulf %72, %71 : vector<8x8xf32>
    %c1_29 = arith.constant 1 : index
    %74 = memref.load %arg1[%c1_29] : memref<16xf32, #tpu.memory_space<smem>>
    %75 = vector.broadcast %74 : f32 to vector<8x8xf32>
    %76 = arith.mulf %75, %36 : vector<8x8xf32>
    %77 = arith.addf %73, %76 : vector<8x8xf32>
    %cst_30 = arith.constant dense<0xFF800000> : vector<8xf32>
    %78 = vector.multi_reduction <maximumf>, %77, %cst_30 [1] : vector<8x8xf32> to vector<8xf32>
    %79 = vector.shape_cast %78 : vector<8xf32> to vector<8x1xf32>
    %80 = vector.broadcast %79 : vector<8x1xf32> to vector<8x8xf32>
    %81 = arith.subf %77, %80 : vector<8x8xf32>
    %82 = math.exp %81 : vector<8x8xf32>
    %cst_31 = arith.constant dense<0.000000e+00> : vector<8xf32>
    %83 = vector.multi_reduction <add>, %82, %cst_31 [1] : vector<8x8xf32> to vector<8xf32>
    %84 = vector.shape_cast %83 : vector<8xf32> to vector<8x1xf32>
    %85 = vector.broadcast %84 : vector<8x1xf32> to vector<8x8xf32>
    %86 = arith.divf %82, %85 : vector<8x8xf32>
    %c1_32 = arith.constant 1 : index
    %87 = memref.load %arg2[%c1_32] : memref<16xf32, #tpu.memory_space<smem>>
    %88 = vector.broadcast %87 : f32 to vector<8x8xf32>
    %89 = arith.mulf %88, %86 : vector<8x8xf32>
    %90 = arith.addf %67, %89 : vector<8x8xf32>
    %91 = vector.extract_strided_slice %39 {offsets = [2, 0], sizes = [1, 8], strides = [1, 1]} : vector<16x8xf32> to vector<1x8xf32>
    %c2 = arith.constant 2 : index
    %92 = memref.load %arg0[%c2] : memref<16xf32, #tpu.memory_space<smem>>
    %93 = vector.broadcast %91 : vector<1x8xf32> to vector<8x8xf32>
    %94 = arith.subf %43, %93 : vector<8x8xf32>
    %95 = vector.broadcast %92 : f32 to vector<8x8xf32>
    %96 = arith.mulf %95, %94 : vector<8x8xf32>
    %c2_33 = arith.constant 2 : index
    %97 = memref.load %arg1[%c2_33] : memref<16xf32, #tpu.memory_space<smem>>
    %98 = vector.broadcast %97 : f32 to vector<8x8xf32>
    %99 = arith.mulf %98, %36 : vector<8x8xf32>
    %100 = arith.addf %96, %99 : vector<8x8xf32>
    %cst_34 = arith.constant dense<0xFF800000> : vector<8xf32>
    %101 = vector.multi_reduction <maximumf>, %100, %cst_34 [1] : vector<8x8xf32> to vector<8xf32>
    %102 = vector.shape_cast %101 : vector<8xf32> to vector<8x1xf32>
    %103 = vector.broadcast %102 : vector<8x1xf32> to vector<8x8xf32>
    %104 = arith.subf %100, %103 : vector<8x8xf32>
    %105 = math.exp %104 : vector<8x8xf32>
    %cst_35 = arith.constant dense<0.000000e+00> : vector<8xf32>
    %106 = vector.multi_reduction <add>, %105, %cst_35 [1] : vector<8x8xf32> to vector<8xf32>
    %107 = vector.shape_cast %106 : vector<8xf32> to vector<8x1xf32>
    %108 = vector.broadcast %107 : vector<8x1xf32> to vector<8x8xf32>
    %109 = arith.divf %105, %108 : vector<8x8xf32>
    %c2_36 = arith.constant 2 : index
    %110 = memref.load %arg2[%c2_36] : memref<16xf32, #tpu.memory_space<smem>>
    %111 = vector.broadcast %110 : f32 to vector<8x8xf32>
    %112 = arith.mulf %111, %109 : vector<8x8xf32>
    %113 = arith.addf %90, %112 : vector<8x8xf32>
    %114 = vector.extract_strided_slice %39 {offsets = [3, 0], sizes = [1, 8], strides = [1, 1]} : vector<16x8xf32> to vector<1x8xf32>
    %c3 = arith.constant 3 : index
    %115 = memref.load %arg0[%c3] : memref<16xf32, #tpu.memory_space<smem>>
    %116 = vector.broadcast %114 : vector<1x8xf32> to vector<8x8xf32>
    %117 = arith.subf %43, %116 : vector<8x8xf32>
    %118 = vector.broadcast %115 : f32 to vector<8x8xf32>
    %119 = arith.mulf %118, %117 : vector<8x8xf32>
    %c3_37 = arith.constant 3 : index
    %120 = memref.load %arg1[%c3_37] : memref<16xf32, #tpu.memory_space<smem>>
    %121 = vector.broadcast %120 : f32 to vector<8x8xf32>
    %122 = arith.mulf %121, %36 : vector<8x8xf32>
    %123 = arith.addf %119, %122 : vector<8x8xf32>
    %cst_38 = arith.constant dense<0xFF800000> : vector<8xf32>
    %124 = vector.multi_reduction <maximumf>, %123, %cst_38 [1] : vector<8x8xf32> to vector<8xf32>
    %125 = vector.shape_cast %124 : vector<8xf32> to vector<8x1xf32>
    %126 = vector.broadcast %125 : vector<8x1xf32> to vector<8x8xf32>
    %127 = arith.subf %123, %126 : vector<8x8xf32>
    %128 = math.exp %127 : vector<8x8xf32>
    %cst_39 = arith.constant dense<0.000000e+00> : vector<8xf32>
    %129 = vector.multi_reduction <add>, %128, %cst_39 [1] : vector<8x8xf32> to vector<8xf32>
    %130 = vector.shape_cast %129 : vector<8xf32> to vector<8x1xf32>
    %131 = vector.broadcast %130 : vector<8x1xf32> to vector<8x8xf32>
    %132 = arith.divf %128, %131 : vector<8x8xf32>
    %c3_40 = arith.constant 3 : index
    %133 = memref.load %arg2[%c3_40] : memref<16xf32, #tpu.memory_space<smem>>
    %134 = vector.broadcast %133 : f32 to vector<8x8xf32>
    %135 = arith.mulf %134, %132 : vector<8x8xf32>
    %136 = arith.addf %113, %135 : vector<8x8xf32>
    %cst_41 = arith.constant dense<0.000000e+00> : vector<8x8xf32>
    %137 = tpu.matmul %136, %42, %cst_41 {dimension_numbers = #tpu.dot_dimension_numbers<[1], [0], [0], [1], [0, 0, 1, 1], [], []>} : vector<8x8xf32>, vector<8x8xf32>, vector<8x8xf32> -> vector<8x8xf32>
    %c0_42 = arith.constant 0 : index
    %c0_43 = arith.constant 0 : index
    %138 = vector.load %arg14[%c0_42, %c0_43] : memref<16x32xf32, #tpu.memory_space<vmem>>, vector<8x8xf32>
    tpu.vector_store %arg14[%c0_42, %c0_43], %137 {strides = array<i32>} : memref<16x32xf32, #tpu.memory_space<vmem>>, vector<8x8xf32>,
    %139 = vector.extract_strided_slice %21 {offsets = [0, 8], sizes = [8, 8], strides = [1, 1]} : vector<16x32xf32> to vector<8x8xf32>
    %140 = vector.extract_strided_slice %38 {offsets = [0, 8], sizes = [8, 8], strides = [1, 1]} : vector<8x32xf32> to vector<8x8xf32>
    %141 = vector.extract_strided_slice %35 {offsets = [0, 8], sizes = [8, 8], strides = [1, 1]} : vector<16x32xf32> to vector<8x8xf32>
    %cst_44 = arith.constant dense<0.000000e+00> : vector<8x8xf32>
    %142 = tpu.matmul %139, %140, %cst_44 {dimension_numbers = #tpu.dot_dimension_numbers<[1], [1], [0], [0], [0, 0, 1, 0], [], []>} : vector<8x8xf32>, vector<8x8xf32>, vector<8x8xf32> -> vector<8x8xf32>
    %cst_45 = arith.constant 0.000000e+00 : f32
    %143 = vector.broadcast %cst_45 : f32 to vector<8x8xf32>
    %144 = vector.extract_strided_slice %39 {offsets = [4, 0], sizes = [1, 8], strides = [1, 1]} : vector<16x8xf32> to vector<1x8xf32>
    %c4 = arith.constant 4 : index
    %145 = memref.load %arg0[%c4] : memref<16xf32, #tpu.memory_space<smem>>
    %146 = vector.broadcast %144 : vector<1x8xf32> to vector<8x8xf32>
    %147 = arith.subf %142, %146 : vector<8x8xf32>
    %148 = vector.broadcast %145 : f32 to vector<8x8xf32>
    %149 = arith.mulf %148, %147 : vector<8x8xf32>
    %c4_46 = arith.constant 4 : index
    %150 = memref.load %arg1[%c4_46] : memref<16xf32, #tpu.memory_space<smem>>
    %151 = vector.broadcast %150 : f32 to vector<8x8xf32>
    %152 = arith.mulf %151, %36 : vector<8x8xf32>
    %153 = arith.addf %149, %152 : vector<8x8xf32>
    %cst_47 = arith.constant dense<0xFF800000> : vector<8xf32>
    %154 = vector.multi_reduction <maximumf>, %153, %cst_47 [1] : vector<8x8xf32> to vector<8xf32>
    %155 = vector.shape_cast %154 : vector<8xf32> to vector<8x1xf32>
    %156 = vector.broadcast %155 : vector<8x1xf32> to vector<8x8xf32>
    %157 = arith.subf %153, %156 : vector<8x8xf32>
    %158 = math.exp %157 : vector<8x8xf32>
    %cst_48 = arith.constant dense<0.000000e+00> : vector<8xf32>
    %159 = vector.multi_reduction <add>, %158, %cst_48 [1] : vector<8x8xf32> to vector<8xf32>
    %160 = vector.shape_cast %159 : vector<8xf32> to vector<8x1xf32>
    %161 = vector.broadcast %160 : vector<8x1xf32> to vector<8x8xf32>
    %162 = arith.divf %158, %161 : vector<8x8xf32>
    %c4_49 = arith.constant 4 : index
    %163 = memref.load %arg2[%c4_49] : memref<16xf32, #tpu.memory_space<smem>>
    %164 = vector.broadcast %163 : f32 to vector<8x8xf32>
    %165 = arith.mulf %164, %162 : vector<8x8xf32>
    %166 = arith.addf %143, %165 : vector<8x8xf32>
    %167 = vector.extract_strided_slice %39 {offsets = [5, 0], sizes = [1, 8], strides = [1, 1]} : vector<16x8xf32> to vector<1x8xf32>
    %c5 = arith.constant 5 : index
    %168 = memref.load %arg0[%c5] : memref<16xf32, #tpu.memory_space<smem>>
    %169 = vector.broadcast %167 : vector<1x8xf32> to vector<8x8xf32>
    %170 = arith.subf %142, %169 : vector<8x8xf32>
    %171 = vector.broadcast %168 : f32 to vector<8x8xf32>
    %172 = arith.mulf %171, %170 : vector<8x8xf32>
    %c5_50 = arith.constant 5 : index
    %173 = memref.load %arg1[%c5_50] : memref<16xf32, #tpu.memory_space<smem>>
    %174 = vector.broadcast %173 : f32 to vector<8x8xf32>
    %175 = arith.mulf %174, %36 : vector<8x8xf32>
    %176 = arith.addf %172, %175 : vector<8x8xf32>
    %cst_51 = arith.constant dense<0xFF800000> : vector<8xf32>
    %177 = vector.multi_reduction <maximumf>, %176, %cst_51 [1] : vector<8x8xf32> to vector<8xf32>
    %178 = vector.shape_cast %177 : vector<8xf32> to vector<8x1xf32>
    %179 = vector.broadcast %178 : vector<8x1xf32> to vector<8x8xf32>
    %180 = arith.subf %176, %179 : vector<8x8xf32>
    %181 = math.exp %180 : vector<8x8xf32>
    %cst_52 = arith.constant dense<0.000000e+00> : vector<8xf32>
    %182 = vector.multi_reduction <add>, %181, %cst_52 [1] : vector<8x8xf32> to vector<8xf32>
    %183 = vector.shape_cast %182 : vector<8xf32> to vector<8x1xf32>
    %184 = vector.broadcast %183 : vector<8x1xf32> to vector<8x8xf32>
    %185 = arith.divf %181, %184 : vector<8x8xf32>
    %c5_53 = arith.constant 5 : index
    %186 = memref.load %arg2[%c5_53] : memref<16xf32, #tpu.memory_space<smem>>
    %187 = vector.broadcast %186 : f32 to vector<8x8xf32>
    %188 = arith.mulf %187, %185 : vector<8x8xf32>
    %189 = arith.addf %166, %188 : vector<8x8xf32>
    %190 = vector.extract_strided_slice %39 {offsets = [6, 0], sizes = [1, 8], strides = [1, 1]} : vector<16x8xf32> to vector<1x8xf32>
    %c6 = arith.constant 6 : index
    %191 = memref.load %arg0[%c6] : memref<16xf32, #tpu.memory_space<smem>>
    %192 = vector.broadcast %190 : vector<1x8xf32> to vector<8x8xf32>
    %193 = arith.subf %142, %192 : vector<8x8xf32>
    %194 = vector.broadcast %191 : f32 to vector<8x8xf32>
    %195 = arith.mulf %194, %193 : vector<8x8xf32>
    %c6_54 = arith.constant 6 : index
    %196 = memref.load %arg1[%c6_54] : memref<16xf32, #tpu.memory_space<smem>>
    %197 = vector.broadcast %196 : f32 to vector<8x8xf32>
    %198 = arith.mulf %197, %36 : vector<8x8xf32>
    %199 = arith.addf %195, %198 : vector<8x8xf32>
    %cst_55 = arith.constant dense<0xFF800000> : vector<8xf32>
    %200 = vector.multi_reduction <maximumf>, %199, %cst_55 [1] : vector<8x8xf32> to vector<8xf32>
    %201 = vector.shape_cast %200 : vector<8xf32> to vector<8x1xf32>
    %202 = vector.broadcast %201 : vector<8x1xf32> to vector<8x8xf32>
    %203 = arith.subf %199, %202 : vector<8x8xf32>
    %204 = math.exp %203 : vector<8x8xf32>
    %cst_56 = arith.constant dense<0.000000e+00> : vector<8xf32>
    %205 = vector.multi_reduction <add>, %204, %cst_56 [1] : vector<8x8xf32> to vector<8xf32>
    %206 = vector.shape_cast %205 : vector<8xf32> to vector<8x1xf32>
    %207 = vector.broadcast %206 : vector<8x1xf32> to vector<8x8xf32>
    %208 = arith.divf %204, %207 : vector<8x8xf32>
    %c6_57 = arith.constant 6 : index
    %209 = memref.load %arg2[%c6_57] : memref<16xf32, #tpu.memory_space<smem>>
    %210 = vector.broadcast %209 : f32 to vector<8x8xf32>
    %211 = arith.mulf %210, %208 : vector<8x8xf32>
    %212 = arith.addf %189, %211 : vector<8x8xf32>
    %213 = vector.extract_strided_slice %39 {offsets = [7, 0], sizes = [1, 8], strides = [1, 1]} : vector<16x8xf32> to vector<1x8xf32>
    %c7 = arith.constant 7 : index
    %214 = memref.load %arg0[%c7] : memref<16xf32, #tpu.memory_space<smem>>
    %215 = vector.broadcast %213 : vector<1x8xf32> to vector<8x8xf32>
    %216 = arith.subf %142, %215 : vector<8x8xf32>
    %217 = vector.broadcast %214 : f32 to vector<8x8xf32>
    %218 = arith.mulf %217, %216 : vector<8x8xf32>
    %c7_58 = arith.constant 7 : index
    %219 = memref.load %arg1[%c7_58] : memref<16xf32, #tpu.memory_space<smem>>
    %220 = vector.broadcast %219 : f32 to vector<8x8xf32>
    %221 = arith.mulf %220, %36 : vector<8x8xf32>
    %222 = arith.addf %218, %221 : vector<8x8xf32>
    %cst_59 = arith.constant dense<0xFF800000> : vector<8xf32>
    %223 = vector.multi_reduction <maximumf>, %222, %cst_59 [1] : vector<8x8xf32> to vector<8xf32>
    %224 = vector.shape_cast %223 : vector<8xf32> to vector<8x1xf32>
    %225 = vector.broadcast %224 : vector<8x1xf32> to vector<8x8xf32>
    %226 = arith.subf %222, %225 : vector<8x8xf32>
    %227 = math.exp %226 : vector<8x8xf32>
    %cst_60 = arith.constant dense<0.000000e+00> : vector<8xf32>
    %228 = vector.multi_reduction <add>, %227, %cst_60 [1] : vector<8x8xf32> to vector<8xf32>
    %229 = vector.shape_cast %228 : vector<8xf32> to vector<8x1xf32>
    %230 = vector.broadcast %229 : vector<8x1xf32> to vector<8x8xf32>
    %231 = arith.divf %227, %230 : vector<8x8xf32>
    %c7_61 = arith.constant 7 : index
    %232 = memref.load %arg2[%c7_61] : memref<16xf32, #tpu.memory_space<smem>>
    %233 = vector.broadcast %232 : f32 to vector<8x8xf32>
    %234 = arith.mulf %233, %231 : vector<8x8xf32>
    %235 = arith.addf %212, %234 : vector<8x8xf32>
    %cst_62 = arith.constant dense<0.000000e+00> : vector<8x8xf32>
    %236 = tpu.matmul %235, %141, %cst_62 {dimension_numbers = #tpu.dot_dimension_numbers<[1], [0], [0], [1], [0, 0, 1, 1], [], []>} : vector<8x8xf32>, vector<8x8xf32>, vector<8x8xf32> -> vector<8x8xf32>
    %c0_63 = arith.constant 0 : index
    %c8 = arith.constant 8 : index
    %237 = vector.load %arg14[%c0_63, %c8] : memref<16x32xf32, #tpu.memory_space<vmem>>, vector<8x8xf32>
    tpu.vector_store %arg14[%c0_63, %c8], %236 {strides = array<i32>} : memref<16x32xf32, #tpu.memory_space<vmem>>, vector<8x8xf32>,
    %238 = vector.extract_strided_slice %21 {offsets = [0, 16], sizes = [8, 8], strides = [1, 1]} : vector<16x32xf32> to vector<8x8xf32>
    %239 = vector.extract_strided_slice %38 {offsets = [0, 16], sizes = [8, 8], strides = [1, 1]} : vector<8x32xf32> to vector<8x8xf32>
    %240 = vector.extract_strided_slice %35 {offsets = [0, 16], sizes = [8, 8], strides = [1, 1]} : vector<16x32xf32> to vector<8x8xf32>
    %cst_64 = arith.constant dense<0.000000e+00> : vector<8x8xf32>
    %241 = tpu.matmul %238, %239, %cst_64 {dimension_numbers = #tpu.dot_dimension_numbers<[1], [1], [0], [0], [0, 0, 1, 0], [], []>} : vector<8x8xf32>, vector<8x8xf32>, vector<8x8xf32> -> vector<8x8xf32>
    %cst_65 = arith.constant 0.000000e+00 : f32
    %242 = vector.broadcast %cst_65 : f32 to vector<8x8xf32>
    %243 = vector.extract_strided_slice %39 {offsets = [8, 0], sizes = [1, 8], strides = [1, 1]} : vector<16x8xf32> to vector<1x8xf32>
    %c8_66 = arith.constant 8 : index
    %244 = memref.load %arg0[%c8_66] : memref<16xf32, #tpu.memory_space<smem>>
    %245 = vector.broadcast %243 : vector<1x8xf32> to vector<8x8xf32>
    %246 = arith.subf %241, %245 : vector<8x8xf32>
    %247 = vector.broadcast %244 : f32 to vector<8x8xf32>
    %248 = arith.mulf %247, %246 : vector<8x8xf32>
    %c8_67 = arith.constant 8 : index
    %249 = memref.load %arg1[%c8_67] : memref<16xf32, #tpu.memory_space<smem>>
    %250 = vector.broadcast %249 : f32 to vector<8x8xf32>
    %251 = arith.mulf %250, %36 : vector<8x8xf32>
    %252 = arith.addf %248, %251 : vector<8x8xf32>
    %cst_68 = arith.constant dense<0xFF800000> : vector<8xf32>
    %253 = vector.multi_reduction <maximumf>, %252, %cst_68 [1] : vector<8x8xf32> to vector<8xf32>
    %254 = vector.shape_cast %253 : vector<8xf32> to vector<8x1xf32>
    %255 = vector.broadcast %254 : vector<8x1xf32> to vector<8x8xf32>
    %256 = arith.subf %252, %255 : vector<8x8xf32>
    %257 = math.exp %256 : vector<8x8xf32>
    %cst_69 = arith.constant dense<0.000000e+00> : vector<8xf32>
    %258 = vector.multi_reduction <add>, %257, %cst_69 [1] : vector<8x8xf32> to vector<8xf32>
    %259 = vector.shape_cast %258 : vector<8xf32> to vector<8x1xf32>
    %260 = vector.broadcast %259 : vector<8x1xf32> to vector<8x8xf32>
    %261 = arith.divf %257, %260 : vector<8x8xf32>
    %c8_70 = arith.constant 8 : index
    %262 = memref.load %arg2[%c8_70] : memref<16xf32, #tpu.memory_space<smem>>
    %263 = vector.broadcast %262 : f32 to vector<8x8xf32>
    %264 = arith.mulf %263, %261 : vector<8x8xf32>
    %265 = arith.addf %242, %264 : vector<8x8xf32>
    %266 = vector.extract_strided_slice %39 {offsets = [9, 0], sizes = [1, 8], strides = [1, 1]} : vector<16x8xf32> to vector<1x8xf32>
    %c9 = arith.constant 9 : index
    %267 = memref.load %arg0[%c9] : memref<16xf32, #tpu.memory_space<smem>>
    %268 = vector.broadcast %266 : vector<1x8xf32> to vector<8x8xf32>
    %269 = arith.subf %241, %268 : vector<8x8xf32>
    %270 = vector.broadcast %267 : f32 to vector<8x8xf32>
    %271 = arith.mulf %270, %269 : vector<8x8xf32>
    %c9_71 = arith.constant 9 : index
    %272 = memref.load %arg1[%c9_71] : memref<16xf32, #tpu.memory_space<smem>>
    %273 = vector.broadcast %272 : f32 to vector<8x8xf32>
    %274 = arith.mulf %273, %36 : vector<8x8xf32>
    %275 = arith.addf %271, %274 : vector<8x8xf32>
    %cst_72 = arith.constant dense<0xFF800000> : vector<8xf32>
    %276 = vector.multi_reduction <maximumf>, %275, %cst_72 [1] : vector<8x8xf32> to vector<8xf32>
    %277 = vector.shape_cast %276 : vector<8xf32> to vector<8x1xf32>
    %278 = vector.broadcast %277 : vector<8x1xf32> to vector<8x8xf32>
    %279 = arith.subf %275, %278 : vector<8x8xf32>
    %280 = math.exp %279 : vector<8x8xf32>
    %cst_73 = arith.constant dense<0.000000e+00> : vector<8xf32>
    %281 = vector.multi_reduction <add>, %280, %cst_73 [1] : vector<8x8xf32> to vector<8xf32>
    %282 = vector.shape_cast %281 : vector<8xf32> to vector<8x1xf32>
    %283 = vector.broadcast %282 : vector<8x1xf32> to vector<8x8xf32>
    %284 = arith.divf %280, %283 : vector<8x8xf32>
    %c9_74 = arith.constant 9 : index
    %285 = memref.load %arg2[%c9_74] : memref<16xf32, #tpu.memory_space<smem>>
    %286 = vector.broadcast %285 : f32 to vector<8x8xf32>
    %287 = arith.mulf %286, %284 : vector<8x8xf32>
    %288 = arith.addf %265, %287 : vector<8x8xf32>
    %289 = vector.extract_strided_slice %39 {offsets = [10, 0], sizes = [1, 8], strides = [1, 1]} : vector<16x8xf32> to vector<1x8xf32>
    %c10 = arith.constant 10 : index
    %290 = memref.load %arg0[%c10] : memref<16xf32, #tpu.memory_space<smem>>
    %291 = vector.broadcast %289 : vector<1x8xf32> to vector<8x8xf32>
    %292 = arith.subf %241, %291 : vector<8x8xf32>
    %293 = vector.broadcast %290 : f32 to vector<8x8xf32>
    %294 = arith.mulf %293, %292 : vector<8x8xf32>
    %c10_75 = arith.constant 10 : index
    %295 = memref.load %arg1[%c10_75] : memref<16xf32, #tpu.memory_space<smem>>
    %296 = vector.broadcast %295 : f32 to vector<8x8xf32>
    %297 = arith.mulf %296, %36 : vector<8x8xf32>
    %298 = arith.addf %294, %297 : vector<8x8xf32>
    %cst_76 = arith.constant dense<0xFF800000> : vector<8xf32>
    %299 = vector.multi_reduction <maximumf>, %298, %cst_76 [1] : vector<8x8xf32> to vector<8xf32>
    %300 = vector.shape_cast %299 : vector<8xf32> to vector<8x1xf32>
    %301 = vector.broadcast %300 : vector<8x1xf32> to vector<8x8xf32>
    %302 = arith.subf %298, %301 : vector<8x8xf32>
    %303 = math.exp %302 : vector<8x8xf32>
    %cst_77 = arith.constant dense<0.000000e+00> : vector<8xf32>
    %304 = vector.multi_reduction <add>, %303, %cst_77 [1] : vector<8x8xf32> to vector<8xf32>
    %305 = vector.shape_cast %304 : vector<8xf32> to vector<8x1xf32>
    %306 = vector.broadcast %305 : vector<8x1xf32> to vector<8x8xf32>
    %307 = arith.divf %303, %306 : vector<8x8xf32>
    %c10_78 = arith.constant 10 : index
    %308 = memref.load %arg2[%c10_78] : memref<16xf32, #tpu.memory_space<smem>>
    %309 = vector.broadcast %308 : f32 to vector<8x8xf32>
    %310 = arith.mulf %309, %307 : vector<8x8xf32>
    %311 = arith.addf %288, %310 : vector<8x8xf32>
    %312 = vector.extract_strided_slice %39 {offsets = [11, 0], sizes = [1, 8], strides = [1, 1]} : vector<16x8xf32> to vector<1x8xf32>
    %c11 = arith.constant 11 : index
    %313 = memref.load %arg0[%c11] : memref<16xf32, #tpu.memory_space<smem>>
    %314 = vector.broadcast %312 : vector<1x8xf32> to vector<8x8xf32>
    %315 = arith.subf %241, %314 : vector<8x8xf32>
    %316 = vector.broadcast %313 : f32 to vector<8x8xf32>
    %317 = arith.mulf %316, %315 : vector<8x8xf32>
    %c11_79 = arith.constant 11 : index
    %318 = memref.load %arg1[%c11_79] : memref<16xf32, #tpu.memory_space<smem>>
    %319 = vector.broadcast %318 : f32 to vector<8x8xf32>
    %320 = arith.mulf %319, %36 : vector<8x8xf32>
    %321 = arith.addf %317, %320 : vector<8x8xf32>
    %cst_80 = arith.constant dense<0xFF800000> : vector<8xf32>
    %322 = vector.multi_reduction <maximumf>, %321, %cst_80 [1] : vector<8x8xf32> to vector<8xf32>
    %323 = vector.shape_cast %322 : vector<8xf32> to vector<8x1xf32>
    %324 = vector.broadcast %323 : vector<8x1xf32> to vector<8x8xf32>
    %325 = arith.subf %321, %324 : vector<8x8xf32>
    %326 = math.exp %325 : vector<8x8xf32>
    %cst_81 = arith.constant dense<0.000000e+00> : vector<8xf32>
    %327 = vector.multi_reduction <add>, %326, %cst_81 [1] : vector<8x8xf32> to vector<8xf32>
    %328 = vector.shape_cast %327 : vector<8xf32> to vector<8x1xf32>
    %329 = vector.broadcast %328 : vector<8x1xf32> to vector<8x8xf32>
    %330 = arith.divf %326, %329 : vector<8x8xf32>
    %c11_82 = arith.constant 11 : index
    %331 = memref.load %arg2[%c11_82] : memref<16xf32, #tpu.memory_space<smem>>
    %332 = vector.broadcast %331 : f32 to vector<8x8xf32>
    %333 = arith.mulf %332, %330 : vector<8x8xf32>
    %334 = arith.addf %311, %333 : vector<8x8xf32>
    %cst_83 = arith.constant dense<0.000000e+00> : vector<8x8xf32>
    %335 = tpu.matmul %334, %240, %cst_83 {dimension_numbers = #tpu.dot_dimension_numbers<[1], [0], [0], [1], [0, 0, 1, 1], [], []>} : vector<8x8xf32>, vector<8x8xf32>, vector<8x8xf32> -> vector<8x8xf32>
    %c0_84 = arith.constant 0 : index
    %c16 = arith.constant 16 : index
    %336 = vector.load %arg14[%c0_84, %c16] : memref<16x32xf32, #tpu.memory_space<vmem>>, vector<8x8xf32>
    tpu.vector_store %arg14[%c0_84, %c16], %335 {strides = array<i32>} : memref<16x32xf32, #tpu.memory_space<vmem>>, vector<8x8xf32>,
    %337 = vector.extract_strided_slice %21 {offsets = [0, 24], sizes = [8, 8], strides = [1, 1]} : vector<16x32xf32> to vector<8x8xf32>
    %338 = vector.extract_strided_slice %38 {offsets = [0, 24], sizes = [8, 8], strides = [1, 1]} : vector<8x32xf32> to vector<8x8xf32>
    %339 = vector.extract_strided_slice %35 {offsets = [0, 24], sizes = [8, 8], strides = [1, 1]} : vector<16x32xf32> to vector<8x8xf32>
    %cst_85 = arith.constant dense<0.000000e+00> : vector<8x8xf32>
    %340 = tpu.matmul %337, %338, %cst_85 {dimension_numbers = #tpu.dot_dimension_numbers<[1], [1], [0], [0], [0, 0, 1, 0], [], []>} : vector<8x8xf32>, vector<8x8xf32>, vector<8x8xf32> -> vector<8x8xf32>
    %cst_86 = arith.constant 0.000000e+00 : f32
    %341 = vector.broadcast %cst_86 : f32 to vector<8x8xf32>
    %342 = vector.extract_strided_slice %39 {offsets = [12, 0], sizes = [1, 8], strides = [1, 1]} : vector<16x8xf32> to vector<1x8xf32>
    %c12 = arith.constant 12 : index
    %343 = memref.load %arg0[%c12] : memref<16xf32, #tpu.memory_space<smem>>
    %344 = vector.broadcast %342 : vector<1x8xf32> to vector<8x8xf32>
    %345 = arith.subf %340, %344 : vector<8x8xf32>
    %346 = vector.broadcast %343 : f32 to vector<8x8xf32>
    %347 = arith.mulf %346, %345 : vector<8x8xf32>
    %c12_87 = arith.constant 12 : index
    %348 = memref.load %arg1[%c12_87] : memref<16xf32, #tpu.memory_space<smem>>
    %349 = vector.broadcast %348 : f32 to vector<8x8xf32>
    %350 = arith.mulf %349, %36 : vector<8x8xf32>
    %351 = arith.addf %347, %350 : vector<8x8xf32>
    %cst_88 = arith.constant dense<0xFF800000> : vector<8xf32>
    %352 = vector.multi_reduction <maximumf>, %351, %cst_88 [1] : vector<8x8xf32> to vector<8xf32>
    %353 = vector.shape_cast %352 : vector<8xf32> to vector<8x1xf32>
    %354 = vector.broadcast %353 : vector<8x1xf32> to vector<8x8xf32>
    %355 = arith.subf %351, %354 : vector<8x8xf32>
    %356 = math.exp %355 : vector<8x8xf32>
    %cst_89 = arith.constant dense<0.000000e+00> : vector<8xf32>
    %357 = vector.multi_reduction <add>, %356, %cst_89 [1] : vector<8x8xf32> to vector<8xf32>
    %358 = vector.shape_cast %357 : vector<8xf32> to vector<8x1xf32>
    %359 = vector.broadcast %358 : vector<8x1xf32> to vector<8x8xf32>
    %360 = arith.divf %356, %359 : vector<8x8xf32>
    %c12_90 = arith.constant 12 : index
    %361 = memref.load %arg2[%c12_90] : memref<16xf32, #tpu.memory_space<smem>>
    %362 = vector.broadcast %361 : f32 to vector<8x8xf32>
    %363 = arith.mulf %362, %360 : vector<8x8xf32>
    %364 = arith.addf %341, %363 : vector<8x8xf32>
    %365 = vector.extract_strided_slice %39 {offsets = [13, 0], sizes = [1, 8], strides = [1, 1]} : vector<16x8xf32> to vector<1x8xf32>
    %c13 = arith.constant 13 : index
    %366 = memref.load %arg0[%c13] : memref<16xf32, #tpu.memory_space<smem>>
    %367 = vector.broadcast %365 : vector<1x8xf32> to vector<8x8xf32>
    %368 = arith.subf %340, %367 : vector<8x8xf32>
    %369 = vector.broadcast %366 : f32 to vector<8x8xf32>
    %370 = arith.mulf %369, %368 : vector<8x8xf32>
    %c13_91 = arith.constant 13 : index
    %371 = memref.load %arg1[%c13_91] : memref<16xf32, #tpu.memory_space<smem>>
    %372 = vector.broadcast %371 : f32 to vector<8x8xf32>
    %373 = arith.mulf %372, %36 : vector<8x8xf32>
    %374 = arith.addf %370, %373 : vector<8x8xf32>
    %cst_92 = arith.constant dense<0xFF800000> : vector<8xf32>
    %375 = vector.multi_reduction <maximumf>, %374, %cst_92 [1] : vector<8x8xf32> to vector<8xf32>
    %376 = vector.shape_cast %375 : vector<8xf32> to vector<8x1xf32>
    %377 = vector.broadcast %376 : vector<8x1xf32> to vector<8x8xf32>
    %378 = arith.subf %374, %377 : vector<8x8xf32>
    %379 = math.exp %378 : vector<8x8xf32>
    %cst_93 = arith.constant dense<0.000000e+00> : vector<8xf32>
    %380 = vector.multi_reduction <add>, %379, %cst_93 [1] : vector<8x8xf32> to vector<8xf32>
    %381 = vector.shape_cast %380 : vector<8xf32> to vector<8x1xf32>
    %382 = vector.broadcast %381 : vector<8x1xf32> to vector<8x8xf32>
    %383 = arith.divf %379, %382 : vector<8x8xf32>
    %c13_94 = arith.constant 13 : index
    %384 = memref.load %arg2[%c13_94] : memref<16xf32, #tpu.memory_space<smem>>
    %385 = vector.broadcast %384 : f32 to vector<8x8xf32>
    %386 = arith.mulf %385, %383 : vector<8x8xf32>
    %387 = arith.addf %364, %386 : vector<8x8xf32>
    %388 = vector.extract_strided_slice %39 {offsets = [14, 0], sizes = [1, 8], strides = [1, 1]} : vector<16x8xf32> to vector<1x8xf32>
    %c14 = arith.constant 14 : index
    %389 = memref.load %arg0[%c14] : memref<16xf32, #tpu.memory_space<smem>>
    %390 = vector.broadcast %388 : vector<1x8xf32> to vector<8x8xf32>
    %391 = arith.subf %340, %390 : vector<8x8xf32>
    %392 = vector.broadcast %389 : f32 to vector<8x8xf32>
    %393 = arith.mulf %392, %391 : vector<8x8xf32>
    %c14_95 = arith.constant 14 : index
    %394 = memref.load %arg1[%c14_95] : memref<16xf32, #tpu.memory_space<smem>>
    %395 = vector.broadcast %394 : f32 to vector<8x8xf32>
    %396 = arith.mulf %395, %36 : vector<8x8xf32>
    %397 = arith.addf %393, %396 : vector<8x8xf32>
    %cst_96 = arith.constant dense<0xFF800000> : vector<8xf32>
    %398 = vector.multi_reduction <maximumf>, %397, %cst_96 [1] : vector<8x8xf32> to vector<8xf32>
    %399 = vector.shape_cast %398 : vector<8xf32> to vector<8x1xf32>
    %400 = vector.broadcast %399 : vector<8x1xf32> to vector<8x8xf32>
    %401 = arith.subf %397, %400 : vector<8x8xf32>
    %402 = math.exp %401 : vector<8x8xf32>
    %cst_97 = arith.constant dense<0.000000e+00> : vector<8xf32>
    %403 = vector.multi_reduction <add>, %402, %cst_97 [1] : vector<8x8xf32> to vector<8xf32>
    %404 = vector.shape_cast %403 : vector<8xf32> to vector<8x1xf32>
    %405 = vector.broadcast %404 : vector<8x1xf32> to vector<8x8xf32>
    %406 = arith.divf %402, %405 : vector<8x8xf32>
    %c14_98 = arith.constant 14 : index
    %407 = memref.load %arg2[%c14_98] : memref<16xf32, #tpu.memory_space<smem>>
    %408 = vector.broadcast %407 : f32 to vector<8x8xf32>
    %409 = arith.mulf %408, %406 : vector<8x8xf32>
    %410 = arith.addf %387, %409 : vector<8x8xf32>
    %411 = vector.extract_strided_slice %39 {offsets = [15, 0], sizes = [1, 8], strides = [1, 1]} : vector<16x8xf32> to vector<1x8xf32>
    %c15 = arith.constant 15 : index
    %412 = memref.load %arg0[%c15] : memref<16xf32, #tpu.memory_space<smem>>
    %413 = vector.broadcast %411 : vector<1x8xf32> to vector<8x8xf32>
    %414 = arith.subf %340, %413 : vector<8x8xf32>
    %415 = vector.broadcast %412 : f32 to vector<8x8xf32>
    %416 = arith.mulf %415, %414 : vector<8x8xf32>
    %c15_99 = arith.constant 15 : index
    %417 = memref.load %arg1[%c15_99] : memref<16xf32, #tpu.memory_space<smem>>
    %418 = vector.broadcast %417 : f32 to vector<8x8xf32>
    %419 = arith.mulf %418, %36 : vector<8x8xf32>
    %420 = arith.addf %416, %419 : vector<8x8xf32>
    %cst_100 = arith.constant dense<0xFF800000> : vector<8xf32>
    %421 = vector.multi_reduction <maximumf>, %420, %cst_100 [1] : vector<8x8xf32> to vector<8xf32>
    %422 = vector.shape_cast %421 : vector<8xf32> to vector<8x1xf32>
    %423 = vector.broadcast %422 : vector<8x1xf32> to vector<8x8xf32>
    %424 = arith.subf %420, %423 : vector<8x8xf32>
    %425 = math.exp %424 : vector<8x8xf32>
    %cst_101 = arith.constant dense<0.000000e+00> : vector<8xf32>
    %426 = vector.multi_reduction <add>, %425, %cst_101 [1] : vector<8x8xf32> to vector<8xf32>
    %427 = vector.shape_cast %426 : vector<8xf32> to vector<8x1xf32>
    %428 = vector.broadcast %427 : vector<8x1xf32> to vector<8x8xf32>
    %429 = arith.divf %425, %428 : vector<8x8xf32>
    %c15_102 = arith.constant 15 : index
    %430 = memref.load %arg2[%c15_102] : memref<16xf32, #tpu.memory_space<smem>>
    %431 = vector.broadcast %430 : f32 to vector<8x8xf32>
    %432 = arith.mulf %431, %429 : vector<8x8xf32>
    %433 = arith.addf %410, %432 : vector<8x8xf32>
    %cst_103 = arith.constant dense<0.000000e+00> : vector<8x8xf32>
    %434 = tpu.matmul %433, %339, %cst_103 {dimension_numbers = #tpu.dot_dimension_numbers<[1], [0], [0], [1], [0, 0, 1, 1], [], []>} : vector<8x8xf32>, vector<8x8xf32>, vector<8x8xf32> -> vector<8x8xf32>
    %c0_104 = arith.constant 0 : index
    %c24 = arith.constant 24 : index
    %435 = vector.load %arg14[%c0_104, %c24] : memref<16x32xf32, #tpu.memory_space<vmem>>, vector<8x8xf32>
    tpu.vector_store %arg14[%c0_104, %c24], %434 {strides = array<i32>} : memref<16x32xf32, #tpu.memory_space<vmem>>, vector<8x8xf32>,
    %436 = vector.extract_strided_slice %34 {offsets = [8, 0], sizes = [8, 32], strides = [1, 1]} : vector<16x32xf32> to vector<8x32xf32>
    %cst_105 = arith.constant dense<0.000000e+00> : vector<16x8xf32>
    %437 = tpu.matmul %37, %436, %cst_105 {dimension_numbers = #tpu.dot_dimension_numbers<[1], [1], [0], [0], [0, 0, 1, 0], [], []>} : vector<16x32xf32>, vector<8x32xf32>, vector<16x8xf32> -> vector<16x8xf32>
    %438 = vector.extract_strided_slice %21 {offsets = [8, 0], sizes = [8, 8], strides = [1, 1]} : vector<16x32xf32> to vector<8x8xf32>
    %439 = vector.extract_strided_slice %436 {offsets = [0, 0], sizes = [8, 8], strides = [1, 1]} : vector<8x32xf32> to vector<8x8xf32>
    %440 = vector.extract_strided_slice %35 {offsets = [8, 0], sizes = [8, 8], strides = [1, 1]} : vector<16x32xf32> to vector<8x8xf32>
    %cst_106 = arith.constant dense<0.000000e+00> : vector<8x8xf32>
    %441 = tpu.matmul %438, %439, %cst_106 {dimension_numbers = #tpu.dot_dimension_numbers<[1], [1], [0], [0], [0, 0, 1, 0], [], []>} : vector<8x8xf32>, vector<8x8xf32>, vector<8x8xf32> -> vector<8x8xf32>
    %cst_107 = arith.constant 0.000000e+00 : f32
    %442 = vector.broadcast %cst_107 : f32 to vector<8x8xf32>
    %443 = vector.extract_strided_slice %437 {offsets = [0, 0], sizes = [1, 8], strides = [1, 1]} : vector<16x8xf32> to vector<1x8xf32>
    %c0_108 = arith.constant 0 : index
    %444 = memref.load %arg0[%c0_108] : memref<16xf32, #tpu.memory_space<smem>>
    %445 = vector.broadcast %443 : vector<1x8xf32> to vector<8x8xf32>
    %446 = arith.subf %441, %445 : vector<8x8xf32>
    %447 = vector.broadcast %444 : f32 to vector<8x8xf32>
    %448 = arith.mulf %447, %446 : vector<8x8xf32>
    %c0_109 = arith.constant 0 : index
    %449 = memref.load %arg1[%c0_109] : memref<16xf32, #tpu.memory_space<smem>>
    %450 = vector.broadcast %449 : f32 to vector<8x8xf32>
    %451 = arith.mulf %450, %36 : vector<8x8xf32>
    %452 = arith.addf %448, %451 : vector<8x8xf32>
    %cst_110 = arith.constant dense<0xFF800000> : vector<8xf32>
    %453 = vector.multi_reduction <maximumf>, %452, %cst_110 [1] : vector<8x8xf32> to vector<8xf32>
    %454 = vector.shape_cast %453 : vector<8xf32> to vector<8x1xf32>
    %455 = vector.broadcast %454 : vector<8x1xf32> to vector<8x8xf32>
    %456 = arith.subf %452, %455 : vector<8x8xf32>
    %457 = math.exp %456 : vector<8x8xf32>
    %cst_111 = arith.constant dense<0.000000e+00> : vector<8xf32>
    %458 = vector.multi_reduction <add>, %457, %cst_111 [1] : vector<8x8xf32> to vector<8xf32>
    %459 = vector.shape_cast %458 : vector<8xf32> to vector<8x1xf32>
    %460 = vector.broadcast %459 : vector<8x1xf32> to vector<8x8xf32>
    %461 = arith.divf %457, %460 : vector<8x8xf32>
    %c0_112 = arith.constant 0 : index
    %462 = memref.load %arg2[%c0_112] : memref<16xf32, #tpu.memory_space<smem>>
    %463 = vector.broadcast %462 : f32 to vector<8x8xf32>
    %464 = arith.mulf %463, %461 : vector<8x8xf32>
    %465 = arith.addf %442, %464 : vector<8x8xf32>
    %466 = vector.extract_strided_slice %437 {offsets = [1, 0], sizes = [1, 8], strides = [1, 1]} : vector<16x8xf32> to vector<1x8xf32>
    %c1_113 = arith.constant 1 : index
    %467 = memref.load %arg0[%c1_113] : memref<16xf32, #tpu.memory_space<smem>>
    %468 = vector.broadcast %466 : vector<1x8xf32> to vector<8x8xf32>
    %469 = arith.subf %441, %468 : vector<8x8xf32>
    %470 = vector.broadcast %467 : f32 to vector<8x8xf32>
    %471 = arith.mulf %470, %469 : vector<8x8xf32>
    %c1_114 = arith.constant 1 : index
    %472 = memref.load %arg1[%c1_114] : memref<16xf32, #tpu.memory_space<smem>>
    %473 = vector.broadcast %472 : f32 to vector<8x8xf32>
    %474 = arith.mulf %473, %36 : vector<8x8xf32>
    %475 = arith.addf %471, %474 : vector<8x8xf32>
    %cst_115 = arith.constant dense<0xFF800000> : vector<8xf32>
    %476 = vector.multi_reduction <maximumf>, %475, %cst_115 [1] : vector<8x8xf32> to vector<8xf32>
    %477 = vector.shape_cast %476 : vector<8xf32> to vector<8x1xf32>
    %478 = vector.broadcast %477 : vector<8x1xf32> to vector<8x8xf32>
    %479 = arith.subf %475, %478 : vector<8x8xf32>
    %480 = math.exp %479 : vector<8x8xf32>
    %cst_116 = arith.constant dense<0.000000e+00> : vector<8xf32>
    %481 = vector.multi_reduction <add>, %480, %cst_116 [1] : vector<8x8xf32> to vector<8xf32>
    %482 = vector.shape_cast %481 : vector<8xf32> to vector<8x1xf32>
    %483 = vector.broadcast %482 : vector<8x1xf32> to vector<8x8xf32>
    %484 = arith.divf %480, %483 : vector<8x8xf32>
    %c1_117 = arith.constant 1 : index
    %485 = memref.load %arg2[%c1_117] : memref<16xf32, #tpu.memory_space<smem>>
    %486 = vector.broadcast %485 : f32 to vector<8x8xf32>
    %487 = arith.mulf %486, %484 : vector<8x8xf32>
    %488 = arith.addf %465, %487 : vector<8x8xf32>
    %489 = vector.extract_strided_slice %437 {offsets = [2, 0], sizes = [1, 8], strides = [1, 1]} : vector<16x8xf32> to vector<1x8xf32>
    %c2_118 = arith.constant 2 : index
    %490 = memref.load %arg0[%c2_118] : memref<16xf32, #tpu.memory_space<smem>>
    %491 = vector.broadcast %489 : vector<1x8xf32> to vector<8x8xf32>
    %492 = arith.subf %441, %491 : vector<8x8xf32>
    %493 = vector.broadcast %490 : f32 to vector<8x8xf32>
    %494 = arith.mulf %493, %492 : vector<8x8xf32>
    %c2_119 = arith.constant 2 : index
    %495 = memref.load %arg1[%c2_119] : memref<16xf32, #tpu.memory_space<smem>>
    %496 = vector.broadcast %495 : f32 to vector<8x8xf32>
    %497 = arith.mulf %496, %36 : vector<8x8xf32>
    %498 = arith.addf %494, %497 : vector<8x8xf32>
    %cst_120 = arith.constant dense<0xFF800000> : vector<8xf32>
    %499 = vector.multi_reduction <maximumf>, %498, %cst_120 [1] : vector<8x8xf32> to vector<8xf32>
    %500 = vector.shape_cast %499 : vector<8xf32> to vector<8x1xf32>
    %501 = vector.broadcast %500 : vector<8x1xf32> to vector<8x8xf32>
    %502 = arith.subf %498, %501 : vector<8x8xf32>
    %503 = math.exp %502 : vector<8x8xf32>
    %cst_121 = arith.constant dense<0.000000e+00> : vector<8xf32>
    %504 = vector.multi_reduction <add>, %503, %cst_121 [1] : vector<8x8xf32> to vector<8xf32>
    %505 = vector.shape_cast %504 : vector<8xf32> to vector<8x1xf32>
    %506 = vector.broadcast %505 : vector<8x1xf32> to vector<8x8xf32>
    %507 = arith.divf %503, %506 : vector<8x8xf32>
    %c2_122 = arith.constant 2 : index
    %508 = memref.load %arg2[%c2_122] : memref<16xf32, #tpu.memory_space<smem>>
    %509 = vector.broadcast %508 : f32 to vector<8x8xf32>
    %510 = arith.mulf %509, %507 : vector<8x8xf32>
    %511 = arith.addf %488, %510 : vector<8x8xf32>
    %512 = vector.extract_strided_slice %437 {offsets = [3, 0], sizes = [1, 8], strides = [1, 1]} : vector<16x8xf32> to vector<1x8xf32>
    %c3_123 = arith.constant 3 : index
    %513 = memref.load %arg0[%c3_123] : memref<16xf32, #tpu.memory_space<smem>>
    %514 = vector.broadcast %512 : vector<1x8xf32> to vector<8x8xf32>
    %515 = arith.subf %441, %514 : vector<8x8xf32>
    %516 = vector.broadcast %513 : f32 to vector<8x8xf32>
    %517 = arith.mulf %516, %515 : vector<8x8xf32>
    %c3_124 = arith.constant 3 : index
    %518 = memref.load %arg1[%c3_124] : memref<16xf32, #tpu.memory_space<smem>>
    %519 = vector.broadcast %518 : f32 to vector<8x8xf32>
    %520 = arith.mulf %519, %36 : vector<8x8xf32>
    %521 = arith.addf %517, %520 : vector<8x8xf32>
    %cst_125 = arith.constant dense<0xFF800000> : vector<8xf32>
    %522 = vector.multi_reduction <maximumf>, %521, %cst_125 [1] : vector<8x8xf32> to vector<8xf32>
    %523 = vector.shape_cast %522 : vector<8xf32> to vector<8x1xf32>
    %524 = vector.broadcast %523 : vector<8x1xf32> to vector<8x8xf32>
    %525 = arith.subf %521, %524 : vector<8x8xf32>
    %526 = math.exp %525 : vector<8x8xf32>
    %cst_126 = arith.constant dense<0.000000e+00> : vector<8xf32>
    %527 = vector.multi_reduction <add>, %526, %cst_126 [1] : vector<8x8xf32> to vector<8xf32>
    %528 = vector.shape_cast %527 : vector<8xf32> to vector<8x1xf32>
    %529 = vector.broadcast %528 : vector<8x1xf32> to vector<8x8xf32>
    %530 = arith.divf %526, %529 : vector<8x8xf32>
    %c3_127 = arith.constant 3 : index
    %531 = memref.load %arg2[%c3_127] : memref<16xf32, #tpu.memory_space<smem>>
    %532 = vector.broadcast %531 : f32 to vector<8x8xf32>
    %533 = arith.mulf %532, %530 : vector<8x8xf32>
    %534 = arith.addf %511, %533 : vector<8x8xf32>
    %cst_128 = arith.constant dense<0.000000e+00> : vector<8x8xf32>
    %535 = tpu.matmul %534, %440, %cst_128 {dimension_numbers = #tpu.dot_dimension_numbers<[1], [0], [0], [1], [0, 0, 1, 1], [], []>} : vector<8x8xf32>, vector<8x8xf32>, vector<8x8xf32> -> vector<8x8xf32>
    %c8_129 = arith.constant 8 : index
    %c0_130 = arith.constant 0 : index
    %536 = vector.load %arg14[%c8_129, %c0_130] : memref<16x32xf32, #tpu.memory_space<vmem>>, vector<8x8xf32>
    tpu.vector_store %arg14[%c8_129, %c0_130], %535 {strides = array<i32>} : memref<16x32xf32, #tpu.memory_space<vmem>>, vector<8x8xf32>,
    %537 = vector.extract_strided_slice %21 {offsets = [8, 8], sizes = [8, 8], strides = [1, 1]} : vector<16x32xf32> to vector<8x8xf32>
    %538 = vector.extract_strided_slice %436 {offsets = [0, 8], sizes = [8, 8], strides = [1, 1]} : vector<8x32xf32> to vector<8x8xf32>
    %539 = vector.extract_strided_slice %35 {offsets = [8, 8], sizes = [8, 8], strides = [1, 1]} : vector<16x32xf32> to vector<8x8xf32>
    %cst_131 = arith.constant dense<0.000000e+00> : vector<8x8xf32>
    %540 = tpu.matmul %537, %538, %cst_131 {dimension_numbers = #tpu.dot_dimension_numbers<[1], [1], [0], [0], [0, 0, 1, 0], [], []>} : vector<8x8xf32>, vector<8x8xf32>, vector<8x8xf32> -> vector<8x8xf32>
    %cst_132 = arith.constant 0.000000e+00 : f32
    %541 = vector.broadcast %cst_132 : f32 to vector<8x8xf32>
    %542 = vector.extract_strided_slice %437 {offsets = [4, 0], sizes = [1, 8], strides = [1, 1]} : vector<16x8xf32> to vector<1x8xf32>
    %c4_133 = arith.constant 4 : index
    %543 = memref.load %arg0[%c4_133] : memref<16xf32, #tpu.memory_space<smem>>
    %544 = vector.broadcast %542 : vector<1x8xf32> to vector<8x8xf32>
    %545 = arith.subf %540, %544 : vector<8x8xf32>
    %546 = vector.broadcast %543 : f32 to vector<8x8xf32>
    %547 = arith.mulf %546, %545 : vector<8x8xf32>
    %c4_134 = arith.constant 4 : index
    %548 = memref.load %arg1[%c4_134] : memref<16xf32, #tpu.memory_space<smem>>
    %549 = vector.broadcast %548 : f32 to vector<8x8xf32>
    %550 = arith.mulf %549, %36 : vector<8x8xf32>
    %551 = arith.addf %547, %550 : vector<8x8xf32>
    %cst_135 = arith.constant dense<0xFF800000> : vector<8xf32>
    %552 = vector.multi_reduction <maximumf>, %551, %cst_135 [1] : vector<8x8xf32> to vector<8xf32>
    %553 = vector.shape_cast %552 : vector<8xf32> to vector<8x1xf32>
    %554 = vector.broadcast %553 : vector<8x1xf32> to vector<8x8xf32>
    %555 = arith.subf %551, %554 : vector<8x8xf32>
    %556 = math.exp %555 : vector<8x8xf32>
    %cst_136 = arith.constant dense<0.000000e+00> : vector<8xf32>
    %557 = vector.multi_reduction <add>, %556, %cst_136 [1] : vector<8x8xf32> to vector<8xf32>
    %558 = vector.shape_cast %557 : vector<8xf32> to vector<8x1xf32>
    %559 = vector.broadcast %558 : vector<8x1xf32> to vector<8x8xf32>
    %560 = arith.divf %556, %559 : vector<8x8xf32>
    %c4_137 = arith.constant 4 : index
    %561 = memref.load %arg2[%c4_137] : memref<16xf32, #tpu.memory_space<smem>>
    %562 = vector.broadcast %561 : f32 to vector<8x8xf32>
    %563 = arith.mulf %562, %560 : vector<8x8xf32>
    %564 = arith.addf %541, %563 : vector<8x8xf32>
    %565 = vector.extract_strided_slice %437 {offsets = [5, 0], sizes = [1, 8], strides = [1, 1]} : vector<16x8xf32> to vector<1x8xf32>
    %c5_138 = arith.constant 5 : index
    %566 = memref.load %arg0[%c5_138] : memref<16xf32, #tpu.memory_space<smem>>
    %567 = vector.broadcast %565 : vector<1x8xf32> to vector<8x8xf32>
    %568 = arith.subf %540, %567 : vector<8x8xf32>
    %569 = vector.broadcast %566 : f32 to vector<8x8xf32>
    %570 = arith.mulf %569, %568 : vector<8x8xf32>
    %c5_139 = arith.constant 5 : index
    %571 = memref.load %arg1[%c5_139] : memref<16xf32, #tpu.memory_space<smem>>
    %572 = vector.broadcast %571 : f32 to vector<8x8xf32>
    %573 = arith.mulf %572, %36 : vector<8x8xf32>
    %574 = arith.addf %570, %573 : vector<8x8xf32>
    %cst_140 = arith.constant dense<0xFF800000> : vector<8xf32>
    %575 = vector.multi_reduction <maximumf>, %574, %cst_140 [1] : vector<8x8xf32> to vector<8xf32>
    %576 = vector.shape_cast %575 : vector<8xf32> to vector<8x1xf32>
    %577 = vector.broadcast %576 : vector<8x1xf32> to vector<8x8xf32>
    %578 = arith.subf %574, %577 : vector<8x8xf32>
    %579 = math.exp %578 : vector<8x8xf32>
    %cst_141 = arith.constant dense<0.000000e+00> : vector<8xf32>
    %580 = vector.multi_reduction <add>, %579, %cst_141 [1] : vector<8x8xf32> to vector<8xf32>
    %581 = vector.shape_cast %580 : vector<8xf32> to vector<8x1xf32>
    %582 = vector.broadcast %581 : vector<8x1xf32> to vector<8x8xf32>
    %583 = arith.divf %579, %582 : vector<8x8xf32>
    %c5_142 = arith.constant 5 : index
    %584 = memref.load %arg2[%c5_142] : memref<16xf32, #tpu.memory_space<smem>>
    %585 = vector.broadcast %584 : f32 to vector<8x8xf32>
    %586 = arith.mulf %585, %583 : vector<8x8xf32>
    %587 = arith.addf %564, %586 : vector<8x8xf32>
    %588 = vector.extract_strided_slice %437 {offsets = [6, 0], sizes = [1, 8], strides = [1, 1]} : vector<16x8xf32> to vector<1x8xf32>
    %c6_143 = arith.constant 6 : index
    %589 = memref.load %arg0[%c6_143] : memref<16xf32, #tpu.memory_space<smem>>
    %590 = vector.broadcast %588 : vector<1x8xf32> to vector<8x8xf32>
    %591 = arith.subf %540, %590 : vector<8x8xf32>
    %592 = vector.broadcast %589 : f32 to vector<8x8xf32>
    %593 = arith.mulf %592, %591 : vector<8x8xf32>
    %c6_144 = arith.constant 6 : index
    %594 = memref.load %arg1[%c6_144] : memref<16xf32, #tpu.memory_space<smem>>
    %595 = vector.broadcast %594 : f32 to vector<8x8xf32>
    %596 = arith.mulf %595, %36 : vector<8x8xf32>
    %597 = arith.addf %593, %596 : vector<8x8xf32>
    %cst_145 = arith.constant dense<0xFF800000> : vector<8xf32>
    %598 = vector.multi_reduction <maximumf>, %597, %cst_145 [1] : vector<8x8xf32> to vector<8xf32>
    %599 = vector.shape_cast %598 : vector<8xf32> to vector<8x1xf32>
    %600 = vector.broadcast %599 : vector<8x1xf32> to vector<8x8xf32>
    %601 = arith.subf %597, %600 : vector<8x8xf32>
    %602 = math.exp %601 : vector<8x8xf32>
    %cst_146 = arith.constant dense<0.000000e+00> : vector<8xf32>
    %603 = vector.multi_reduction <add>, %602, %cst_146 [1] : vector<8x8xf32> to vector<8xf32>
    %604 = vector.shape_cast %603 : vector<8xf32> to vector<8x1xf32>
    %605 = vector.broadcast %604 : vector<8x1xf32> to vector<8x8xf32>
    %606 = arith.divf %602, %605 : vector<8x8xf32>
    %c6_147 = arith.constant 6 : index
    %607 = memref.load %arg2[%c6_147] : memref<16xf32, #tpu.memory_space<smem>>
    %608 = vector.broadcast %607 : f32 to vector<8x8xf32>
    %609 = arith.mulf %608, %606 : vector<8x8xf32>
    %610 = arith.addf %587, %609 : vector<8x8xf32>
    %611 = vector.extract_strided_slice %437 {offsets = [7, 0], sizes = [1, 8], strides = [1, 1]} : vector<16x8xf32> to vector<1x8xf32>
    %c7_148 = arith.constant 7 : index
    %612 = memref.load %arg0[%c7_148] : memref<16xf32, #tpu.memory_space<smem>>
    %613 = vector.broadcast %611 : vector<1x8xf32> to vector<8x8xf32>
    %614 = arith.subf %540, %613 : vector<8x8xf32>
    %615 = vector.broadcast %612 : f32 to vector<8x8xf32>
    %616 = arith.mulf %615, %614 : vector<8x8xf32>
    %c7_149 = arith.constant 7 : index
    %617 = memref.load %arg1[%c7_149] : memref<16xf32, #tpu.memory_space<smem>>
    %618 = vector.broadcast %617 : f32 to vector<8x8xf32>
    %619 = arith.mulf %618, %36 : vector<8x8xf32>
    %620 = arith.addf %616, %619 : vector<8x8xf32>
    %cst_150 = arith.constant dense<0xFF800000> : vector<8xf32>
    %621 = vector.multi_reduction <maximumf>, %620, %cst_150 [1] : vector<8x8xf32> to vector<8xf32>
    %622 = vector.shape_cast %621 : vector<8xf32> to vector<8x1xf32>
    %623 = vector.broadcast %622 : vector<8x1xf32> to vector<8x8xf32>
    %624 = arith.subf %620, %623 : vector<8x8xf32>
    %625 = math.exp %624 : vector<8x8xf32>
    %cst_151 = arith.constant dense<0.000000e+00> : vector<8xf32>
    %626 = vector.multi_reduction <add>, %625, %cst_151 [1] : vector<8x8xf32> to vector<8xf32>
    %627 = vector.shape_cast %626 : vector<8xf32> to vector<8x1xf32>
    %628 = vector.broadcast %627 : vector<8x1xf32> to vector<8x8xf32>
    %629 = arith.divf %625, %628 : vector<8x8xf32>
    %c7_152 = arith.constant 7 : index
    %630 = memref.load %arg2[%c7_152] : memref<16xf32, #tpu.memory_space<smem>>
    %631 = vector.broadcast %630 : f32 to vector<8x8xf32>
    %632 = arith.mulf %631, %629 : vector<8x8xf32>
    %633 = arith.addf %610, %632 : vector<8x8xf32>
    %cst_153 = arith.constant dense<0.000000e+00> : vector<8x8xf32>
    %634 = tpu.matmul %633, %539, %cst_153 {dimension_numbers = #tpu.dot_dimension_numbers<[1], [0], [0], [1], [0, 0, 1, 1], [], []>} : vector<8x8xf32>, vector<8x8xf32>, vector<8x8xf32> -> vector<8x8xf32>
    %c8_154 = arith.constant 8 : index
    %c8_155 = arith.constant 8 : index
    %635 = vector.load %arg14[%c8_154, %c8_155] : memref<16x32xf32, #tpu.memory_space<vmem>>, vector<8x8xf32>
    tpu.vector_store %arg14[%c8_154, %c8_155], %634 {strides = array<i32>} : memref<16x32xf32, #tpu.memory_space<vmem>>, vector<8x8xf32>,
    %636 = vector.extract_strided_slice %21 {offsets = [8, 16], sizes = [8, 8], strides = [1, 1]} : vector<16x32xf32> to vector<8x8xf32>
    %637 = vector.extract_strided_slice %436 {offsets = [0, 16], sizes = [8, 8], strides = [1, 1]} : vector<8x32xf32> to vector<8x8xf32>
    %638 = vector.extract_strided_slice %35 {offsets = [8, 16], sizes = [8, 8], strides = [1, 1]} : vector<16x32xf32> to vector<8x8xf32>
    %cst_156 = arith.constant dense<0.000000e+00> : vector<8x8xf32>
    %639 = tpu.matmul %636, %637, %cst_156 {dimension_numbers = #tpu.dot_dimension_numbers<[1], [1], [0], [0], [0, 0, 1, 0], [], []>} : vector<8x8xf32>, vector<8x8xf32>, vector<8x8xf32> -> vector<8x8xf32>
    %cst_157 = arith.constant 0.000000e+00 : f32
    %640 = vector.broadcast %cst_157 : f32 to vector<8x8xf32>
    %641 = vector.extract_strided_slice %437 {offsets = [8, 0], sizes = [1, 8], strides = [1, 1]} : vector<16x8xf32> to vector<1x8xf32>
    %c8_158 = arith.constant 8 : index
    %642 = memref.load %arg0[%c8_158] : memref<16xf32, #tpu.memory_space<smem>>
    %643 = vector.broadcast %641 : vector<1x8xf32> to vector<8x8xf32>
    %644 = arith.subf %639, %643 : vector<8x8xf32>
    %645 = vector.broadcast %642 : f32 to vector<8x8xf32>
    %646 = arith.mulf %645, %644 : vector<8x8xf32>
    %c8_159 = arith.constant 8 : index
    %647 = memref.load %arg1[%c8_159] : memref<16xf32, #tpu.memory_space<smem>>
    %648 = vector.broadcast %647 : f32 to vector<8x8xf32>
    %649 = arith.mulf %648, %36 : vector<8x8xf32>
    %650 = arith.addf %646, %649 : vector<8x8xf32>
    %cst_160 = arith.constant dense<0xFF800000> : vector<8xf32>
    %651 = vector.multi_reduction <maximumf>, %650, %cst_160 [1] : vector<8x8xf32> to vector<8xf32>
    %652 = vector.shape_cast %651 : vector<8xf32> to vector<8x1xf32>
    %653 = vector.broadcast %652 : vector<8x1xf32> to vector<8x8xf32>
    %654 = arith.subf %650, %653 : vector<8x8xf32>
    %655 = math.exp %654 : vector<8x8xf32>
    %cst_161 = arith.constant dense<0.000000e+00> : vector<8xf32>
    %656 = vector.multi_reduction <add>, %655, %cst_161 [1] : vector<8x8xf32> to vector<8xf32>
    %657 = vector.shape_cast %656 : vector<8xf32> to vector<8x1xf32>
    %658 = vector.broadcast %657 : vector<8x1xf32> to vector<8x8xf32>
    %659 = arith.divf %655, %658 : vector<8x8xf32>
    %c8_162 = arith.constant 8 : index
    %660 = memref.load %arg2[%c8_162] : memref<16xf32, #tpu.memory_space<smem>>
    %661 = vector.broadcast %660 : f32 to vector<8x8xf32>
    %662 = arith.mulf %661, %659 : vector<8x8xf32>
    %663 = arith.addf %640, %662 : vector<8x8xf32>
    %664 = vector.extract_strided_slice %437 {offsets = [9, 0], sizes = [1, 8], strides = [1, 1]} : vector<16x8xf32> to vector<1x8xf32>
    %c9_163 = arith.constant 9 : index
    %665 = memref.load %arg0[%c9_163] : memref<16xf32, #tpu.memory_space<smem>>
    %666 = vector.broadcast %664 : vector<1x8xf32> to vector<8x8xf32>
    %667 = arith.subf %639, %666 : vector<8x8xf32>
    %668 = vector.broadcast %665 : f32 to vector<8x8xf32>
    %669 = arith.mulf %668, %667 : vector<8x8xf32>
    %c9_164 = arith.constant 9 : index
    %670 = memref.load %arg1[%c9_164] : memref<16xf32, #tpu.memory_space<smem>>
    %671 = vector.broadcast %670 : f32 to vector<8x8xf32>
    %672 = arith.mulf %671, %36 : vector<8x8xf32>
    %673 = arith.addf %669, %672 : vector<8x8xf32>
    %cst_165 = arith.constant dense<0xFF800000> : vector<8xf32>
    %674 = vector.multi_reduction <maximumf>, %673, %cst_165 [1] : vector<8x8xf32> to vector<8xf32>
    %675 = vector.shape_cast %674 : vector<8xf32> to vector<8x1xf32>
    %676 = vector.broadcast %675 : vector<8x1xf32> to vector<8x8xf32>
    %677 = arith.subf %673, %676 : vector<8x8xf32>
    %678 = math.exp %677 : vector<8x8xf32>
    %cst_166 = arith.constant dense<0.000000e+00> : vector<8xf32>
    %679 = vector.multi_reduction <add>, %678, %cst_166 [1] : vector<8x8xf32> to vector<8xf32>
    %680 = vector.shape_cast %679 : vector<8xf32> to vector<8x1xf32>
    %681 = vector.broadcast %680 : vector<8x1xf32> to vector<8x8xf32>
    %682 = arith.divf %678, %681 : vector<8x8xf32>
    %c9_167 = arith.constant 9 : index
    %683 = memref.load %arg2[%c9_167] : memref<16xf32, #tpu.memory_space<smem>>
    %684 = vector.broadcast %683 : f32 to vector<8x8xf32>
    %685 = arith.mulf %684, %682 : vector<8x8xf32>
    %686 = arith.addf %663, %685 : vector<8x8xf32>
    %687 = vector.extract_strided_slice %437 {offsets = [10, 0], sizes = [1, 8], strides = [1, 1]} : vector<16x8xf32> to vector<1x8xf32>
    %c10_168 = arith.constant 10 : index
    %688 = memref.load %arg0[%c10_168] : memref<16xf32, #tpu.memory_space<smem>>
    %689 = vector.broadcast %687 : vector<1x8xf32> to vector<8x8xf32>
    %690 = arith.subf %639, %689 : vector<8x8xf32>
    %691 = vector.broadcast %688 : f32 to vector<8x8xf32>
    %692 = arith.mulf %691, %690 : vector<8x8xf32>
    %c10_169 = arith.constant 10 : index
    %693 = memref.load %arg1[%c10_169] : memref<16xf32, #tpu.memory_space<smem>>
    %694 = vector.broadcast %693 : f32 to vector<8x8xf32>
    %695 = arith.mulf %694, %36 : vector<8x8xf32>
    %696 = arith.addf %692, %695 : vector<8x8xf32>
    %cst_170 = arith.constant dense<0xFF800000> : vector<8xf32>
    %697 = vector.multi_reduction <maximumf>, %696, %cst_170 [1] : vector<8x8xf32> to vector<8xf32>
    %698 = vector.shape_cast %697 : vector<8xf32> to vector<8x1xf32>
    %699 = vector.broadcast %698 : vector<8x1xf32> to vector<8x8xf32>
    %700 = arith.subf %696, %699 : vector<8x8xf32>
    %701 = math.exp %700 : vector<8x8xf32>
    %cst_171 = arith.constant dense<0.000000e+00> : vector<8xf32>
    %702 = vector.multi_reduction <add>, %701, %cst_171 [1] : vector<8x8xf32> to vector<8xf32>
    %703 = vector.shape_cast %702 : vector<8xf32> to vector<8x1xf32>
    %704 = vector.broadcast %703 : vector<8x1xf32> to vector<8x8xf32>
    %705 = arith.divf %701, %704 : vector<8x8xf32>
    %c10_172 = arith.constant 10 : index
    %706 = memref.load %arg2[%c10_172] : memref<16xf32, #tpu.memory_space<smem>>
    %707 = vector.broadcast %706 : f32 to vector<8x8xf32>
    %708 = arith.mulf %707, %705 : vector<8x8xf32>
    %709 = arith.addf %686, %708 : vector<8x8xf32>
    %710 = vector.extract_strided_slice %437 {offsets = [11, 0], sizes = [1, 8], strides = [1, 1]} : vector<16x8xf32> to vector<1x8xf32>
    %c11_173 = arith.constant 11 : index
    %711 = memref.load %arg0[%c11_173] : memref<16xf32, #tpu.memory_space<smem>>
    %712 = vector.broadcast %710 : vector<1x8xf32> to vector<8x8xf32>
    %713 = arith.subf %639, %712 : vector<8x8xf32>
    %714 = vector.broadcast %711 : f32 to vector<8x8xf32>
    %715 = arith.mulf %714, %713 : vector<8x8xf32>
    %c11_174 = arith.constant 11 : index
    %716 = memref.load %arg1[%c11_174] : memref<16xf32, #tpu.memory_space<smem>>
    %717 = vector.broadcast %716 : f32 to vector<8x8xf32>
    %718 = arith.mulf %717, %36 : vector<8x8xf32>
    %719 = arith.addf %715, %718 : vector<8x8xf32>
    %cst_175 = arith.constant dense<0xFF800000> : vector<8xf32>
    %720 = vector.multi_reduction <maximumf>, %719, %cst_175 [1] : vector<8x8xf32> to vector<8xf32>
    %721 = vector.shape_cast %720 : vector<8xf32> to vector<8x1xf32>
    %722 = vector.broadcast %721 : vector<8x1xf32> to vector<8x8xf32>
    %723 = arith.subf %719, %722 : vector<8x8xf32>
    %724 = math.exp %723 : vector<8x8xf32>
    %cst_176 = arith.constant dense<0.000000e+00> : vector<8xf32>
    %725 = vector.multi_reduction <add>, %724, %cst_176 [1] : vector<8x8xf32> to vector<8xf32>
    %726 = vector.shape_cast %725 : vector<8xf32> to vector<8x1xf32>
    %727 = vector.broadcast %726 : vector<8x1xf32> to vector<8x8xf32>
    %728 = arith.divf %724, %727 : vector<8x8xf32>
    %c11_177 = arith.constant 11 : index
    %729 = memref.load %arg2[%c11_177] : memref<16xf32, #tpu.memory_space<smem>>
    %730 = vector.broadcast %729 : f32 to vector<8x8xf32>
    %731 = arith.mulf %730, %728 : vector<8x8xf32>
    %732 = arith.addf %709, %731 : vector<8x8xf32>
    %cst_178 = arith.constant dense<0.000000e+00> : vector<8x8xf32>
    %733 = tpu.matmul %732, %638, %cst_178 {dimension_numbers = #tpu.dot_dimension_numbers<[1], [0], [0], [1], [0, 0, 1, 1], [], []>} : vector<8x8xf32>, vector<8x8xf32>, vector<8x8xf32> -> vector<8x8xf32>
    %c8_179 = arith.constant 8 : index
    %c16_180 = arith.constant 16 : index
    %734 = vector.load %arg14[%c8_179, %c16_180] : memref<16x32xf32, #tpu.memory_space<vmem>>, vector<8x8xf32>
    tpu.vector_store %arg14[%c8_179, %c16_180], %733 {strides = array<i32>} : memref<16x32xf32, #tpu.memory_space<vmem>>, vector<8x8xf32>,
    %735 = vector.extract_strided_slice %21 {offsets = [8, 24], sizes = [8, 8], strides = [1, 1]} : vector<16x32xf32> to vector<8x8xf32>
    %736 = vector.extract_strided_slice %436 {offsets = [0, 24], sizes = [8, 8], strides = [1, 1]} : vector<8x32xf32> to vector<8x8xf32>
    %737 = vector.extract_strided_slice %35 {offsets = [8, 24], sizes = [8, 8], strides = [1, 1]} : vector<16x32xf32> to vector<8x8xf32>
    %cst_181 = arith.constant dense<0.000000e+00> : vector<8x8xf32>
    %738 = tpu.matmul %735, %736, %cst_181 {dimension_numbers = #tpu.dot_dimension_numbers<[1], [1], [0], [0], [0, 0, 1, 0], [], []>} : vector<8x8xf32>, vector<8x8xf32>, vector<8x8xf32> -> vector<8x8xf32>
    %cst_182 = arith.constant 0.000000e+00 : f32
    %739 = vector.broadcast %cst_182 : f32 to vector<8x8xf32>
    %740 = vector.extract_strided_slice %437 {offsets = [12, 0], sizes = [1, 8], strides = [1, 1]} : vector<16x8xf32> to vector<1x8xf32>
    %c12_183 = arith.constant 12 : index
    %741 = memref.load %arg0[%c12_183] : memref<16xf32, #tpu.memory_space<smem>>
    %742 = vector.broadcast %740 : vector<1x8xf32> to vector<8x8xf32>
    %743 = arith.subf %738, %742 : vector<8x8xf32>
    %744 = vector.broadcast %741 : f32 to vector<8x8xf32>
    %745 = arith.mulf %744, %743 : vector<8x8xf32>
    %c12_184 = arith.constant 12 : index
    %746 = memref.load %arg1[%c12_184] : memref<16xf32, #tpu.memory_space<smem>>
    %747 = vector.broadcast %746 : f32 to vector<8x8xf32>
    %748 = arith.mulf %747, %36 : vector<8x8xf32>
    %749 = arith.addf %745, %748 : vector<8x8xf32>
    %cst_185 = arith.constant dense<0xFF800000> : vector<8xf32>
    %750 = vector.multi_reduction <maximumf>, %749, %cst_185 [1] : vector<8x8xf32> to vector<8xf32>
    %751 = vector.shape_cast %750 : vector<8xf32> to vector<8x1xf32>
    %752 = vector.broadcast %751 : vector<8x1xf32> to vector<8x8xf32>
    %753 = arith.subf %749, %752 : vector<8x8xf32>
    %754 = math.exp %753 : vector<8x8xf32>
    %cst_186 = arith.constant dense<0.000000e+00> : vector<8xf32>
    %755 = vector.multi_reduction <add>, %754, %cst_186 [1] : vector<8x8xf32> to vector<8xf32>
    %756 = vector.shape_cast %755 : vector<8xf32> to vector<8x1xf32>
    %757 = vector.broadcast %756 : vector<8x1xf32> to vector<8x8xf32>
    %758 = arith.divf %754, %757 : vector<8x8xf32>
    %c12_187 = arith.constant 12 : index
    %759 = memref.load %arg2[%c12_187] : memref<16xf32, #tpu.memory_space<smem>>
    %760 = vector.broadcast %759 : f32 to vector<8x8xf32>
    %761 = arith.mulf %760, %758 : vector<8x8xf32>
    %762 = arith.addf %739, %761 : vector<8x8xf32>
    %763 = vector.extract_strided_slice %437 {offsets = [13, 0], sizes = [1, 8], strides = [1, 1]} : vector<16x8xf32> to vector<1x8xf32>
    %c13_188 = arith.constant 13 : index
    %764 = memref.load %arg0[%c13_188] : memref<16xf32, #tpu.memory_space<smem>>
    %765 = vector.broadcast %763 : vector<1x8xf32> to vector<8x8xf32>
    %766 = arith.subf %738, %765 : vector<8x8xf32>
    %767 = vector.broadcast %764 : f32 to vector<8x8xf32>
    %768 = arith.mulf %767, %766 : vector<8x8xf32>
    %c13_189 = arith.constant 13 : index
    %769 = memref.load %arg1[%c13_189] : memref<16xf32, #tpu.memory_space<smem>>
    %770 = vector.broadcast %769 : f32 to vector<8x8xf32>
    %771 = arith.mulf %770, %36 : vector<8x8xf32>
    %772 = arith.addf %768, %771 : vector<8x8xf32>
    %cst_190 = arith.constant dense<0xFF800000> : vector<8xf32>
    %773 = vector.multi_reduction <maximumf>, %772, %cst_190 [1] : vector<8x8xf32> to vector<8xf32>
    %774 = vector.shape_cast %773 : vector<8xf32> to vector<8x1xf32>
    %775 = vector.broadcast %774 : vector<8x1xf32> to vector<8x8xf32>
    %776 = arith.subf %772, %775 : vector<8x8xf32>
    %777 = math.exp %776 : vector<8x8xf32>
    %cst_191 = arith.constant dense<0.000000e+00> : vector<8xf32>
    %778 = vector.multi_reduction <add>, %777, %cst_191 [1] : vector<8x8xf32> to vector<8xf32>
    %779 = vector.shape_cast %778 : vector<8xf32> to vector<8x1xf32>
    %780 = vector.broadcast %779 : vector<8x1xf32> to vector<8x8xf32>
    %781 = arith.divf %777, %780 : vector<8x8xf32>
    %c13_192 = arith.constant 13 : index
    %782 = memref.load %arg2[%c13_192] : memref<16xf32, #tpu.memory_space<smem>>
    %783 = vector.broadcast %782 : f32 to vector<8x8xf32>
    %784 = arith.mulf %783, %781 : vector<8x8xf32>
    %785 = arith.addf %762, %784 : vector<8x8xf32>
    %786 = vector.extract_strided_slice %437 {offsets = [14, 0], sizes = [1, 8], strides = [1, 1]} : vector<16x8xf32> to vector<1x8xf32>
    %c14_193 = arith.constant 14 : index
    %787 = memref.load %arg0[%c14_193] : memref<16xf32, #tpu.memory_space<smem>>
    %788 = vector.broadcast %786 : vector<1x8xf32> to vector<8x8xf32>
    %789 = arith.subf %738, %788 : vector<8x8xf32>
    %790 = vector.broadcast %787 : f32 to vector<8x8xf32>
    %791 = arith.mulf %790, %789 : vector<8x8xf32>
    %c14_194 = arith.constant 14 : index
    %792 = memref.load %arg1[%c14_194] : memref<16xf32, #tpu.memory_space<smem>>
    %793 = vector.broadcast %792 : f32 to vector<8x8xf32>
    %794 = arith.mulf %793, %36 : vector<8x8xf32>
    %795 = arith.addf %791, %794 : vector<8x8xf32>
    %cst_195 = arith.constant dense<0xFF800000> : vector<8xf32>
    %796 = vector.multi_reduction <maximumf>, %795, %cst_195 [1] : vector<8x8xf32> to vector<8xf32>
    %797 = vector.shape_cast %796 : vector<8xf32> to vector<8x1xf32>
    %798 = vector.broadcast %797 : vector<8x1xf32> to vector<8x8xf32>
    %799 = arith.subf %795, %798 : vector<8x8xf32>
    %800 = math.exp %799 : vector<8x8xf32>
    %cst_196 = arith.constant dense<0.000000e+00> : vector<8xf32>
    %801 = vector.multi_reduction <add>, %800, %cst_196 [1] : vector<8x8xf32> to vector<8xf32>
    %802 = vector.shape_cast %801 : vector<8xf32> to vector<8x1xf32>
    %803 = vector.broadcast %802 : vector<8x1xf32> to vector<8x8xf32>
    %804 = arith.divf %800, %803 : vector<8x8xf32>
    %c14_197 = arith.constant 14 : index
    %805 = memref.load %arg2[%c14_197] : memref<16xf32, #tpu.memory_space<smem>>
    %806 = vector.broadcast %805 : f32 to vector<8x8xf32>
    %807 = arith.mulf %806, %804 : vector<8x8xf32>
    %808 = arith.addf %785, %807 : vector<8x8xf32>
    %809 = vector.extract_strided_slice %437 {offsets = [15, 0], sizes = [1, 8], strides = [1, 1]} : vector<16x8xf32> to vector<1x8xf32>
    %c15_198 = arith.constant 15 : index
    %810 = memref.load %arg0[%c15_198] : memref<16xf32, #tpu.memory_space<smem>>
    %811 = vector.broadcast %809 : vector<1x8xf32> to vector<8x8xf32>
    %812 = arith.subf %738, %811 : vector<8x8xf32>
    %813 = vector.broadcast %810 : f32 to vector<8x8xf32>
    %814 = arith.mulf %813, %812 : vector<8x8xf32>
    %c15_199 = arith.constant 15 : index
    %815 = memref.load %arg1[%c15_199] : memref<16xf32, #tpu.memory_space<smem>>
    %816 = vector.broadcast %815 : f32 to vector<8x8xf32>
    %817 = arith.mulf %816, %36 : vector<8x8xf32>
    %818 = arith.addf %814, %817 : vector<8x8xf32>
    %cst_200 = arith.constant dense<0xFF800000> : vector<8xf32>
    %819 = vector.multi_reduction <maximumf>, %818, %cst_200 [1] : vector<8x8xf32> to vector<8xf32>
    %820 = vector.shape_cast %819 : vector<8xf32> to vector<8x1xf32>
    %821 = vector.broadcast %820 : vector<8x1xf32> to vector<8x8xf32>
    %822 = arith.subf %818, %821 : vector<8x8xf32>
    %823 = math.exp %822 : vector<8x8xf32>
    %cst_201 = arith.constant dense<0.000000e+00> : vector<8xf32>
    %824 = vector.multi_reduction <add>, %823, %cst_201 [1] : vector<8x8xf32> to vector<8xf32>
    %825 = vector.shape_cast %824 : vector<8xf32> to vector<8x1xf32>
    %826 = vector.broadcast %825 : vector<8x1xf32> to vector<8x8xf32>
    %827 = arith.divf %823, %826 : vector<8x8xf32>
    %c15_202 = arith.constant 15 : index
    %828 = memref.load %arg2[%c15_202] : memref<16xf32, #tpu.memory_space<smem>>
    %829 = vector.broadcast %828 : f32 to vector<8x8xf32>
    %830 = arith.mulf %829, %827 : vector<8x8xf32>
    %831 = arith.addf %808, %830 : vector<8x8xf32>
    %cst_203 = arith.constant dense<0.000000e+00> : vector<8x8xf32>
    %832 = tpu.matmul %831, %737, %cst_203 {dimension_numbers = #tpu.dot_dimension_numbers<[1], [0], [0], [1], [0, 0, 1, 1], [], []>} : vector<8x8xf32>, vector<8x8xf32>, vector<8x8xf32> -> vector<8x8xf32>
    %c8_204 = arith.constant 8 : index
    %c24_205 = arith.constant 24 : index
    %833 = vector.load %arg14[%c8_204, %c24_205] : memref<16x32xf32, #tpu.memory_space<vmem>>, vector<8x8xf32>
    tpu.vector_store %arg14[%c8_204, %c24_205], %832 {strides = array<i32>} : memref<16x32xf32, #tpu.memory_space<vmem>>, vector<8x8xf32>,
    %c0_206 = arith.constant 0 : index
    %c0_207 = arith.constant 0 : index
    %834 = vector.load %arg14[%c0_206, %c0_207] : memref<16x32xf32, #tpu.memory_space<vmem>>, vector<16x32xf32>
    %c0_208 = arith.constant 0 : index
    %c0_209 = arith.constant 0 : index
    %835 = vector.load %arg11[%c0_208, %c0_209] : memref<32x32xf32, #tpu.memory_space<vmem>>, vector<32x32xf32>
    %cst_210 = arith.constant dense<0.000000e+00> : vector<16x32xf32>
    %836 = tpu.matmul %834, %835, %cst_210 {dimension_numbers = #tpu.dot_dimension_numbers<[1], [0], [0], [1], [0, 0, 1, 1], [], []>} : vector<16x32xf32>, vector<32x32xf32>, vector<16x32xf32> -> vector<16x32xf32>
    %c0_211 = arith.constant 0 : index
    %c0_212 = arith.constant 0 : index
    %837 = vector.load %arg12[%c0_211, %c0_212] : memref<1x32xf32, #tpu.memory_space<vmem>>, vector<1x32xf32>
    %838 = vector.broadcast %837 : vector<1x32xf32> to vector<16x32xf32>
    %839 = arith.addf %836, %838 : vector<16x32xf32>
    %c0_213 = arith.constant 0 : index
    %c0_214 = arith.constant 0 : index
    %840 = vector.load %arg13[%c0_213, %c0_214] : memref<16x32xf32, #tpu.memory_space<vmem>>, vector<16x32xf32>
    tpu.vector_store %arg13[%c0_213, %c0_214], %839 {strides = array<i32>} : memref<16x32xf32, #tpu.memory_space<vmem>>, vector<16x32xf32>,
    return
  }
}

</mosaic_0001>

<llo_original>
// kernel: tile.14
$region0: #{tile.14}
  %s0 = inlined_call_operand.vmem [shape: f32[4,8], index: 0, kind: input, shape index: {}]
  %s1 = inlined_call_operand.vmem [shape: f32[1,32], index: 1, kind: output, shape index: {}]
  $region1: #{tile.14} parent=0
    #allocation0 [shape = 'u8[4096]{0}', space=vmem, size = 0x1000, scoped, tag = 'scoped mem for output reshape']
    #allocation1 [shape = 'u8[4096]{0}', space=vmem, size = 0x1000, scoped, tag = 'scoped mem for input reshape']
    %s3 = sshll.u32 1, 4
    %s4 = ssub.s32 %s3, 1
    %v5 = vld [vmem:[%s0] sm:%s4]
    %6 = vst [vmem:[#allocation1] sm:%s4] %v5
    %v7 = vld [vmem:[#allocation1] sm:$0x1]
    %vm8 = vcmask 64512
    %9 = vst.msk [vmem:[#allocation0] sm:$0x1] %vm8, %v7
    %s10 = scalar_lea.vmem [#allocation1], 3
    %v11 = vld [vmem:[%s10] sm:$0x1]
    %12 = vrot.lane.b32.xlu0 %v11, 24
    %v13 = vpop.permute.xlu0 %12
    %vm14 = vcmask 261312
    %15 = vst.msk [vmem:[#allocation0] sm:$0x1] %vm14, %v13
    %s16 = scalar_lea.vmem [#allocation1], 2
    %v17 = vld [vmem:[%s16] sm:$0x1]
    %18 = vrot.lane.b32.xlu0 %v17, 16
    %v19 = vpop.permute.xlu0 %18
    %vm20 = vcmask 195712
    %21 = vst.msk [vmem:[#allocation0] sm:$0x1] %vm20, %v19
    %s22 = scalar_lea.vmem [#allocation1], 1
    %v23 = vld [vmem:[%s22] sm:$0x1]
    %24 = vrot.lane.b32.xlu0 %v23, 8
    %v25 = vpop.permute.xlu0 %24
    %vm26 = vcmask 130112
    %27 = vst.msk [vmem:[#allocation0] sm:$0x1] %vm26, %v25
    %s29 = sshll.u32 1, 1
    %s30 = ssub.s32 %s29, 1
    %v32 = vld [vmem:[#allocation0] sm:%s30]
    %s33 = sshll.u32 1, 1
    %s34 = ssub.s32 %s33, 1
    %35 = vst [vmem:[%s1] sm:%s34] %v32

// kernel: tile.13
$region0: #{tile.13}
  #allocation0 [shape = 's32[1]{0}', space=sflag, size = 0x4, scoped, tag = 'scoped memory for tile.13']
  %s0 = inlined_call_operand.vmem [shape: f32[8], index: 0, kind: input, shape index: {}]
  %s1 = inlined_call_operand.vmem [shape: f32[4,8], index: 1, kind: output, shape index: {}]
  // Predicated region
  $region2: #{tile.13} parent=0 // pred_check
    _
  $region3: #{tile.13} parent=0 // pred_check_branch
    %3 = sbr.rel (0) target = $region5
  $region4: #{tile.13} parent=0 // pred_region
    _
  $region5: #{tile.13} parent=0 // pred_fallthru
    _
  %v4 = vld [vmem:[%s0] ss:$0 sm:$0xff]
  %5 = vst [vmem:[%s1] sm:$0xf] %v4

// kernel: gsa_attention_forward.1
$region0: #{gsa_attention_forward.1}
  #allocation0 [shape = 'u32[]', space=smem, size = 0x4, offset = 0x4, fixed_abs, tag = 'smem constant byte address 0x4 - core index']
  #allocation1 [shape = 'u32[144,128]{1,0:T(1,128)}', space=vmem, size = 0x12000, scoped, tag = 'internal scratch']
  #allocation2 [shape = 'f32[16,32]{1,0:T(8,128)}', space=vmem, size = 0x2000, scoped, tag = 'scratch operand']
  %s0 = inlined_call_operand.vmem [shape: f32[16], index: 0, kind: input, shape index: {}]
  %s1 = inlined_call_operand.vmem [shape: f32[16], index: 1, kind: input, shape index: {}]
  %s2 = inlined_call_operand.vmem [shape: f32[16], index: 2, kind: input, shape index: {}]
  %s3 = inlined_call_operand.vmem [shape: f32[16,32], index: 3, kind: input, shape index: {}]
  %s4 = inlined_call_operand.vmem [shape: f32[32,96], index: 4, kind: input, shape index: {}]
  %s5 = inlined_call_operand.vmem [shape: f32[1,96], index: 5, kind: input, shape index: {}]
  %s6 = inlined_call_operand.vmem [shape: f32[16,32], index: 6, kind: input, shape index: {}]
  %s7 = inlined_call_operand.vmem [shape: f32[32,32], index: 7, kind: input, shape index: {}]
  %s8 = inlined_call_operand.vmem [shape: f32[1,32], index: 8, kind: input, shape index: {}]
  %s9 = inlined_call_operand.vmem [shape: f32[1,32], index: 9, kind: input, shape index: {}]
  %s10 = inlined_call_operand.vmem [shape: f32[8,8], index: 10, kind: input, shape index: {}]
  %s11 = inlined_call_operand.vmem [shape: f32[32,32], index: 11, kind: input, shape index: {}]
  %s12 = inlined_call_operand.vmem [shape: f32[1,32], index: 12, kind: input, shape index: {}]
  %s13 = inlined_call_operand.hbm [shape: f32[16,32], index: 13, kind: output, shape index: {}]
  %s14 = sld [smem:[#allocation0]]
  $region74: #{gsa_attention_forward.1} parent=0
    _
  %s16 = ssub.s32 1, %s14
  %s17 = scalar_select 0, %s16, %s14
  $region1: #{gsa_attention_forward.1} parent=0
    #allocation3 [shape = 'u8[512]{0}', space=smem, size = 0x200, scoped, tag = 'input window, operand 0, single buffered']
    #allocation4 [shape = 's32[1]{0}', space=sflag, size = 0x4, scoped, tag = 'scoped memory for gsa_attention_forward.1']
    #allocation5 [shape = 's32[1]{0}', space=sflag, size = 0x4, scoped, tag = 'scoped memory for gsa_attention_forward.1']
    #allocation6 [shape = 'u8[512]{0}', space=smem, size = 0x200, scoped, tag = 'input window, operand 1, single buffered']
    #allocation7 [shape = 's32[1]{0}', space=sflag, size = 0x4, scoped, tag = 'scoped memory for gsa_attention_forward.1']
    #allocation8 [shape = 'u8[512]{0}', space=smem, size = 0x200, scoped, tag = 'input window, operand 2, single buffered']
    #allocation9 [shape = 'u8[8192]{0}', space=vmem, size = 0x2000, scoped, tag = 'output window, operand 0, single buffered']
    %18 = vsyncpa [#allocation5], 0
    %19 = vsyncpa [#allocation7], 0
    %20 = vsyncpa [#allocation4], 0
    // Predicated region
    $region2: #{gsa_attention_forward.1} parent=1 // pred_check
      _
    $region3: #{gsa_attention_forward.1} parent=1 // pred_check_branch
      %22 = sbr.rel (0) target = $region5
    $region4: #{gsa_attention_forward.1} parent=1 // pred_region
      %s24 = ssub.s32 16, 16
      %25 = vsyncadd [#allocation5], %s24
      %s27 = sshll.u32 %s0, 4
      %s28 = int_to_ptr.vmem [resolvable:$true] %s27
      %30 = dma.vmem_to_smem %s28, 16, [#allocation3], [#allocation5]
    $region5: #{gsa_attention_forward.1} parent=1 // pred_fallthru
      _
    // Predicated region
    $region6: #{gsa_attention_forward.1} parent=1 // pred_check
      _
    $region7: #{gsa_attention_forward.1} parent=1 // pred_check_branch
      %32 = sbr.rel (0) target = $region9
    $region8: #{gsa_attention_forward.1} parent=1 // pred_region
      %s34 = ssub.s32 16, 16
      %35 = vsyncadd [#allocation7], %s34
      %s37 = sshll.u32 %s1, 4
      %s38 = int_to_ptr.vmem [resolvable:$true] %s37
      %40 = dma.vmem_to_smem %s38, 16, [#allocation6], [#allocation7]
    $region9: #{gsa_attention_forward.1} parent=1 // pred_fallthru
      _
    // Predicated region
    $region10: #{gsa_attention_forward.1} parent=1 // pred_check
      _
    $region11: #{gsa_attention_forward.1} parent=1 // pred_check_branch
      %42 = sbr.rel (0) target = $region13
    $region12: #{gsa_attention_forward.1} parent=1 // pred_region
      %s44 = ssub.s32 16, 16
      %45 = vsyncadd [#allocation7], %s44
      %s47 = sshll.u32 %s2, 4
      %s48 = int_to_ptr.vmem [resolvable:$true] %s47
      %50 = dma.vmem_to_smem %s48, 16, [#allocation8], [#allocation7]
    $region13: #{gsa_attention_forward.1} parent=1 // pred_fallthru
      _
    // Predicated region
    $region14: #{gsa_attention_forward.1} parent=1 // pred_check
      _
    $region15: #{gsa_attention_forward.1} parent=1 // pred_check_branch
      %52 = sbr.rel (0) target = $region17
    $region16: #{gsa_attention_forward.1} parent=1 // pred_region
      _
    $region17: #{gsa_attention_forward.1} parent=1 // pred_fallthru
      _
    // Predicated region
    $region18: #{gsa_attention_forward.1} parent=1 // pred_check
      _
    $region19: #{gsa_attention_forward.1} parent=1 // pred_check_branch
      %54 = sbr.rel (0) target = $region21
    $region20: #{gsa_attention_forward.1} parent=1 // pred_region
      _
    $region21: #{gsa_attention_forward.1} parent=1 // pred_fallthru
      _
    // Predicated region
    $region22: #{gsa_attention_forward.1} parent=1 // pred_check
      _
    $region23: #{gsa_attention_forward.1} parent=1 // pred_check_branch
      %56 = sbr.rel (0) target = $region25
    $region24: #{gsa_attention_forward.1} parent=1 // pred_region
      _
    $region25: #{gsa_attention_forward.1} parent=1 // pred_fallthru
      _
    // Predicated region
    $region26: #{gsa_attention_forward.1} parent=1 // pred_check
      _
    $region27: #{gsa_attention_forward.1} parent=1 // pred_check_branch
      %58 = sbr.rel (0) target = $region29
    $region28: #{gsa_attention_forward.1} parent=1 // pred_region
      _
    $region29: #{gsa_attention_forward.1} parent=1 // pred_fallthru
      _
    // Predicated region
    $region30: #{gsa_attention_forward.1} parent=1 // pred_check
      _
    $region31: #{gsa_attention_forward.1} parent=1 // pred_check_branch
      %60 = sbr.rel (0) target = $region33
    $region32: #{gsa_attention_forward.1} parent=1 // pred_region
      _
    $region33: #{gsa_attention_forward.1} parent=1 // pred_fallthru
      _
    // Predicated region
    $region34: #{gsa_attention_forward.1} parent=1 // pred_check
      _
    $region35: #{gsa_attention_forward.1} parent=1 // pred_check_branch
      %62 = sbr.rel (0) target = $region37
    $region36: #{gsa_attention_forward.1} parent=1 // pred_region
      _
    $region37: #{gsa_attention_forward.1} parent=1 // pred_fallthru
      _
    // Predicated region
    $region38: #{gsa_attention_forward.1} parent=1 // pred_check
      _
    $region39: #{gsa_attention_forward.1} parent=1 // pred_check_branch
      %64 = sbr.rel (0) target = $region41
    $region40: #{gsa_attention_forward.1} parent=1 // pred_region
      _
    $region41: #{gsa_attention_forward.1} parent=1 // pred_fallthru
      _
    // Predicated region
    $region42: #{gsa_attention_forward.1} parent=1 // pred_check
      _
    $region43: #{gsa_attention_forward.1} parent=1 // pred_check_branch
      %66 = sbr.rel (0) target = $region45
    $region44: #{gsa_attention_forward.1} parent=1 // pred_region
      _
    $region45: #{gsa_attention_forward.1} parent=1 // pred_fallthru
      _
    // Predicated region
    $region46: #{gsa_attention_forward.1} parent=1 // pred_check
      _
    $region47: #{gsa_attention_forward.1} parent=1 // pred_check_branch
      %68 = sbr.rel (0) target = $region49
    $region48: #{gsa_attention_forward.1} parent=1 // pred_region
      _
    $region49: #{gsa_attention_forward.1} parent=1 // pred_fallthru
      _
    // Predicated region
    $region50: #{gsa_attention_forward.1} parent=1 // pred_check
      _
    $region51: #{gsa_attention_forward.1} parent=1 // pred_check_branch
      %70 = sbr.rel (0) target = $region53
    $region52: #{gsa_attention_forward.1} parent=1 // pred_region
      _
    $region53: #{gsa_attention_forward.1} parent=1 // pred_fallthru
      _
    // Predicated region
    $region54: #{gsa_attention_forward.1} parent=1 // pred_check
      _
    $region55: #{gsa_attention_forward.1} parent=1 // pred_check_branch
      %72 = sbr.rel (0) target = $region57
    $region56: #{gsa_attention_forward.1} parent=1 // pred_region
      %73 = dma.done [#allocation5], 16
    $region57: #{gsa_attention_forward.1} parent=1 // pred_fallthru
      _
    // Predicated region
    $region58: #{gsa_attention_forward.1} parent=1 // pred_check
      _
    $region59: #{gsa_attention_forward.1} parent=1 // pred_check_branch
      %75 = sbr.rel (0) target = $region61
    $region60: #{gsa_attention_forward.1} parent=1 // pred_region
      %76 = dma.done [#allocation7], 16
    $region61: #{gsa_attention_forward.1} parent=1 // pred_fallthru
      _
    // Predicated region
    $region62: #{gsa_attention_forward.1} parent=1 // pred_check
      _
    $region63: #{gsa_attention_forward.1} parent=1 // pred_check_branch
      %78 = sbr.rel (0) target = $region65
    $region64: #{gsa_attention_forward.1} parent=1 // pred_region
      %79 = dma.done [#allocation7], 16
    $region65: #{gsa_attention_forward.1} parent=1 // pred_fallthru
      _
    %80 = sfence
    %v81 = vld [vmem:[%s3] sm:$0xff]
    %v82 = vld [vmem:[%s3 + $0x8] sm:$0xff]
    %v83 = vld [vmem:[%s4] sm:$0xff]
    %v84 = vld [vmem:[%s4 + $0x8] sm:$0xff]
    %v85 = vld [vmem:[%s4 + $0x10] sm:$0xff]
    %v86 = vld [vmem:[%s4 + $0x18] sm:$0xff]
    %v87 = vld [vmem:[%s5] sm:$0x1]
    %v89 = vlaneseq
    %v90 = vshrl.u32 %v89, 7
    %v91 = vsub.s32 0, %v90
    %v92 = vrot.slane %v87, %v91
    %vm94 = vcmask 261120
    %v96 = vsel %vm94, %v81, 0
    %v99 = vsel %vm94, %v82, 0
    %101 = vmatprep.subr.mxu0 0.0
    %102 = vmatpush1.msra.mxu0 0.0
    %103 = vmatprep.subr.mxu0 0.0
    %104 = vmatpush1.msra.mxu0 0.0
    %105 = vmatprep.subr.mxu0 0.0
    %106 = vmatpush1.msra.mxu0 0.0
    %107 = vmatprep.subr.mxu0 0.0
    %108 = vmatpush1.msra.mxu0 0.0
    %109 = vmatprep.subr.mxu0 0.0
    %110 = vmatpush1.msra.mxu0 0.0
    %111 = vmatprep.subr.mxu0 0.0
    %112 = vmatpush1.msra.mxu0 0.0
    %113 = vmatprep.subr.mxu0 0.0
    %114 = vmatpush1.msra.mxu0 0.0
    %115 = vmatprep.subr.mxu0 0.0
    %116 = vmatpush1.msra.mxu0 0.0
    %117 = vmatprep.subr.mxu0 0.0
    %118 = vmatpush1.msra.mxu0 0.0
    %119 = vmatprep.subr.mxu0 0.0
    %120 = vmatpush1.msra.mxu0 0.0
    %121 = vmatprep.subr.mxu0 0.0
    %122 = vmatpush1.msra.mxu0 0.0
    %123 = vmatprep.subr.mxu0 0.0
    %124 = vmatpush1.msra.mxu0 0.0
    %125 = vmatprep.subr.mxu0 0.0
    %126 = vmatpush1.msra.mxu0 %v86
    %127 = vmatprep.subr.mxu0 0.0
    %128 = vmatpush1.msra.mxu0 %v85
    %129 = vmatprep.subr.mxu0 0.0
    %130 = vmatpush1.msra.mxu0 %v84
    %131 = vmatprep.subr.mxu0 0.0
    %132 = vmatpush1.msra.mxu0 %v83
    %133 = vmatprep.subr.mxu0 0.0
    %134 = vmatpush2.msra.mxu0 0.0
    %135 = vmatprep.subr.mxu0 0.0
    %136 = vmatpush2.msra.mxu0 0.0
    %137 = vmatprep.subr.mxu0 0.0
    %138 = vmatpush2.msra.mxu0 0.0
    %139 = vmatprep.subr.mxu0 0.0
    %140 = vmatpush2.msra.mxu0 0.0
    %141 = vmatprep.subr.mxu0 0.0
    %142 = vmatpush2.msra.mxu0 0.0
    %143 = vmatprep.subr.mxu0 0.0
    %144 = vmatpush2.msra.mxu0 0.0
    %145 = vmatprep.subr.mxu0 0.0
    %146 = vmatpush2.msra.mxu0 0.0
    %147 = vmatprep.subr.mxu0 0.0
    %148 = vmatpush2.msra.mxu0 0.0
    %149 = vmatprep.subr.mxu0 0.0
    %150 = vmatpush2.msra.mxu0 0.0
    %151 = vmatprep.subr.mxu0 0.0
    %152 = vmatpush2.msra.mxu0 0.0
    %153 = vmatprep.subr.mxu0 0.0
    %154 = vmatpush2.msra.mxu0 0.0
    %155 = vmatprep.subr.mxu0 0.0
    %156 = vmatpush2.msra.mxu0 0.0
    %157 = vmatprep.subr.mxu0 0.0
    %158 = vmatpush2.msra.mxu0 0.0
    %159 = vmatprep.subr.mxu0 0.0
    %160 = vmatpush2.msra.mxu0 0.0
    %161 = vmatprep.subr.mxu0 0.0
    %162 = vmatpush2.msra.mxu0 0.0
    %163 = vmatprep.subr.mxu0 0.0
    %164 = vmatpush2.msra.mxu0 0.0
    %165 = vmatprep.mubr.f32.mxu0 0.0
    %166 = vmatmul.mubr.f32.gmra.mxu0 %v96
    %v167 = vpop.f32.mrf.mxu0
    %v168 = vadd.f32 %v92, %v167
    %v169 = vpop.f32.mrf.mxu0
    %170 = vmatprep.mubr.f32.mxu0 0.0
    %171 = vmatmul.mubr.f32.gmra.mxu0 %v99
    %v172 = vpop.f32.mrf.mxu0
    %v173 = vadd.f32 %v92, %v172
    %v174 = vpop.f32.mrf.mxu0
    %175 = vdwg.mxu0
    %v176 = vld [vmem:[%s7] sm:$0xff]
    %v177 = vld [vmem:[%s7 + $0x8] sm:$0xff]
    %v178 = vld [vmem:[%s7 + $0x10] sm:$0xff]
    %v179 = vld [vmem:[%s7 + $0x18] sm:$0xff]
    %v180 = vld [vmem:[%s8] sm:$0x1]
    %v181 = vld [vmem:[%s9] sm:$0x1]
    %v183 = vsel %vm94, %v168, 0
    %v186 = vsel %vm94, %v173, 0
    %188 = vmatprep.subr.mxu0 0.0
    %189 = vmatpush1.msra.mxu0 0.0
    %190 = vmatprep.subr.mxu0 0.0
    %191 = vmatpush1.msra.mxu0 0.0
    %192 = vmatprep.subr.mxu0 0.0
    %193 = vmatpush1.msra.mxu0 0.0
    %194 = vmatprep.subr.mxu0 0.0
    %195 = vmatpush1.msra.mxu0 0.0
    %196 = vmatprep.subr.mxu0 0.0
    %197 = vmatpush1.msra.mxu0 0.0
    %198 = vmatprep.subr.mxu0 0.0
    %199 = vmatpush1.msra.mxu0 0.0
    %200 = vmatprep.subr.mxu0 0.0
    %201 = vmatpush1.msra.mxu0 0.0
    %202 = vmatprep.subr.mxu0 0.0
    %203 = vmatpush1.msra.mxu0 0.0
    %204 = vmatprep.subr.mxu0 0.0
    %205 = vmatpush1.msra.mxu0 0.0
    %206 = vmatprep.subr.mxu0 0.0
    %207 = vmatpush1.msra.mxu0 0.0
    %208 = vmatprep.subr.mxu0 0.0
    %209 = vmatpush1.msra.mxu0 0.0
    %210 = vmatprep.subr.mxu0 0.0
    %211 = vmatpush1.msra.mxu0 0.0
    %212 = vmatprep.subr.mxu0 0.0
    %213 = vmatpush1.msra.mxu0 %v179
    %214 = vmatprep.subr.mxu0 0.0
    %215 = vmatpush1.msra.mxu0 %v178
    %216 = vmatprep.subr.mxu0 0.0
    %217 = vmatpush1.msra.mxu0 %v177
    %218 = vmatprep.subr.mxu0 0.0
    %219 = vmatpush1.msra.mxu0 %v176
    %220 = vmatprep.subr.mxu0 0.0
    %221 = vmatpush2.msra.mxu0 0.0
    %222 = vmatprep.subr.mxu0 0.0
    %223 = vmatpush2.msra.mxu0 0.0
    %224 = vmatprep.subr.mxu0 0.0
    %225 = vmatpush2.msra.mxu0 0.0
    %226 = vmatprep.subr.mxu0 0.0
    %227 = vmatpush2.msra.mxu0 0.0
    %228 = vmatprep.subr.mxu0 0.0
    %229 = vmatpush2.msra.mxu0 0.0
    %230 = vmatprep.subr.mxu0 0.0
    %231 = vmatpush2.msra.mxu0 0.0
    %232 = vmatprep.subr.mxu0 0.0
    %233 = vmatpush2.msra.mxu0 0.0
    %234 = vmatprep.subr.mxu0 0.0
    %235 = vmatpush2.msra.mxu0 0.0
    %236 = vmatprep.subr.mxu0 0.0
    %237 = vmatpush2.msra.mxu0 0.0
    %238 = vmatprep.subr.mxu0 0.0
    %239 = vmatpush2.msra.mxu0 0.0
    %240 = vmatprep.subr.mxu0 0.0
    %241 = vmatpush2.msra.mxu0 0.0
    %242 = vmatprep.subr.mxu0 0.0
    %243 = vmatpush2.msra.mxu0 0.0
    %244 = vmatprep.subr.mxu0 0.0
    %245 = vmatpush2.msra.mxu0 0.0
    %246 = vmatprep.subr.mxu0 0.0
    %247 = vmatpush2.msra.mxu0 0.0
    %248 = vmatprep.subr.mxu0 0.0
    %249 = vmatpush2.msra.mxu0 0.0
    %250 = vmatprep.subr.mxu0 0.0
    %251 = vmatpush2.msra.mxu0 0.0
    %252 = vmatprep.mubr.f32.mxu0 0.0
    %253 = vmatmul.mubr.f32.gmra.mxu0 %v183
    %v254 = vpop.f32.mrf.mxu0
    %v255 = vadd.f32 0.0, %v254
    %v256 = vpop.f32.mrf.mxu0
    %257 = vmatprep.mubr.f32.mxu0 0.0
    %258 = vmatmul.mubr.f32.gmra.mxu0 %v186
    %v259 = vpop.f32.mrf.mxu0
    %v260 = vadd.f32 0.0, %v259
    %v261 = vpop.f32.mrf.mxu0
    %262 = vdwg.mxu0
    %v263 = vsub.f32 %v168, %v255
    %v264 = vsub.f32 %v173, %v260
    %v265 = vmul.f32 %v263, %v263
    %v266 = vmul.f32 %v264, %v264
    %v268 = vsel %vm94, %v265, 0
    %v271 = vsel %vm94, %v266, 0
    %273 = vmatprep.subr.mxu0 0.0
    %274 = vmatpush1.msra.mxu0 0.0
    %275 = vmatprep.subr.mxu0 0.0
    %276 = vmatpush1.msra.mxu0 0.0
    %277 = vmatprep.subr.mxu0 0.0
    %278 = vmatpush1.msra.mxu0 0.0
    %279 = vmatprep.subr.mxu0 0.0
    %280 = vmatpush1.msra.mxu0 0.0
    %281 = vmatprep.subr.mxu0 0.0
    %282 = vmatpush1.msra.mxu0 0.0
    %283 = vmatprep.subr.mxu0 0.0
    %284 = vmatpush1.msra.mxu0 0.0
    %285 = vmatprep.subr.mxu0 0.0
    %286 = vmatpush1.msra.mxu0 0.0
    %287 = vmatprep.subr.mxu0 0.0
    %288 = vmatpush1.msra.mxu0 0.0
    %289 = vmatprep.subr.mxu0 0.0
    %290 = vmatpush1.msra.mxu0 0.0
    %291 = vmatprep.subr.mxu0 0.0
    %292 = vmatpush1.msra.mxu0 0.0
    %293 = vmatprep.subr.mxu0 0.0
    %294 = vmatpush1.msra.mxu0 0.0
    %295 = vmatprep.subr.mxu0 0.0
    %296 = vmatpush1.msra.mxu0 0.0
    %297 = vmatprep.subr.mxu0 0.0
    %298 = vmatpush1.msra.mxu0 %v179
    %299 = vmatprep.subr.mxu0 0.0
    %300 = vmatpush1.msra.mxu0 %v178
    %301 = vmatprep.subr.mxu0 0.0
    %302 = vmatpush1.msra.mxu0 %v177
    %303 = vmatprep.subr.mxu0 0.0
    %304 = vmatpush1.msra.mxu0 %v176
    %305 = vmatprep.subr.mxu0 0.0
    %306 = vmatpush2.msra.mxu0 0.0
    %307 = vmatprep.subr.mxu0 0.0
    %308 = vmatpush2.msra.mxu0 0.0
    %309 = vmatprep.subr.mxu0 0.0
    %310 = vmatpush2.msra.mxu0 0.0
    %311 = vmatprep.subr.mxu0 0.0
    %312 = vmatpush2.msra.mxu0 0.0
    %313 = vmatprep.subr.mxu0 0.0
    %314 = vmatpush2.msra.mxu0 0.0
    %315 = vmatprep.subr.mxu0 0.0
    %316 = vmatpush2.msra.mxu0 0.0
    %317 = vmatprep.subr.mxu0 0.0
    %318 = vmatpush2.msra.mxu0 0.0
    %319 = vmatprep.subr.mxu0 0.0
    %320 = vmatpush2.msra.mxu0 0.0
    %321 = vmatprep.subr.mxu0 0.0
    %322 = vmatpush2.msra.mxu0 0.0
    %323 = vmatprep.subr.mxu0 0.0
    %324 = vmatpush2.msra.mxu0 0.0
    %325 = vmatprep.subr.mxu0 0.0
    %326 = vmatpush2.msra.mxu0 0.0
    %327 = vmatprep.subr.mxu0 0.0
    %328 = vmatpush2.msra.mxu0 0.0
    %329 = vmatprep.subr.mxu0 0.0
    %330 = vmatpush2.msra.mxu0 0.0
    %331 = vmatprep.subr.mxu0 0.0
    %332 = vmatpush2.msra.mxu0 0.0
    %333 = vmatprep.subr.mxu0 0.0
    %334 = vmatpush2.msra.mxu0 0.0
    %335 = vmatprep.subr.mxu0 0.0
    %336 = vmatpush2.msra.mxu0 0.0
    %337 = vmatprep.mubr.f32.mxu0 0.0
    %338 = vmatmul.mubr.f32.gmra.mxu0 %v268
    %v339 = vpop.f32.mrf.mxu0
    %v340 = vadd.f32 1e-05, %v339
    %v341 = vpop.f32.mrf.mxu0
    %342 = vmatprep.mubr.f32.mxu0 0.0
    %343 = vmatmul.mubr.f32.gmra.mxu0 %v271
    %v344 = vpop.f32.mrf.mxu0
    %v345 = vadd.f32 1e-05, %v344
    %v346 = vpop.f32.mrf.mxu0
    %347 = vdwg.mxu0
    %v348 = vrsqrt.pop %v340
    %v349 = vrsqrt.pop %v345
    %v350 = vmul.f32 %v263, %v348
    %v351 = vmul.f32 %v264, %v349
    %v353 = vlaneseq
    %v354 = vshrl.u32 %v353, 7
    %v355 = vsub.s32 0, %v354
    %v356 = vrot.slane %v180, %v355
    %v358 = vmul.f32 %v350, %v356
    %v359 = vmul.f32 %v351, %v356
    %v361 = vlaneseq
    %v362 = vshrl.u32 %v361, 7
    %v363 = vsub.s32 0, %v362
    %v364 = vrot.slane %v181, %v363
    %v366 = vadd.f32 %v358, %v364
    %v367 = vadd.f32 %v359, %v364
    %368 = vrot.lane.b32.xlu0 %v168, 96
    %v369 = vpop.permute.xlu0 %368
    %370 = vrot.lane.b32.xlu0 %v173, 96
    %v371 = vpop.permute.xlu0 %370
    %v372 = vsel %vm94, %v369, 0
    %v374 = vsel %vm94, %v371, 0
    %376 = vmatprep.subr.mxu0 0.0
    %377 = vmatpush1.msra.mxu0 0.0
    %378 = vmatprep.subr.mxu0 0.0
    %379 = vmatpush1.msra.mxu0 0.0
    %380 = vmatprep.subr.mxu0 0.0
    %381 = vmatpush1.msra.mxu0 0.0
    %382 = vmatprep.subr.mxu0 0.0
    %383 = vmatpush1.msra.mxu0 0.0
    %384 = vmatprep.subr.mxu0 0.0
    %385 = vmatpush1.msra.mxu0 0.0
    %386 = vmatprep.subr.mxu0 0.0
    %387 = vmatpush1.msra.mxu0 0.0
    %388 = vmatprep.subr.mxu0 0.0
    %389 = vmatpush1.msra.mxu0 0.0
    %390 = vmatprep.subr.mxu0 0.0
    %391 = vmatpush1.msra.mxu0 0.0
    %392 = vmatprep.subr.mxu0 0.0
    %393 = vmatpush1.msra.mxu0 0.0
    %394 = vmatprep.subr.mxu0 0.0
    %395 = vmatpush1.msra.mxu0 0.0
    %396 = vmatprep.subr.mxu0 0.0
    %397 = vmatpush1.msra.mxu0 0.0
    %398 = vmatprep.subr.mxu0 0.0
    %399 = vmatpush1.msra.mxu0 0.0
    %400 = vmatprep.subr.mxu0 0.0
    %401 = vmatpush1.msra.mxu0 %v179
    %402 = vmatprep.subr.mxu0 0.0
    %403 = vmatpush1.msra.mxu0 %v178
    %404 = vmatprep.subr.mxu0 0.0
    %405 = vmatpush1.msra.mxu0 %v177
    %406 = vmatprep.subr.mxu0 0.0
    %407 = vmatpush1.msra.mxu0 %v176
    %408 = vmatprep.subr.mxu0 0.0
    %409 = vmatpush2.msra.mxu0 0.0
    %410 = vmatprep.subr.mxu0 0.0
    %411 = vmatpush2.msra.mxu0 0.0
    %412 = vmatprep.subr.mxu0 0.0
    %413 = vmatpush2.msra.mxu0 0.0
    %414 = vmatprep.subr.mxu0 0.0
    %415 = vmatpush2.msra.mxu0 0.0
    %416 = vmatprep.subr.mxu0 0.0
    %417 = vmatpush2.msra.mxu0 0.0
    %418 = vmatprep.subr.mxu0 0.0
    %419 = vmatpush2.msra.mxu0 0.0
    %420 = vmatprep.subr.mxu0 0.0
    %421 = vmatpush2.msra.mxu0 0.0
    %422 = vmatprep.subr.mxu0 0.0
    %423 = vmatpush2.msra.mxu0 0.0
    %424 = vmatprep.subr.mxu0 0.0
    %425 = vmatpush2.msra.mxu0 0.0
    %426 = vmatprep.subr.mxu0 0.0
    %427 = vmatpush2.msra.mxu0 0.0
    %428 = vmatprep.subr.mxu0 0.0
    %429 = vmatpush2.msra.mxu0 0.0
    %430 = vmatprep.subr.mxu0 0.0
    %431 = vmatpush2.msra.mxu0 0.0
    %432 = vmatprep.subr.mxu0 0.0
    %433 = vmatpush2.msra.mxu0 0.0
    %434 = vmatprep.subr.mxu0 0.0
    %435 = vmatpush2.msra.mxu0 0.0
    %436 = vmatprep.subr.mxu0 0.0
    %437 = vmatpush2.msra.mxu0 0.0
    %438 = vmatprep.subr.mxu0 0.0
    %439 = vmatpush2.msra.mxu0 0.0
    %440 = vmatprep.mubr.f32.mxu0 0.0
    %441 = vmatmul.mubr.f32.gmra.mxu0 %v372
    %v442 = vpop.f32.mrf.mxu0
    %v443 = vadd.f32 0.0, %v442
    %v444 = vpop.f32.mrf.mxu0
    %445 = vmatprep.mubr.f32.mxu0 0.0
    %446 = vmatmul.mubr.f32.gmra.mxu0 %v374
    %v447 = vpop.f32.mrf.mxu0
    %v448 = vadd.f32 0.0, %v447
    %v449 = vpop.f32.mrf.mxu0
    %450 = vdwg.mxu0
    %453 = vrot.lane.b32.xlu0 %v443, 32
    %v454 = vpop.permute.xlu0 %453
    %455 = vrot.lane.b32.xlu0 %v448, 32
    %v456 = vpop.permute.xlu0 %455
    %v459 = vsub.f32 %v168, %v454
    %v460 = vsub.f32 %v173, %v456
    %v461 = vmul.f32 %v459, %v459
    %v462 = vmul.f32 %v460, %v460
    %465 = vrot.lane.b32.xlu0 %v461, 96
    %v466 = vpop.permute.xlu0 %465
    %467 = vrot.lane.b32.xlu0 %v462, 96
    %v468 = vpop.permute.xlu0 %467
    %v469 = vsel %vm94, %v466, 0
    %v471 = vsel %vm94, %v468, 0
    %473 = vmatprep.subr.mxu0 0.0
    %474 = vmatpush1.msra.mxu0 0.0
    %475 = vmatprep.subr.mxu0 0.0
    %476 = vmatpush1.msra.mxu0 0.0
    %477 = vmatprep.subr.mxu0 0.0
    %478 = vmatpush1.msra.mxu0 0.0
    %479 = vmatprep.subr.mxu0 0.0
    %480 = vmatpush1.msra.mxu0 0.0
    %481 = vmatprep.subr.mxu0 0.0
    %482 = vmatpush1.msra.mxu0 0.0
    %483 = vmatprep.subr.mxu0 0.0
    %484 = vmatpush1.msra.mxu0 0.0
    %485 = vmatprep.subr.mxu0 0.0
    %486 = vmatpush1.msra.mxu0 0.0
    %487 = vmatprep.subr.mxu0 0.0
    %488 = vmatpush1.msra.mxu0 0.0
    %489 = vmatprep.subr.mxu0 0.0
    %490 = vmatpush1.msra.mxu0 0.0
    %491 = vmatprep.subr.mxu0 0.0
    %492 = vmatpush1.msra.mxu0 0.0
    %493 = vmatprep.subr.mxu0 0.0
    %494 = vmatpush1.msra.mxu0 0.0
    %495 = vmatprep.subr.mxu0 0.0
    %496 = vmatpush1.msra.mxu0 0.0
    %497 = vmatprep.subr.mxu0 0.0
    %498 = vmatpush1.msra.mxu0 %v179
    %499 = vmatprep.subr.mxu0 0.0
    %500 = vmatpush1.msra.mxu0 %v178
    %501 = vmatprep.subr.mxu0 0.0
    %502 = vmatpush1.msra.mxu0 %v177
    %503 = vmatprep.subr.mxu0 0.0
    %504 = vmatpush1.msra.mxu0 %v176
    %505 = vmatprep.subr.mxu0 0.0
    %506 = vmatpush2.msra.mxu0 0.0
    %507 = vmatprep.subr.mxu0 0.0
    %508 = vmatpush2.msra.mxu0 0.0
    %509 = vmatprep.subr.mxu0 0.0
    %510 = vmatpush2.msra.mxu0 0.0
    %511 = vmatprep.subr.mxu0 0.0
    %512 = vmatpush2.msra.mxu0 0.0
    %513 = vmatprep.subr.mxu0 0.0
    %514 = vmatpush2.msra.mxu0 0.0
    %515 = vmatprep.subr.mxu0 0.0
    %516 = vmatpush2.msra.mxu0 0.0
    %517 = vmatprep.subr.mxu0 0.0
    %518 = vmatpush2.msra.mxu0 0.0
    %519 = vmatprep.subr.mxu0 0.0
    %520 = vmatpush2.msra.mxu0 0.0
    %521 = vmatprep.subr.mxu0 0.0
    %522 = vmatpush2.msra.mxu0 0.0
    %523 = vmatprep.subr.mxu0 0.0
    %524 = vmatpush2.msra.mxu0 0.0
    %525 = vmatprep.subr.mxu0 0.0
    %526 = vmatpush2.msra.mxu0 0.0
    %527 = vmatprep.subr.mxu0 0.0
    %528 = vmatpush2.msra.mxu0 0.0
    %529 = vmatprep.subr.mxu0 0.0
    %530 = vmatpush2.msra.mxu0 0.0
    %531 = vmatprep.subr.mxu0 0.0
    %532 = vmatpush2.msra.mxu0 0.0
    %533 = vmatprep.subr.mxu0 0.0
    %534 = vmatpush2.msra.mxu0 0.0
    %535 = vmatprep.subr.mxu0 0.0
    %536 = vmatpush2.msra.mxu0 0.0
    %537 = vmatprep.mubr.f32.mxu0 0.0
    %538 = vmatmul.mubr.f32.gmra.mxu0 %v469
    %v539 = vpop.f32.mrf.mxu0
    %v540 = vadd.f32 1e-05, %v539
    %v541 = vpop.f32.mrf.mxu0
    %542 = vmatprep.mubr.f32.mxu0 0.0
    %543 = vmatmul.mubr.f32.gmra.mxu0 %v471
    %v544 = vpop.f32.mrf.mxu0
    %v545 = vadd.f32 1e-05, %v544
    %v546 = vpop.f32.mrf.mxu0
    %547 = vdwg.mxu0
    %v548 = vrsqrt.pop %v540
    %v549 = vrsqrt.pop %v545
    %552 = vrot.lane.b32.xlu0 %v548, 32
    %v553 = vpop.permute.xlu0 %552
    %554 = vrot.lane.b32.xlu0 %v549, 32
    %v555 = vpop.permute.xlu0 %554
    %v558 = vmul.f32 %v459, %v553
    %v559 = vmul.f32 %v460, %v555
    %560 = vrot.lane.b32.xlu0 %v356, 32
    %v561 = vpop.permute.xlu0 %560
    %v563 = vmul.f32 %v558, %v561
    %v564 = vmul.f32 %v559, %v561
    %565 = vrot.lane.b32.xlu0 %v364, 32
    %v566 = vpop.permute.xlu0 %565
    %v568 = vadd.f32 %v563, %v566
    %v569 = vadd.f32 %v564, %v566
    %v570 = vld [vmem:[%s10] sm:$0xff]
    %v571 = vld [vmem:[%s6] sm:$0xff]
    %v572 = vld [vmem:[%s6 + $0x8] sm:$0xff]
    %574 = vrot.lane.b32.xlu0 %v568, 96
    %v575 = vpop.permute.xlu0 %574
    %v577 = vsel %vm94, %v571, 0
    %v580 = vsel %vm94, %v572, 0
    %v582 = vsel %vm94, %v575, 0
    %584 = vmatprep.subr.mxu0 0.0
    %585 = vmatpush1.xpose.msra.mxu0 0.0
    %586 = vmatprep.subr.mxu0 0.0
    %587 = vmatpush1.xpose.msra.mxu0 0.0
    %588 = vmatprep.subr.mxu0 0.0
    %589 = vmatpush1.xpose.msra.mxu0 0.0
    %590 = vmatprep.subr.mxu0 0.0
    %591 = vmatpush1.xpose.msra.mxu0 0.0
    %592 = vmatprep.subr.mxu0 0.0
    %593 = vmatpush1.xpose.msra.mxu0 0.0
    %594 = vmatprep.subr.mxu0 0.0
    %595 = vmatpush1.xpose.msra.mxu0 0.0
    %596 = vmatprep.subr.mxu0 0.0
    %597 = vmatpush1.xpose.msra.mxu0 0.0
    %598 = vmatprep.subr.mxu0 0.0
    %599 = vmatpush1.xpose.msra.mxu0 0.0
    %600 = vmatprep.subr.mxu0 0.0
    %601 = vmatpush1.xpose.msra.mxu0 0.0
    %602 = vmatprep.subr.mxu0 0.0
    %603 = vmatpush1.xpose.msra.mxu0 0.0
    %604 = vmatprep.subr.mxu0 0.0
    %605 = vmatpush1.xpose.msra.mxu0 0.0
    %606 = vmatprep.subr.mxu0 0.0
    %607 = vmatpush1.xpose.msra.mxu0 0.0
    %608 = vmatprep.subr.mxu0 0.0
    %609 = vmatpush1.xpose.msra.mxu0 0.0
    %610 = vmatprep.subr.mxu0 0.0
    %611 = vmatpush1.xpose.msra.mxu0 0.0
    %612 = vmatprep.subr.mxu0 0.0
    %613 = vmatpush1.xpose.msra.mxu0 0.0
    %614 = vmatprep.subr.mxu0 0.0
    %615 = vmatpush1.xpose.msra.mxu0 %v582
    %616 = vmatprep.subr.mxu0 0.0
    %617 = vmatpush2.xpose.msra.mxu0 0.0
    %618 = vmatprep.subr.mxu0 0.0
    %619 = vmatpush2.xpose.msra.mxu0 0.0
    %620 = vmatprep.subr.mxu0 0.0
    %621 = vmatpush2.xpose.msra.mxu0 0.0
    %622 = vmatprep.subr.mxu0 0.0
    %623 = vmatpush2.xpose.msra.mxu0 0.0
    %624 = vmatprep.subr.mxu0 0.0
    %625 = vmatpush2.xpose.msra.mxu0 0.0
    %626 = vmatprep.subr.mxu0 0.0
    %627 = vmatpush2.xpose.msra.mxu0 0.0
    %628 = vmatprep.subr.mxu0 0.0
    %629 = vmatpush2.xpose.msra.mxu0 0.0
    %630 = vmatprep.subr.mxu0 0.0
    %631 = vmatpush2.xpose.msra.mxu0 0.0
    %632 = vmatprep.subr.mxu0 0.0
    %633 = vmatpush2.xpose.msra.mxu0 0.0
    %634 = vmatprep.subr.mxu0 0.0
    %635 = vmatpush2.xpose.msra.mxu0 0.0
    %636 = vmatprep.subr.mxu0 0.0
    %637 = vmatpush2.xpose.msra.mxu0 0.0
    %638 = vmatprep.subr.mxu0 0.0
    %639 = vmatpush2.xpose.msra.mxu0 0.0
    %640 = vmatprep.subr.mxu0 0.0
    %641 = vmatpush2.xpose.msra.mxu0 0.0
    %642 = vmatprep.subr.mxu0 0.0
    %643 = vmatpush2.xpose.msra.mxu0 0.0
    %644 = vmatprep.subr.mxu0 0.0
    %645 = vmatpush2.xpose.msra.mxu0 0.0
    %646 = vmatprep.subr.mxu0 0.0
    %647 = vmatpush2.xpose.msra.mxu0 0.0
    %648 = vmatprep.mubr.f32.mxu0 0.0
    %649 = vmatmul.mubr.f32.gmra.mxu0 %v577
    %v650 = vpop.f32.mrf.mxu0
    %v651 = vadd.f32 0.0, %v650
    %v652 = vpop.f32.mrf.mxu0
    %653 = vmatprep.mubr.f32.mxu0 0.0
    %654 = vmatmul.mubr.f32.gmra.mxu0 %v580
    %v655 = vpop.f32.mrf.mxu0
    %v656 = vadd.f32 0.0, %v655
    %v657 = vpop.f32.mrf.mxu0
    %658 = vdwg.mxu0
    %vm659 = vcmask 64512
    %v661 = vsel %vm659, %v366, 0
    %v663 = vsel %vm659, %v575, 0
    %665 = vmatprep.subr.mxu0 0.0
    %666 = vmatpush1.xpose.msra.mxu0 0.0
    %667 = vmatprep.subr.mxu0 0.0
    %668 = vmatpush1.xpose.msra.mxu0 0.0
    %669 = vmatprep.subr.mxu0 0.0
    %670 = vmatpush1.xpose.msra.mxu0 0.0
    %671 = vmatprep.subr.mxu0 0.0
    %672 = vmatpush1.xpose.msra.mxu0 0.0
    %673 = vmatprep.subr.mxu0 0.0
    %674 = vmatpush1.xpose.msra.mxu0 0.0
    %675 = vmatprep.subr.mxu0 0.0
    %676 = vmatpush1.xpose.msra.mxu0 0.0
    %677 = vmatprep.subr.mxu0 0.0
    %678 = vmatpush1.xpose.msra.mxu0 0.0
    %679 = vmatprep.subr.mxu0 0.0
    %680 = vmatpush1.xpose.msra.mxu0 0.0
    %681 = vmatprep.subr.mxu0 0.0
    %682 = vmatpush1.xpose.msra.mxu0 0.0
    %683 = vmatprep.subr.mxu0 0.0
    %684 = vmatpush1.xpose.msra.mxu0 0.0
    %685 = vmatprep.subr.mxu0 0.0
    %686 = vmatpush1.xpose.msra.mxu0 0.0
    %687 = vmatprep.subr.mxu0 0.0
    %688 = vmatpush1.xpose.msra.mxu0 0.0
    %689 = vmatprep.subr.mxu0 0.0
    %690 = vmatpush1.xpose.msra.mxu0 0.0
    %691 = vmatprep.subr.mxu0 0.0
    %692 = vmatpush1.xpose.msra.mxu0 0.0
    %693 = vmatprep.subr.mxu0 0.0
    %694 = vmatpush1.xpose.msra.mxu0 0.0
    %695 = vmatprep.subr.mxu0 0.0
    %696 = vmatpush1.xpose.msra.mxu0 %v663
    %697 = vmatprep.subr.mxu0 0.0
    %698 = vmatpush2.xpose.msra.mxu0 0.0
    %699 = vmatprep.subr.mxu0 0.0
    %700 = vmatpush2.xpose.msra.mxu0 0.0
    %701 = vmatprep.subr.mxu0 0.0
    %702 = vmatpush2.xpose.msra.mxu0 0.0
    %703 = vmatprep.subr.mxu0 0.0
    %704 = vmatpush2.xpose.msra.mxu0 0.0
    %705 = vmatprep.subr.mxu0 0.0
    %706 = vmatpush2.xpose.msra.mxu0 0.0
    %707 = vmatprep.subr.mxu0 0.0
    %708 = vmatpush2.xpose.msra.mxu0 0.0
    %709 = vmatprep.subr.mxu0 0.0
    %710 = vmatpush2.xpose.msra.mxu0 0.0
    %711 = vmatprep.subr.mxu0 0.0
    %712 = vmatpush2.xpose.msra.mxu0 0.0
    %713 = vmatprep.subr.mxu0 0.0
    %714 = vmatpush2.xpose.msra.mxu0 0.0
    %715 = vmatprep.subr.mxu0 0.0
    %716 = vmatpush2.xpose.msra.mxu0 0.0
    %717 = vmatprep.subr.mxu0 0.0
    %718 = vmatpush2.xpose.msra.mxu0 0.0
    %719 = vmatprep.subr.mxu0 0.0
    %720 = vmatpush2.xpose.msra.mxu0 0.0
    %721 = vmatprep.subr.mxu0 0.0
    %722 = vmatpush2.xpose.msra.mxu0 0.0
    %723 = vmatprep.subr.mxu0 0.0
    %724 = vmatpush2.xpose.msra.mxu0 0.0
    %725 = vmatprep.subr.mxu0 0.0
    %726 = vmatpush2.xpose.msra.mxu0 0.0
    %727 = vmatprep.subr.mxu0 0.0
    %728 = vmatpush2.xpose.msra.mxu0 0.0
    %729 = vmatprep.mubr.f32.mxu0 0.0
    %730 = vmatmul.mubr.f32.gmra.mxu0 %v661
    %v731 = vpop.f32.mrf.mxu0
    %v732 = vadd.f32 0.0, %v731
    %v733 = vpop.f32.mrf.mxu0
    %734 = vdwg.mxu0
    %s735 = sld [smem:[#allocation3]]
    %v736 = vlaneseq
    %v737 = vshrl.u32 %v736, 7
    %v738 = vsub.s32 0, %v737
    %v739 = vrot.slane %v651, %v738
    %v740 = vsub.f32 %v732, %v739
    %v741 = vstv %s735
    %v742 = vmul.f32 %v741, %v740
    %s743 = sld [smem:[#allocation6]]
    %v744 = vstv %s743
    %v745 = vmul.f32 %v744, %v570
    %v746 = vadd.f32 %v742, %v745
    %v747 = vsel %vm659, %v746, -inf
    %748 = vmax.xlane.f32.xlu0 %v747
    %v749 = vpop.xlane.xlu0 %748
    %v750 = vsub.f32 %v746, %v749
    %v751 = vmul.f32 %v750, 1.442695
    %v752 = vpow.pop %v751
    %v753 = vsel %vm659, %v752, 0.0
    %754 = vadd.xlane.f32.xlu0 %v753
    %v755 = vpop.xlane.xlu0 %754
    %v756 = vrcp.pop %v755
    %v757 = vmul.f32 %v752, %v756
    %s758 = sld [smem:[#allocation8]]
    %v759 = vstv %s758
    %v760 = vmul.f32 %v759, %v757
    %v761 = vadd.f32 %v760, 0.0
    %s762 = sld [smem:[#allocation3 + $0x1]]
    %v763 = vlaneseq
    %v764 = vshrl.u32 %v763, 7
    %v765 = vsub.s32 1, %v764
    %v766 = vrot.slane %v651, %v765
    %v767 = vsub.f32 %v732, %v766
    %v768 = vstv %s762
    %v769 = vmul.f32 %v768, %v767
    %s770 = sld [smem:[#allocation6 + $0x1]]
    %v771 = vstv %s770
    %v772 = vmul.f32 %v771, %v570
    %v773 = vadd.f32 %v769, %v772
    %v774 = vsel %vm659, %v773, -inf
    %775 = vmax.xlane.f32.xlu0 %v774
    %v776 = vpop.xlane.xlu0 %775
    %v777 = vsub.f32 %v773, %v776
    %v778 = vmul.f32 %v777, 1.442695
    %v779 = vpow.pop %v778
    %v780 = vsel %vm659, %v779, 0.0
    %781 = vadd.xlane.f32.xlu0 %v780
    %v782 = vpop.xlane.xlu0 %781
    %v783 = vrcp.pop %v782
    %v784 = vmul.f32 %v779, %v783
    %s785 = sld [smem:[#allocation8 + $0x1]]
    %v786 = vstv %s785
    %v787 = vmul.f32 %v786, %v784
    %v788 = vadd.f32 %v761, %v787
    %s789 = sld [smem:[#allocation3 + $0x2]]
    %v790 = vlaneseq
    %v791 = vshrl.u32 %v790, 7
    %v792 = vsub.s32 2, %v791
    %v793 = vrot.slane %v651, %v792
    %v794 = vsub.f32 %v732, %v793
    %v795 = vstv %s789
    %v796 = vmul.f32 %v795, %v794
    %s797 = sld [smem:[#allocation6 + $0x2]]
    %v798 = vstv %s797
    %v799 = vmul.f32 %v798, %v570
    %v800 = vadd.f32 %v796, %v799
    %v801 = vsel %vm659, %v800, -inf
    %802 = vmax.xlane.f32.xlu0 %v801
    %v803 = vpop.xlane.xlu0 %802
    %v804 = vsub.f32 %v800, %v803
    %v805 = vmul.f32 %v804, 1.442695
    %v806 = vpow.pop %v805
    %v807 = vsel %vm659, %v806, 0.0
    %808 = vadd.xlane.f32.xlu0 %v807
    %v809 = vpop.xlane.xlu0 %808
    %v810 = vrcp.pop %v809
    %v811 = vmul.f32 %v806, %v810
    %s812 = sld [smem:[#allocation8 + $0x2]]
    %v813 = vstv %s812
    %v814 = vmul.f32 %v813, %v811
    %v815 = vadd.f32 %v788, %v814
    %s816 = sld [smem:[#allocation3 + $0x3]]
    %v817 = vlaneseq
    %v818 = vshrl.u32 %v817, 7
    %v819 = vsub.s32 3, %v818
    %v820 = vrot.slane %v651, %v819
    %v821 = vsub.f32 %v732, %v820
    %v822 = vstv %s816
    %v823 = vmul.f32 %v822, %v821
    %s824 = sld [smem:[#allocation6 + $0x3]]
    %v825 = vstv %s824
    %v826 = vmul.f32 %v825, %v570
    %v827 = vadd.f32 %v823, %v826
    %v828 = vsel %vm659, %v827, -inf
    %829 = vmax.xlane.f32.xlu0 %v828
    %v830 = vpop.xlane.xlu0 %829
    %v831 = vsub.f32 %v827, %v830
    %v832 = vmul.f32 %v831, 1.442695
    %v833 = vpow.pop %v832
    %v834 = vsel %vm659, %v833, 0.0
    %835 = vadd.xlane.f32.xlu0 %v834
    %v836 = vpop.xlane.xlu0 %835
    %v837 = vrcp.pop %v836
    %v838 = vmul.f32 %v833, %v837
    %s839 = sld [smem:[#allocation8 + $0x3]]
    %v840 = vstv %s839
    %v841 = vmul.f32 %v840, %v838
    %v842 = vadd.f32 %v815, %v841
    %843 = vrot.lane.b32.xlu0 %v168, 64
    %v844 = vpop.permute.xlu0 %843
    %v847 = vsel %vm659, %v842, 0
    %849 = vmatprep.subr.mxu0 0.0
    %850 = vmatpush1.msra.mxu0 0.0
    %851 = vmatprep.subr.mxu0 0.0
    %852 = vmatpush1.msra.mxu0 0.0
    %853 = vmatprep.subr.mxu0 0.0
    %854 = vmatpush1.msra.mxu0 0.0
    %855 = vmatprep.subr.mxu0 0.0
    %856 = vmatpush1.msra.mxu0 0.0
    %857 = vmatprep.subr.mxu0 0.0
    %858 = vmatpush1.msra.mxu0 0.0
    %859 = vmatprep.subr.mxu0 0.0
    %860 = vmatpush1.msra.mxu0 0.0
    %861 = vmatprep.subr.mxu0 0.0
    %862 = vmatpush1.msra.mxu0 0.0
    %863 = vmatprep.subr.mxu0 0.0
    %864 = vmatpush1.msra.mxu0 0.0
    %865 = vmatprep.subr.mxu0 0.0
    %866 = vmatpush1.msra.mxu0 0.0
    %867 = vmatprep.subr.mxu0 0.0
    %868 = vmatpush1.msra.mxu0 0.0
    %869 = vmatprep.subr.mxu0 0.0
    %870 = vmatpush1.msra.mxu0 0.0
    %871 = vmatprep.subr.mxu0 0.0
    %872 = vmatpush1.msra.mxu0 0.0
    %873 = vmatprep.subr.mxu0 0.0
    %874 = vmatpush1.msra.mxu0 0.0
    %875 = vmatprep.subr.mxu0 0.0
    %876 = vmatpush1.msra.mxu0 0.0
    %877 = vmatprep.subr.mxu0 0.0
    %878 = vmatpush1.msra.mxu0 0.0
    %879 = vmatprep.subr.mxu0 0.0
    %880 = vmatpush1.msra.mxu0 %v844
    %881 = vmatprep.subr.mxu0 0.0
    %882 = vmatpush2.msra.mxu0 0.0
    %883 = vmatprep.subr.mxu0 0.0
    %884 = vmatpush2.msra.mxu0 0.0
    %885 = vmatprep.subr.mxu0 0.0
    %886 = vmatpush2.msra.mxu0 0.0
    %887 = vmatprep.subr.mxu0 0.0
    %888 = vmatpush2.msra.mxu0 0.0
    %889 = vmatprep.subr.mxu0 0.0
    %890 = vmatpush2.msra.mxu0 0.0
    %891 = vmatprep.subr.mxu0 0.0
    %892 = vmatpush2.msra.mxu0 0.0
    %893 = vmatprep.subr.mxu0 0.0
    %894 = vmatpush2.msra.mxu0 0.0
    %895 = vmatprep.subr.mxu0 0.0
    %896 = vmatpush2.msra.mxu0 0.0
    %897 = vmatprep.subr.mxu0 0.0
    %898 = vmatpush2.msra.mxu0 0.0
    %899 = vmatprep.subr.mxu0 0.0
    %900 = vmatpush2.msra.mxu0 0.0
    %901 = vmatprep.subr.mxu0 0.0
    %902 = vmatpush2.msra.mxu0 0.0
    %903 = vmatprep.subr.mxu0 0.0
    %904 = vmatpush2.msra.mxu0 0.0
    %905 = vmatprep.subr.mxu0 0.0
    %906 = vmatpush2.msra.mxu0 0.0
    %907 = vmatprep.subr.mxu0 0.0
    %908 = vmatpush2.msra.mxu0 0.0
    %909 = vmatprep.subr.mxu0 0.0
    %910 = vmatpush2.msra.mxu0 0.0
    %911 = vmatprep.subr.mxu0 0.0
    %912 = vmatpush2.msra.mxu0 0.0
    %913 = vmatprep.mubr.f32.mxu0 0.0
    %914 = vmatmul.mubr.f32.gmra.mxu0 %v847
    %v915 = vpop.f32.mrf.mxu0
    %v916 = vadd.f32 0.0, %v915
    %v917 = vpop.f32.mrf.mxu0
    %918 = vdwg.mxu0
    %919 = vst.msk [vmem:[#allocation2] sm:$0xff] %vm659, %v916
    %920 = vrot.lane.b32.xlu0 %v366, 120
    %v921 = vpop.permute.xlu0 %920
    %922 = vrot.lane.b32.xlu0 %v568, 88
    %v923 = vpop.permute.xlu0 %922
    %v924 = vsel %vm659, %v921, 0
    %v926 = vsel %vm659, %v923, 0
    %928 = vmatprep.subr.mxu0 0.0
    %929 = vmatpush1.xpose.msra.mxu0 0.0
    %930 = vmatprep.subr.mxu0 0.0
    %931 = vmatpush1.xpose.msra.mxu0 0.0
    %932 = vmatprep.subr.mxu0 0.0
    %933 = vmatpush1.xpose.msra.mxu0 0.0
    %934 = vmatprep.subr.mxu0 0.0
    %935 = vmatpush1.xpose.msra.mxu0 0.0
    %936 = vmatprep.subr.mxu0 0.0
    %937 = vmatpush1.xpose.msra.mxu0 0.0
    %938 = vmatprep.subr.mxu0 0.0
    %939 = vmatpush1.xpose.msra.mxu0 0.0
    %940 = vmatprep.subr.mxu0 0.0
    %941 = vmatpush1.xpose.msra.mxu0 0.0
    %942 = vmatprep.subr.mxu0 0.0
    %943 = vmatpush1.xpose.msra.mxu0 0.0
    %944 = vmatprep.subr.mxu0 0.0
    %945 = vmatpush1.xpose.msra.mxu0 0.0
    %946 = vmatprep.subr.mxu0 0.0
    %947 = vmatpush1.xpose.msra.mxu0 0.0
    %948 = vmatprep.subr.mxu0 0.0
    %949 = vmatpush1.xpose.msra.mxu0 0.0
    %950 = vmatprep.subr.mxu0 0.0
    %951 = vmatpush1.xpose.msra.mxu0 0.0
    %952 = vmatprep.subr.mxu0 0.0
    %953 = vmatpush1.xpose.msra.mxu0 0.0
    %954 = vmatprep.subr.mxu0 0.0
    %955 = vmatpush1.xpose.msra.mxu0 0.0
    %956 = vmatprep.subr.mxu0 0.0
    %957 = vmatpush1.xpose.msra.mxu0 0.0
    %958 = vmatprep.subr.mxu0 0.0
    %959 = vmatpush1.xpose.msra.mxu0 %v926
    %960 = vmatprep.subr.mxu0 0.0
    %961 = vmatpush2.xpose.msra.mxu0 0.0
    %962 = vmatprep.subr.mxu0 0.0
    %963 = vmatpush2.xpose.msra.mxu0 0.0
    %964 = vmatprep.subr.mxu0 0.0
    %965 = vmatpush2.xpose.msra.mxu0 0.0
    %966 = vmatprep.subr.mxu0 0.0
    %967 = vmatpush2.xpose.msra.mxu0 0.0
    %968 = vmatprep.subr.mxu0 0.0
    %969 = vmatpush2.xpose.msra.mxu0 0.0
    %970 = vmatprep.subr.mxu0 0.0
    %971 = vmatpush2.xpose.msra.mxu0 0.0
    %972 = vmatprep.subr.mxu0 0.0
    %973 = vmatpush2.xpose.msra.mxu0 0.0
    %974 = vmatprep.subr.mxu0 0.0
    %975 = vmatpush2.xpose.msra.mxu0 0.0
    %976 = vmatprep.subr.mxu0 0.0
    %977 = vmatpush2.xpose.msra.mxu0 0.0
    %978 = vmatprep.subr.mxu0 0.0
    %979 = vmatpush2.xpose.msra.mxu0 0.0
    %980 = vmatprep.subr.mxu0 0.0
    %981 = vmatpush2.xpose.msra.mxu0 0.0
    %982 = vmatprep.subr.mxu0 0.0
    %983 = vmatpush2.xpose.msra.mxu0 0.0
    %984 = vmatprep.subr.mxu0 0.0
    %985 = vmatpush2.xpose.msra.mxu0 0.0
    %986 = vmatprep.subr.mxu0 0.0
    %987 = vmatpush2.xpose.msra.mxu0 0.0
    %988 = vmatprep.subr.mxu0 0.0
    %989 = vmatpush2.xpose.msra.mxu0 0.0
    %990 = vmatprep.subr.mxu0 0.0
    %991 = vmatpush2.xpose.msra.mxu0 0.0
    %992 = vmatprep.mubr.f32.mxu0 0.0
    %993 = vmatmul.mubr.f32.gmra.mxu0 %v924
    %v994 = vpop.f32.mrf.mxu0
    %v995 = vadd.f32 0.0, %v994
    %v996 = vpop.f32.mrf.mxu0
    %997 = vdwg.mxu0
    %s998 = sld [smem:[#allocation3 + $0x4]]
    %v999 = vlaneseq
    %v1000 = vshrl.u32 %v999, 7
    %v1001 = vsub.s32 4, %v1000
    %v1002 = vrot.slane %v651, %v1001
    %v1003 = vsub.f32 %v995, %v1002
    %v1004 = vstv %s998
    %v1005 = vmul.f32 %v1004, %v1003
    %s1006 = sld [smem:[#allocation6 + $0x4]]
    %v1007 = vstv %s1006
    %v1008 = vmul.f32 %v1007, %v570
    %v1009 = vadd.f32 %v1005, %v1008
    %v1010 = vsel %vm659, %v1009, -inf
    %1011 = vmax.xlane.f32.xlu0 %v1010
    %v1012 = vpop.xlane.xlu0 %1011
    %v1013 = vsub.f32 %v1009, %v1012
    %v1014 = vmul.f32 %v1013, 1.442695
    %v1015 = vpow.pop %v1014
    %v1016 = vsel %vm659, %v1015, 0.0
    %1017 = vadd.xlane.f32.xlu0 %v1016
    %v1018 = vpop.xlane.xlu0 %1017
    %v1019 = vrcp.pop %v1018
    %v1020 = vmul.f32 %v1015, %v1019
    %s1021 = sld [smem:[#allocation8 + $0x4]]
    %v1022 = vstv %s1021
    %v1023 = vmul.f32 %v1022, %v1020
    %v1024 = vadd.f32 %v1023, 0.0
    %s1025 = sld [smem:[#allocation3 + $0x5]]
    %v1026 = vlaneseq
    %v1027 = vshrl.u32 %v1026, 7
    %v1028 = vsub.s32 5, %v1027
    %v1029 = vrot.slane %v651, %v1028
    %v1030 = vsub.f32 %v995, %v1029
    %v1031 = vstv %s1025
    %v1032 = vmul.f32 %v1031, %v1030
    %s1033 = sld [smem:[#allocation6 + $0x5]]
    %v1034 = vstv %s1033
    %v1035 = vmul.f32 %v1034, %v570
    %v1036 = vadd.f32 %v1032, %v1035
    %v1037 = vsel %vm659, %v1036, -inf
    %1038 = vmax.xlane.f32.xlu0 %v1037
    %v1039 = vpop.xlane.xlu0 %1038
    %v1040 = vsub.f32 %v1036, %v1039
    %v1041 = vmul.f32 %v1040, 1.442695
    %v1042 = vpow.pop %v1041
    %v1043 = vsel %vm659, %v1042, 0.0
    %1044 = vadd.xlane.f32.xlu0 %v1043
    %v1045 = vpop.xlane.xlu0 %1044
    %v1046 = vrcp.pop %v1045
    %v1047 = vmul.f32 %v1042, %v1046
    %s1048 = sld [smem:[#allocation8 + $0x5]]
    %v1049 = vstv %s1048
    %v1050 = vmul.f32 %v1049, %v1047
    %v1051 = vadd.f32 %v1024, %v1050
    %s1052 = sld [smem:[#allocation3 + $0x6]]
    %v1053 = vlaneseq
    %v1054 = vshrl.u32 %v1053, 7
    %v1055 = vsub.s32 6, %v1054
    %v1056 = vrot.slane %v651, %v1055
    %v1057 = vsub.f32 %v995, %v1056
    %v1058 = vstv %s1052
    %v1059 = vmul.f32 %v1058, %v1057
    %s1060 = sld [smem:[#allocation6 + $0x6]]
    %v1061 = vstv %s1060
    %v1062 = vmul.f32 %v1061, %v570
    %v1063 = vadd.f32 %v1059, %v1062
    %v1064 = vsel %vm659, %v1063, -inf
    %1065 = vmax.xlane.f32.xlu0 %v1064
    %v1066 = vpop.xlane.xlu0 %1065
    %v1067 = vsub.f32 %v1063, %v1066
    %v1068 = vmul.f32 %v1067, 1.442695
    %v1069 = vpow.pop %v1068
    %v1070 = vsel %vm659, %v1069, 0.0
    %1071 = vadd.xlane.f32.xlu0 %v1070
    %v1072 = vpop.xlane.xlu0 %1071
    %v1073 = vrcp.pop %v1072
    %v1074 = vmul.f32 %v1069, %v1073
    %s1075 = sld [smem:[#allocation8 + $0x6]]
    %v1076 = vstv %s1075
    %v1077 = vmul.f32 %v1076, %v1074
    %v1078 = vadd.f32 %v1051, %v1077
    %s1079 = sld [smem:[#allocation3 + $0x7]]
    %v1080 = vlaneseq
    %v1081 = vshrl.u32 %v1080, 7
    %v1082 = vsub.s32 7, %v1081
    %v1083 = vrot.slane %v651, %v1082
    %v1084 = vsub.f32 %v995, %v1083
    %v1085 = vstv %s1079
    %v1086 = vmul.f32 %v1085, %v1084
    %s1087 = sld [smem:[#allocation6 + $0x7]]
    %v1088 = vstv %s1087
    %v1089 = vmul.f32 %v1088, %v570
    %v1090 = vadd.f32 %v1086, %v1089
    %v1091 = vsel %vm659, %v1090, -inf
    %1092 = vmax.xlane.f32.xlu0 %v1091
    %v1093 = vpop.xlane.xlu0 %1092
    %v1094 = vsub.f32 %v1090, %v1093
    %v1095 = vmul.f32 %v1094, 1.442695
    %v1096 = vpow.pop %v1095
    %v1097 = vsel %vm659, %v1096, 0.0
    %1098 = vadd.xlane.f32.xlu0 %v1097
    %v1099 = vpop.xlane.xlu0 %1098
    %v1100 = vrcp.pop %v1099
    %v1101 = vmul.f32 %v1096, %v1100
    %s1102 = sld [smem:[#allocation8 + $0x7]]
    %v1103 = vstv %s1102
    %v1104 = vmul.f32 %v1103, %v1101
    %v1105 = vadd.f32 %v1078, %v1104
    %1106 = vrot.lane.b32.xlu0 %v168, 56
    %v1107 = vpop.permute.xlu0 %1106
    %v1110 = vsel %vm659, %v1105, 0
    %1112 = vmatprep.subr.mxu0 0.0
    %1113 = vmatpush1.msra.mxu0 0.0
    %1114 = vmatprep.subr.mxu0 0.0
    %1115 = vmatpush1.msra.mxu0 0.0
    %1116 = vmatprep.subr.mxu0 0.0
    %1117 = vmatpush1.msra.mxu0 0.0
    %1118 = vmatprep.subr.mxu0 0.0
    %1119 = vmatpush1.msra.mxu0 0.0
    %1120 = vmatprep.subr.mxu0 0.0
    %1121 = vmatpush1.msra.mxu0 0.0
    %1122 = vmatprep.subr.mxu0 0.0
    %1123 = vmatpush1.msra.mxu0 0.0
    %1124 = vmatprep.subr.mxu0 0.0
    %1125 = vmatpush1.msra.mxu0 0.0
    %1126 = vmatprep.subr.mxu0 0.0
    %1127 = vmatpush1.msra.mxu0 0.0
    %1128 = vmatprep.subr.mxu0 0.0
    %1129 = vmatpush1.msra.mxu0 0.0
    %1130 = vmatprep.subr.mxu0 0.0
    %1131 = vmatpush1.msra.mxu0 0.0
    %1132 = vmatprep.subr.mxu0 0.0
    %1133 = vmatpush1.msra.mxu0 0.0
    %1134 = vmatprep.subr.mxu0 0.0
    %1135 = vmatpush1.msra.mxu0 0.0
    %1136 = vmatprep.subr.mxu0 0.0
    %1137 = vmatpush1.msra.mxu0 0.0
    %1138 = vmatprep.subr.mxu0 0.0
    %1139 = vmatpush1.msra.mxu0 0.0
    %1140 = vmatprep.subr.mxu0 0.0
    %1141 = vmatpush1.msra.mxu0 0.0
    %1142 = vmatprep.subr.mxu0 0.0
    %1143 = vmatpush1.msra.mxu0 %v1107
    %1144 = vmatprep.subr.mxu0 0.0
    %1145 = vmatpush2.msra.mxu0 0.0
    %1146 = vmatprep.subr.mxu0 0.0
    %1147 = vmatpush2.msra.mxu0 0.0
    %1148 = vmatprep.subr.mxu0 0.0
    %1149 = vmatpush2.msra.mxu0 0.0
    %1150 = vmatprep.subr.mxu0 0.0
    %1151 = vmatpush2.msra.mxu0 0.0
    %1152 = vmatprep.subr.mxu0 0.0
    %1153 = vmatpush2.msra.mxu0 0.0
    %1154 = vmatprep.subr.mxu0 0.0
    %1155 = vmatpush2.msra.mxu0 0.0
    %1156 = vmatprep.subr.mxu0 0.0
    %1157 = vmatpush2.msra.mxu0 0.0
    %1158 = vmatprep.subr.mxu0 0.0
    %1159 = vmatpush2.msra.mxu0 0.0
    %1160 = vmatprep.subr.mxu0 0.0
    %1161 = vmatpush2.msra.mxu0 0.0
    %1162 = vmatprep.subr.mxu0 0.0
    %1163 = vmatpush2.msra.mxu0 0.0
    %1164 = vmatprep.subr.mxu0 0.0
    %1165 = vmatpush2.msra.mxu0 0.0
    %1166 = vmatprep.subr.mxu0 0.0
    %1167 = vmatpush2.msra.mxu0 0.0
    %1168 = vmatprep.subr.mxu0 0.0
    %1169 = vmatpush2.msra.mxu0 0.0
    %1170 = vmatprep.subr.mxu0 0.0
    %1171 = vmatpush2.msra.mxu0 0.0
    %1172 = vmatprep.subr.mxu0 0.0
    %1173 = vmatpush2.msra.mxu0 0.0
    %1174 = vmatprep.subr.mxu0 0.0
    %1175 = vmatpush2.msra.mxu0 0.0
    %1176 = vmatprep.mubr.f32.mxu0 0.0
    %1177 = vmatmul.mubr.f32.gmra.mxu0 %v1110
    %v1178 = vpop.f32.mrf.mxu0
    %v1179 = vadd.f32 0.0, %v1178
    %v1180 = vpop.f32.mrf.mxu0
    %1181 = vdwg.mxu0
    %1183 = vrot.lane.b32.xlu0 %v1179, 8
    %v1184 = vpop.permute.xlu0 %1183
    %vm1186 = vcmask 130112
    %1187 = vst.msk [vmem:[#allocation2] sm:$0xff] %vm1186, %v1184
    %1188 = vrot.lane.b32.xlu0 %v366, 112
    %v1189 = vpop.permute.xlu0 %1188
    %1190 = vrot.lane.b32.xlu0 %v568, 80
    %v1191 = vpop.permute.xlu0 %1190
    %v1192 = vsel %vm659, %v1189, 0
    %v1194 = vsel %vm659, %v1191, 0
    %1196 = vmatprep.subr.mxu0 0.0
    %1197 = vmatpush1.xpose.msra.mxu0 0.0
    %1198 = vmatprep.subr.mxu0 0.0
    %1199 = vmatpush1.xpose.msra.mxu0 0.0
    %1200 = vmatprep.subr.mxu0 0.0
    %1201 = vmatpush1.xpose.msra.mxu0 0.0
    %1202 = vmatprep.subr.mxu0 0.0
    %1203 = vmatpush1.xpose.msra.mxu0 0.0
    %1204 = vmatprep.subr.mxu0 0.0
    %1205 = vmatpush1.xpose.msra.mxu0 0.0
    %1206 = vmatprep.subr.mxu0 0.0
    %1207 = vmatpush1.xpose.msra.mxu0 0.0
    %1208 = vmatprep.subr.mxu0 0.0
    %1209 = vmatpush1.xpose.msra.mxu0 0.0
    %1210 = vmatprep.subr.mxu0 0.0
    %1211 = vmatpush1.xpose.msra.mxu0 0.0
    %1212 = vmatprep.subr.mxu0 0.0
    %1213 = vmatpush1.xpose.msra.mxu0 0.0
    %1214 = vmatprep.subr.mxu0 0.0
    %1215 = vmatpush1.xpose.msra.mxu0 0.0
    %1216 = vmatprep.subr.mxu0 0.0
    %1217 = vmatpush1.xpose.msra.mxu0 0.0
    %1218 = vmatprep.subr.mxu0 0.0
    %1219 = vmatpush1.xpose.msra.mxu0 0.0
    %1220 = vmatprep.subr.mxu0 0.0
    %1221 = vmatpush1.xpose.msra.mxu0 0.0
    %1222 = vmatprep.subr.mxu0 0.0
    %1223 = vmatpush1.xpose.msra.mxu0 0.0
    %1224 = vmatprep.subr.mxu0 0.0
    %1225 = vmatpush1.xpose.msra.mxu0 0.0
    %1226 = vmatprep.subr.mxu0 0.0
    %1227 = vmatpush1.xpose.msra.mxu0 %v1194
    %1228 = vmatprep.subr.mxu0 0.0
    %1229 = vmatpush2.xpose.msra.mxu0 0.0
    %1230 = vmatprep.subr.mxu0 0.0
    %1231 = vmatpush2.xpose.msra.mxu0 0.0
    %1232 = vmatprep.subr.mxu0 0.0
    %1233 = vmatpush2.xpose.msra.mxu0 0.0
    %1234 = vmatprep.subr.mxu0 0.0
    %1235 = vmatpush2.xpose.msra.mxu0 0.0
    %1236 = vmatprep.subr.mxu0 0.0
    %1237 = vmatpush2.xpose.msra.mxu0 0.0
    %1238 = vmatprep.subr.mxu0 0.0
    %1239 = vmatpush2.xpose.msra.mxu0 0.0
    %1240 = vmatprep.subr.mxu0 0.0
    %1241 = vmatpush2.xpose.msra.mxu0 0.0
    %1242 = vmatprep.subr.mxu0 0.0
    %1243 = vmatpush2.xpose.msra.mxu0 0.0
    %1244 = vmatprep.subr.mxu0 0.0
    %1245 = vmatpush2.xpose.msra.mxu0 0.0
    %1246 = vmatprep.subr.mxu0 0.0
    %1247 = vmatpush2.xpose.msra.mxu0 0.0
    %1248 = vmatprep.subr.mxu0 0.0
    %1249 = vmatpush2.xpose.msra.mxu0 0.0
    %1250 = vmatprep.subr.mxu0 0.0
    %1251 = vmatpush2.xpose.msra.mxu0 0.0
    %1252 = vmatprep.subr.mxu0 0.0
    %1253 = vmatpush2.xpose.msra.mxu0 0.0
    %1254 = vmatprep.subr.mxu0 0.0
    %1255 = vmatpush2.xpose.msra.mxu0 0.0
    %1256 = vmatprep.subr.mxu0 0.0
    %1257 = vmatpush2.xpose.msra.mxu0 0.0
    %1258 = vmatprep.subr.mxu0 0.0
    %1259 = vmatpush2.xpose.msra.mxu0 0.0
    %1260 = vmatprep.mubr.f32.mxu0 0.0
    %1261 = vmatmul.mubr.f32.gmra.mxu0 %v1192
    %v1262 = vpop.f32.mrf.mxu0
    %v1263 = vadd.f32 0.0, %v1262
    %v1264 = vpop.f32.mrf.mxu0
    %1265 = vdwg.mxu0
    %s1266 = sld [smem:[#allocation3 + $0x8]]
    %v1267 = vlaneseq
    %v1268 = vshrl.u32 %v1267, 7
    %v1269 = vsub.s32 0, %v1268
    %v1270 = vrot.slane %v656, %v1269
    %v1271 = vsub.f32 %v1263, %v1270
    %v1272 = vstv %s1266
    %v1273 = vmul.f32 %v1272, %v1271
    %s1274 = sld [smem:[#allocation6 + $0x8]]
    %v1275 = vstv %s1274
    %v1276 = vmul.f32 %v1275, %v570
    %v1277 = vadd.f32 %v1273, %v1276
    %v1278 = vsel %vm659, %v1277, -inf
    %1279 = vmax.xlane.f32.xlu0 %v1278
    %v1280 = vpop.xlane.xlu0 %1279
    %v1281 = vsub.f32 %v1277, %v1280
    %v1282 = vmul.f32 %v1281, 1.442695
    %v1283 = vpow.pop %v1282
    %v1284 = vsel %vm659, %v1283, 0.0
    %1285 = vadd.xlane.f32.xlu0 %v1284
    %v1286 = vpop.xlane.xlu0 %1285
    %v1287 = vrcp.pop %v1286
    %v1288 = vmul.f32 %v1283, %v1287
    %s1289 = sld [smem:[#allocation8 + $0x8]]
    %v1290 = vstv %s1289
    %v1291 = vmul.f32 %v1290, %v1288
    %v1292 = vadd.f32 %v1291, 0.0
    %s1293 = sld [smem:[#allocation3 + $0x9]]
    %v1294 = vlaneseq
    %v1295 = vshrl.u32 %v1294, 7
    %v1296 = vsub.s32 1, %v1295
    %v1297 = vrot.slane %v656, %v1296
    %v1298 = vsub.f32 %v1263, %v1297
    %v1299 = vstv %s1293
    %v1300 = vmul.f32 %v1299, %v1298
    %s1301 = sld [smem:[#allocation6 + $0x9]]
    %v1302 = vstv %s1301
    %v1303 = vmul.f32 %v1302, %v570
    %v1304 = vadd.f32 %v1300, %v1303
    %v1305 = vsel %vm659, %v1304, -inf
    %1306 = vmax.xlane.f32.xlu0 %v1305
    %v1307 = vpop.xlane.xlu0 %1306
    %v1308 = vsub.f32 %v1304, %v1307
    %v1309 = vmul.f32 %v1308, 1.442695
    %v1310 = vpow.pop %v1309
    %v1311 = vsel %vm659, %v1310, 0.0
    %1312 = vadd.xlane.f32.xlu0 %v1311
    %v1313 = vpop.xlane.xlu0 %1312
    %v1314 = vrcp.pop %v1313
    %v1315 = vmul.f32 %v1310, %v1314
    %s1316 = sld [smem:[#allocation8 + $0x9]]
    %v1317 = vstv %s1316
    %v1318 = vmul.f32 %v1317, %v1315
    %v1319 = vadd.f32 %v1292, %v1318
    %s1320 = sld [smem:[#allocation3 + $0xa]]
    %v1321 = vlaneseq
    %v1322 = vshrl.u32 %v1321, 7
    %v1323 = vsub.s32 2, %v1322
    %v1324 = vrot.slane %v656, %v1323
    %v1325 = vsub.f32 %v1263, %v1324
    %v1326 = vstv %s1320
    %v1327 = vmul.f32 %v1326, %v1325
    %s1328 = sld [smem:[#allocation6 + $0xa]]
    %v1329 = vstv %s1328
    %v1330 = vmul.f32 %v1329, %v570
    %v1331 = vadd.f32 %v1327, %v1330
    %v1332 = vsel %vm659, %v1331, -inf
    %1333 = vmax.xlane.f32.xlu0 %v1332
    %v1334 = vpop.xlane.xlu0 %1333
    %v1335 = vsub.f32 %v1331, %v1334
    %v1336 = vmul.f32 %v1335, 1.442695
    %v1337 = vpow.pop %v1336
    %v1338 = vsel %vm659, %v1337, 0.0
    %1339 = vadd.xlane.f32.xlu0 %v1338
    %v1340 = vpop.xlane.xlu0 %1339
    %v1341 = vrcp.pop %v1340
    %v1342 = vmul.f32 %v1337, %v1341
    %s1343 = sld [smem:[#allocation8 + $0xa]]
    %v1344 = vstv %s1343
    %v1345 = vmul.f32 %v1344, %v1342
    %v1346 = vadd.f32 %v1319, %v1345
    %s1347 = sld [smem:[#allocation3 + $0xb]]
    %v1348 = vlaneseq
    %v1349 = vshrl.u32 %v1348, 7
    %v1350 = vsub.s32 3, %v1349
    %v1351 = vrot.slane %v656, %v1350
    %v1352 = vsub.f32 %v1263, %v1351
    %v1353 = vstv %s1347
    %v1354 = vmul.f32 %v1353, %v1352
    %s1355 = sld [smem:[#allocation6 + $0xb]]
    %v1356 = vstv %s1355
    %v1357 = vmul.f32 %v1356, %v570
    %v1358 = vadd.f32 %v1354, %v1357
    %v1359 = vsel %vm659, %v1358, -inf
    %1360 = vmax.xlane.f32.xlu0 %v1359
    %v1361 = vpop.xlane.xlu0 %1360
    %v1362 = vsub.f32 %v1358, %v1361
    %v1363 = vmul.f32 %v1362, 1.442695
    %v1364 = vpow.pop %v1363
    %v1365 = vsel %vm659, %v1364, 0.0
    %1366 = vadd.xlane.f32.xlu0 %v1365
    %v1367 = vpop.xlane.xlu0 %1366
    %v1368 = vrcp.pop %v1367
    %v1369 = vmul.f32 %v1364, %v1368
    %s1370 = sld [smem:[#allocation8 + $0xb]]
    %v1371 = vstv %s1370
    %v1372 = vmul.f32 %v1371, %v1369
    %v1373 = vadd.f32 %v1346, %v1372
    %1374 = vrot.lane.b32.xlu0 %v168, 48
    %v1375 = vpop.permute.xlu0 %1374
    %v1378 = vsel %vm659, %v1373, 0
    %1380 = vmatprep.subr.mxu0 0.0
    %1381 = vmatpush1.msra.mxu0 0.0
    %1382 = vmatprep.subr.mxu0 0.0
    %1383 = vmatpush1.msra.mxu0 0.0
    %1384 = vmatprep.subr.mxu0 0.0
    %1385 = vmatpush1.msra.mxu0 0.0
    %1386 = vmatprep.subr.mxu0 0.0
    %1387 = vmatpush1.msra.mxu0 0.0
    %1388 = vmatprep.subr.mxu0 0.0
    %1389 = vmatpush1.msra.mxu0 0.0
    %1390 = vmatprep.subr.mxu0 0.0
    %1391 = vmatpush1.msra.mxu0 0.0
    %1392 = vmatprep.subr.mxu0 0.0
    %1393 = vmatpush1.msra.mxu0 0.0
    %1394 = vmatprep.subr.mxu0 0.0
    %1395 = vmatpush1.msra.mxu0 0.0
    %1396 = vmatprep.subr.mxu0 0.0
    %1397 = vmatpush1.msra.mxu0 0.0
    %1398 = vmatprep.subr.mxu0 0.0
    %1399 = vmatpush1.msra.mxu0 0.0
    %1400 = vmatprep.subr.mxu0 0.0
    %1401 = vmatpush1.msra.mxu0 0.0
    %1402 = vmatprep.subr.mxu0 0.0
    %1403 = vmatpush1.msra.mxu0 0.0
    %1404 = vmatprep.subr.mxu0 0.0
    %1405 = vmatpush1.msra.mxu0 0.0
    %1406 = vmatprep.subr.mxu0 0.0
    %1407 = vmatpush1.msra.mxu0 0.0
    %1408 = vmatprep.subr.mxu0 0.0
    %1409 = vmatpush1.msra.mxu0 0.0
    %1410 = vmatprep.subr.mxu0 0.0
    %1411 = vmatpush1.msra.mxu0 %v1375
    %1412 = vmatprep.subr.mxu0 0.0
    %1413 = vmatpush2.msra.mxu0 0.0
    %1414 = vmatprep.subr.mxu0 0.0
    %1415 = vmatpush2.msra.mxu0 0.0
    %1416 = vmatprep.subr.mxu0 0.0
    %1417 = vmatpush2.msra.mxu0 0.0
    %1418 = vmatprep.subr.mxu0 0.0
    %1419 = vmatpush2.msra.mxu0 0.0
    %1420 = vmatprep.subr.mxu0 0.0
    %1421 = vmatpush2.msra.mxu0 0.0
    %1422 = vmatprep.subr.mxu0 0.0
    %1423 = vmatpush2.msra.mxu0 0.0
    %1424 = vmatprep.subr.mxu0 0.0
    %1425 = vmatpush2.msra.mxu0 0.0
    %1426 = vmatprep.subr.mxu0 0.0
    %1427 = vmatpush2.msra.mxu0 0.0
    %1428 = vmatprep.subr.mxu0 0.0
    %1429 = vmatpush2.msra.mxu0 0.0
    %1430 = vmatprep.subr.mxu0 0.0
    %1431 = vmatpush2.msra.mxu0 0.0
    %1432 = vmatprep.subr.mxu0 0.0
    %1433 = vmatpush2.msra.mxu0 0.0
    %1434 = vmatprep.subr.mxu0 0.0
    %1435 = vmatpush2.msra.mxu0 0.0
    %1436 = vmatprep.subr.mxu0 0.0
    %1437 = vmatpush2.msra.mxu0 0.0
    %1438 = vmatprep.subr.mxu0 0.0
    %1439 = vmatpush2.msra.mxu0 0.0
    %1440 = vmatprep.subr.mxu0 0.0
    %1441 = vmatpush2.msra.mxu0 0.0
    %1442 = vmatprep.subr.mxu0 0.0
    %1443 = vmatpush2.msra.mxu0 0.0
    %1444 = vmatprep.mubr.f32.mxu0 0.0
    %1445 = vmatmul.mubr.f32.gmra.mxu0 %v1378
    %v1446 = vpop.f32.mrf.mxu0
    %v1447 = vadd.f32 0.0, %v1446
    %v1448 = vpop.f32.mrf.mxu0
    %1449 = vdwg.mxu0
    %1451 = vrot.lane.b32.xlu0 %v1447, 16
    %v1452 = vpop.permute.xlu0 %1451
    %vm1454 = vcmask 195712
    %1455 = vst.msk [vmem:[#allocation2] sm:$0xff] %vm1454, %v1452
    %1456 = vrot.lane.b32.xlu0 %v366, 104
    %v1457 = vpop.permute.xlu0 %1456
    %1458 = vrot.lane.b32.xlu0 %v568, 72
    %v1459 = vpop.permute.xlu0 %1458
    %v1460 = vsel %vm659, %v1457, 0
    %v1462 = vsel %vm659, %v1459, 0
    %1464 = vmatprep.subr.mxu0 0.0
    %1465 = vmatpush1.xpose.msra.mxu0 0.0
    %1466 = vmatprep.subr.mxu0 0.0
    %1467 = vmatpush1.xpose.msra.mxu0 0.0
    %1468 = vmatprep.subr.mxu0 0.0
    %1469 = vmatpush1.xpose.msra.mxu0 0.0
    %1470 = vmatprep.subr.mxu0 0.0
    %1471 = vmatpush1.xpose.msra.mxu0 0.0
    %1472 = vmatprep.subr.mxu0 0.0
    %1473 = vmatpush1.xpose.msra.mxu0 0.0
    %1474 = vmatprep.subr.mxu0 0.0
    %1475 = vmatpush1.xpose.msra.mxu0 0.0
    %1476 = vmatprep.subr.mxu0 0.0
    %1477 = vmatpush1.xpose.msra.mxu0 0.0
    %1478 = vmatprep.subr.mxu0 0.0
    %1479 = vmatpush1.xpose.msra.mxu0 0.0
    %1480 = vmatprep.subr.mxu0 0.0
    %1481 = vmatpush1.xpose.msra.mxu0 0.0
    %1482 = vmatprep.subr.mxu0 0.0
    %1483 = vmatpush1.xpose.msra.mxu0 0.0
    %1484 = vmatprep.subr.mxu0 0.0
    %1485 = vmatpush1.xpose.msra.mxu0 0.0
    %1486 = vmatprep.subr.mxu0 0.0
    %1487 = vmatpush1.xpose.msra.mxu0 0.0
    %1488 = vmatprep.subr.mxu0 0.0
    %1489 = vmatpush1.xpose.msra.mxu0 0.0
    %1490 = vmatprep.subr.mxu0 0.0
    %1491 = vmatpush1.xpose.msra.mxu0 0.0
    %1492 = vmatprep.subr.mxu0 0.0
    %1493 = vmatpush1.xpose.msra.mxu0 0.0
    %1494 = vmatprep.subr.mxu0 0.0
    %1495 = vmatpush1.xpose.msra.mxu0 %v1462
    %1496 = vmatprep.subr.mxu0 0.0
    %1497 = vmatpush2.xpose.msra.mxu0 0.0
    %1498 = vmatprep.subr.mxu0 0.0
    %1499 = vmatpush2.xpose.msra.mxu0 0.0
    %1500 = vmatprep.subr.mxu0 0.0
    %1501 = vmatpush2.xpose.msra.mxu0 0.0
    %1502 = vmatprep.subr.mxu0 0.0
    %1503 = vmatpush2.xpose.msra.mxu0 0.0
    %1504 = vmatprep.subr.mxu0 0.0
    %1505 = vmatpush2.xpose.msra.mxu0 0.0
    %1506 = vmatprep.subr.mxu0 0.0
    %1507 = vmatpush2.xpose.msra.mxu0 0.0
    %1508 = vmatprep.subr.mxu0 0.0
    %1509 = vmatpush2.xpose.msra.mxu0 0.0
    %1510 = vmatprep.subr.mxu0 0.0
    %1511 = vmatpush2.xpose.msra.mxu0 0.0
    %1512 = vmatprep.subr.mxu0 0.0
    %1513 = vmatpush2.xpose.msra.mxu0 0.0
    %1514 = vmatprep.subr.mxu0 0.0
    %1515 = vmatpush2.xpose.msra.mxu0 0.0
    %1516 = vmatprep.subr.mxu0 0.0
    %1517 = vmatpush2.xpose.msra.mxu0 0.0
    %1518 = vmatprep.subr.mxu0 0.0
    %1519 = vmatpush2.xpose.msra.mxu0 0.0
    %1520 = vmatprep.subr.mxu0 0.0
    %1521 = vmatpush2.xpose.msra.mxu0 0.0
    %1522 = vmatprep.subr.mxu0 0.0
    %1523 = vmatpush2.xpose.msra.mxu0 0.0
    %1524 = vmatprep.subr.mxu0 0.0
    %1525 = vmatpush2.xpose.msra.mxu0 0.0
    %1526 = vmatprep.subr.mxu0 0.0
    %1527 = vmatpush2.xpose.msra.mxu0 0.0
    %1528 = vmatprep.mubr.f32.mxu0 0.0
    %1529 = vmatmul.mubr.f32.gmra.mxu0 %v1460
    %v1530 = vpop.f32.mrf.mxu0
    %v1531 = vadd.f32 0.0, %v1530
    %v1532 = vpop.f32.mrf.mxu0
    %1533 = vdwg.mxu0
    %s1534 = sld [smem:[#allocation3 + $0xc]]
    %v1535 = vlaneseq
    %v1536 = vshrl.u32 %v1535, 7
    %v1537 = vsub.s32 4, %v1536
    %v1538 = vrot.slane %v656, %v1537
    %v1539 = vsub.f32 %v1531, %v1538
    %v1540 = vstv %s1534
    %v1541 = vmul.f32 %v1540, %v1539
    %s1542 = sld [smem:[#allocation6 + $0xc]]
    %v1543 = vstv %s1542
    %v1544 = vmul.f32 %v1543, %v570
    %v1545 = vadd.f32 %v1541, %v1544
    %v1546 = vsel %vm659, %v1545, -inf
    %1547 = vmax.xlane.f32.xlu0 %v1546
    %v1548 = vpop.xlane.xlu0 %1547
    %v1549 = vsub.f32 %v1545, %v1548
    %v1550 = vmul.f32 %v1549, 1.442695
    %v1551 = vpow.pop %v1550
    %v1552 = vsel %vm659, %v1551, 0.0
    %1553 = vadd.xlane.f32.xlu0 %v1552
    %v1554 = vpop.xlane.xlu0 %1553
    %v1555 = vrcp.pop %v1554
    %v1556 = vmul.f32 %v1551, %v1555
    %s1557 = sld [smem:[#allocation8 + $0xc]]
    %v1558 = vstv %s1557
    %v1559 = vmul.f32 %v1558, %v1556
    %v1560 = vadd.f32 %v1559, 0.0
    %s1561 = sld [smem:[#allocation3 + $0xd]]
    %v1562 = vlaneseq
    %v1563 = vshrl.u32 %v1562, 7
    %v1564 = vsub.s32 5, %v1563
    %v1565 = vrot.slane %v656, %v1564
    %v1566 = vsub.f32 %v1531, %v1565
    %v1567 = vstv %s1561
    %v1568 = vmul.f32 %v1567, %v1566
    %s1569 = sld [smem:[#allocation6 + $0xd]]
    %v1570 = vstv %s1569
    %v1571 = vmul.f32 %v1570, %v570
    %v1572 = vadd.f32 %v1568, %v1571
    %v1573 = vsel %vm659, %v1572, -inf
    %1574 = vmax.xlane.f32.xlu0 %v1573
    %v1575 = vpop.xlane.xlu0 %1574
    %v1576 = vsub.f32 %v1572, %v1575
    %v1577 = vmul.f32 %v1576, 1.442695
    %v1578 = vpow.pop %v1577
    %v1579 = vsel %vm659, %v1578, 0.0
    %1580 = vadd.xlane.f32.xlu0 %v1579
    %v1581 = vpop.xlane.xlu0 %1580
    %v1582 = vrcp.pop %v1581
    %v1583 = vmul.f32 %v1578, %v1582
    %s1584 = sld [smem:[#allocation8 + $0xd]]
    %v1585 = vstv %s1584
    %v1586 = vmul.f32 %v1585, %v1583
    %v1587 = vadd.f32 %v1560, %v1586
    %s1588 = sld [smem:[#allocation3 + $0xe]]
    %v1589 = vlaneseq
    %v1590 = vshrl.u32 %v1589, 7
    %v1591 = vsub.s32 6, %v1590
    %v1592 = vrot.slane %v656, %v1591
    %v1593 = vsub.f32 %v1531, %v1592
    %v1594 = vstv %s1588
    %v1595 = vmul.f32 %v1594, %v1593
    %s1596 = sld [smem:[#allocation6 + $0xe]]
    %v1597 = vstv %s1596
    %v1598 = vmul.f32 %v1597, %v570
    %v1599 = vadd.f32 %v1595, %v1598
    %v1600 = vsel %vm659, %v1599, -inf
    %1601 = vmax.xlane.f32.xlu0 %v1600
    %v1602 = vpop.xlane.xlu0 %1601
    %v1603 = vsub.f32 %v1599, %v1602
    %v1604 = vmul.f32 %v1603, 1.442695
    %v1605 = vpow.pop %v1604
    %v1606 = vsel %vm659, %v1605, 0.0
    %1607 = vadd.xlane.f32.xlu0 %v1606
    %v1608 = vpop.xlane.xlu0 %1607
    %v1609 = vrcp.pop %v1608
    %v1610 = vmul.f32 %v1605, %v1609
    %s1611 = sld [smem:[#allocation8 + $0xe]]
    %v1612 = vstv %s1611
    %v1613 = vmul.f32 %v1612, %v1610
    %v1614 = vadd.f32 %v1587, %v1613
    %s1615 = sld [smem:[#allocation3 + $0xf]]
    %v1616 = vlaneseq
    %v1617 = vshrl.u32 %v1616, 7
    %v1618 = vsub.s32 7, %v1617
    %v1619 = vrot.slane %v656, %v1618
    %v1620 = vsub.f32 %v1531, %v1619
    %v1621 = vstv %s1615
    %v1622 = vmul.f32 %v1621, %v1620
    %s1623 = sld [smem:[#allocation6 + $0xf]]
    %v1624 = vstv %s1623
    %v1625 = vmul.f32 %v1624, %v570
    %v1626 = vadd.f32 %v1622, %v1625
    %v1627 = vsel %vm659, %v1626, -inf
    %1628 = vmax.xlane.f32.xlu0 %v1627
    %v1629 = vpop.xlane.xlu0 %1628
    %v1630 = vsub.f32 %v1626, %v1629
    %v1631 = vmul.f32 %v1630, 1.442695
    %v1632 = vpow.pop %v1631
    %v1633 = vsel %vm659, %v1632, 0.0
    %1634 = vadd.xlane.f32.xlu0 %v1633
    %v1635 = vpop.xlane.xlu0 %1634
    %v1636 = vrcp.pop %v1635
    %v1637 = vmul.f32 %v1632, %v1636
    %s1638 = sld [smem:[#allocation8 + $0xf]]
    %v1639 = vstv %s1638
    %v1640 = vmul.f32 %v1639, %v1637
    %v1641 = vadd.f32 %v1614, %v1640
    %1642 = vrot.lane.b32.xlu0 %v168, 40
    %v1643 = vpop.permute.xlu0 %1642
    %v1646 = vsel %vm659, %v1641, 0
    %1648 = vmatprep.subr.mxu0 0.0
    %1649 = vmatpush1.msra.mxu0 0.0
    %1650 = vmatprep.subr.mxu0 0.0
    %1651 = vmatpush1.msra.mxu0 0.0
    %1652 = vmatprep.subr.mxu0 0.0
    %1653 = vmatpush1.msra.mxu0 0.0
    %1654 = vmatprep.subr.mxu0 0.0
    %1655 = vmatpush1.msra.mxu0 0.0
    %1656 = vmatprep.subr.mxu0 0.0
    %1657 = vmatpush1.msra.mxu0 0.0
    %1658 = vmatprep.subr.mxu0 0.0
    %1659 = vmatpush1.msra.mxu0 0.0
    %1660 = vmatprep.subr.mxu0 0.0
    %1661 = vmatpush1.msra.mxu0 0.0
    %1662 = vmatprep.subr.mxu0 0.0
    %1663 = vmatpush1.msra.mxu0 0.0
    %1664 = vmatprep.subr.mxu0 0.0
    %1665 = vmatpush1.msra.mxu0 0.0
    %1666 = vmatprep.subr.mxu0 0.0
    %1667 = vmatpush1.msra.mxu0 0.0
    %1668 = vmatprep.subr.mxu0 0.0
    %1669 = vmatpush1.msra.mxu0 0.0
    %1670 = vmatprep.subr.mxu0 0.0
    %1671 = vmatpush1.msra.mxu0 0.0
    %1672 = vmatprep.subr.mxu0 0.0
    %1673 = vmatpush1.msra.mxu0 0.0
    %1674 = vmatprep.subr.mxu0 0.0
    %1675 = vmatpush1.msra.mxu0 0.0
    %1676 = vmatprep.subr.mxu0 0.0
    %1677 = vmatpush1.msra.mxu0 0.0
    %1678 = vmatprep.subr.mxu0 0.0
    %1679 = vmatpush1.msra.mxu0 %v1643
    %1680 = vmatprep.subr.mxu0 0.0
    %1681 = vmatpush2.msra.mxu0 0.0
    %1682 = vmatprep.subr.mxu0 0.0
    %1683 = vmatpush2.msra.mxu0 0.0
    %1684 = vmatprep.subr.mxu0 0.0
    %1685 = vmatpush2.msra.mxu0 0.0
    %1686 = vmatprep.subr.mxu0 0.0
    %1687 = vmatpush2.msra.mxu0 0.0
    %1688 = vmatprep.subr.mxu0 0.0
    %1689 = vmatpush2.msra.mxu0 0.0
    %1690 = vmatprep.subr.mxu0 0.0
    %1691 = vmatpush2.msra.mxu0 0.0
    %1692 = vmatprep.subr.mxu0 0.0
    %1693 = vmatpush2.msra.mxu0 0.0
    %1694 = vmatprep.subr.mxu0 0.0
    %1695 = vmatpush2.msra.mxu0 0.0
    %1696 = vmatprep.subr.mxu0 0.0
    %1697 = vmatpush2.msra.mxu0 0.0
    %1698 = vmatprep.subr.mxu0 0.0
    %1699 = vmatpush2.msra.mxu0 0.0
    %1700 = vmatprep.subr.mxu0 0.0
    %1701 = vmatpush2.msra.mxu0 0.0
    %1702 = vmatprep.subr.mxu0 0.0
    %1703 = vmatpush2.msra.mxu0 0.0
    %1704 = vmatprep.subr.mxu0 0.0
    %1705 = vmatpush2.msra.mxu0 0.0
    %1706 = vmatprep.subr.mxu0 0.0
    %1707 = vmatpush2.msra.mxu0 0.0
    %1708 = vmatprep.subr.mxu0 0.0
    %1709 = vmatpush2.msra.mxu0 0.0
    %1710 = vmatprep.subr.mxu0 0.0
    %1711 = vmatpush2.msra.mxu0 0.0
    %1712 = vmatprep.mubr.f32.mxu0 0.0
    %1713 = vmatmul.mubr.f32.gmra.mxu0 %v1646
    %v1714 = vpop.f32.mrf.mxu0
    %v1715 = vadd.f32 0.0, %v1714
    %v1716 = vpop.f32.mrf.mxu0
    %1717 = vdwg.mxu0
    %1719 = vrot.lane.b32.xlu0 %v1715, 24
    %v1720 = vpop.permute.xlu0 %1719
    %vm1722 = vcmask 261312
    %1723 = vst.msk [vmem:[#allocation2] sm:$0xff] %vm1722, %v1720
    %1725 = vrot.lane.b32.xlu0 %v569, 96
    %v1726 = vpop.permute.xlu0 %1725
    %v1727 = vsel %vm94, %v1726, 0
    %1729 = vmatprep.subr.mxu0 0.0
    %1730 = vmatpush1.xpose.msra.mxu0 0.0
    %1731 = vmatprep.subr.mxu0 0.0
    %1732 = vmatpush1.xpose.msra.mxu0 0.0
    %1733 = vmatprep.subr.mxu0 0.0
    %1734 = vmatpush1.xpose.msra.mxu0 0.0
    %1735 = vmatprep.subr.mxu0 0.0
    %1736 = vmatpush1.xpose.msra.mxu0 0.0
    %1737 = vmatprep.subr.mxu0 0.0
    %1738 = vmatpush1.xpose.msra.mxu0 0.0
    %1739 = vmatprep.subr.mxu0 0.0
    %1740 = vmatpush1.xpose.msra.mxu0 0.0
    %1741 = vmatprep.subr.mxu0 0.0
    %1742 = vmatpush1.xpose.msra.mxu0 0.0
    %1743 = vmatprep.subr.mxu0 0.0
    %1744 = vmatpush1.xpose.msra.mxu0 0.0
    %1745 = vmatprep.subr.mxu0 0.0
    %1746 = vmatpush1.xpose.msra.mxu0 0.0
    %1747 = vmatprep.subr.mxu0 0.0
    %1748 = vmatpush1.xpose.msra.mxu0 0.0
    %1749 = vmatprep.subr.mxu0 0.0
    %1750 = vmatpush1.xpose.msra.mxu0 0.0
    %1751 = vmatprep.subr.mxu0 0.0
    %1752 = vmatpush1.xpose.msra.mxu0 0.0
    %1753 = vmatprep.subr.mxu0 0.0
    %1754 = vmatpush1.xpose.msra.mxu0 0.0
    %1755 = vmatprep.subr.mxu0 0.0
    %1756 = vmatpush1.xpose.msra.mxu0 0.0
    %1757 = vmatprep.subr.mxu0 0.0
    %1758 = vmatpush1.xpose.msra.mxu0 0.0
    %1759 = vmatprep.subr.mxu0 0.0
    %1760 = vmatpush1.xpose.msra.mxu0 %v1727
    %1761 = vmatprep.subr.mxu0 0.0
    %1762 = vmatpush2.xpose.msra.mxu0 0.0
    %1763 = vmatprep.subr.mxu0 0.0
    %1764 = vmatpush2.xpose.msra.mxu0 0.0
    %1765 = vmatprep.subr.mxu0 0.0
    %1766 = vmatpush2.xpose.msra.mxu0 0.0
    %1767 = vmatprep.subr.mxu0 0.0
    %1768 = vmatpush2.xpose.msra.mxu0 0.0
    %1769 = vmatprep.subr.mxu0 0.0
    %1770 = vmatpush2.xpose.msra.mxu0 0.0
    %1771 = vmatprep.subr.mxu0 0.0
    %1772 = vmatpush2.xpose.msra.mxu0 0.0
    %1773 = vmatprep.subr.mxu0 0.0
    %1774 = vmatpush2.xpose.msra.mxu0 0.0
    %1775 = vmatprep.subr.mxu0 0.0
    %1776 = vmatpush2.xpose.msra.mxu0 0.0
    %1777 = vmatprep.subr.mxu0 0.0
    %1778 = vmatpush2.xpose.msra.mxu0 0.0
    %1779 = vmatprep.subr.mxu0 0.0
    %1780 = vmatpush2.xpose.msra.mxu0 0.0
    %1781 = vmatprep.subr.mxu0 0.0
    %1782 = vmatpush2.xpose.msra.mxu0 0.0
    %1783 = vmatprep.subr.mxu0 0.0
    %1784 = vmatpush2.xpose.msra.mxu0 0.0
    %1785 = vmatprep.subr.mxu0 0.0
    %1786 = vmatpush2.xpose.msra.mxu0 0.0
    %1787 = vmatprep.subr.mxu0 0.0
    %1788 = vmatpush2.xpose.msra.mxu0 0.0
    %1789 = vmatprep.subr.mxu0 0.0
    %1790 = vmatpush2.xpose.msra.mxu0 0.0
    %1791 = vmatprep.subr.mxu0 0.0
    %1792 = vmatpush2.xpose.msra.mxu0 0.0
    %1793 = vmatprep.mubr.f32.mxu0 0.0
    %1794 = vmatmul.mubr.f32.gmra.mxu0 %v577
    %v1795 = vpop.f32.mrf.mxu0
    %v1796 = vadd.f32 0.0, %v1795
    %v1797 = vpop.f32.mrf.mxu0
    %1798 = vmatprep.mubr.f32.mxu0 0.0
    %1799 = vmatmul.mubr.f32.gmra.mxu0 %v580
    %v1800 = vpop.f32.mrf.mxu0
    %v1801 = vadd.f32 0.0, %v1800
    %v1802 = vpop.f32.mrf.mxu0
    %1803 = vdwg.mxu0
    %v1805 = vsel %vm659, %v367, 0
    %v1807 = vsel %vm659, %v1726, 0
    %1809 = vmatprep.subr.mxu0 0.0
    %1810 = vmatpush1.xpose.msra.mxu0 0.0
    %1811 = vmatprep.subr.mxu0 0.0
    %1812 = vmatpush1.xpose.msra.mxu0 0.0
    %1813 = vmatprep.subr.mxu0 0.0
    %1814 = vmatpush1.xpose.msra.mxu0 0.0
    %1815 = vmatprep.subr.mxu0 0.0
    %1816 = vmatpush1.xpose.msra.mxu0 0.0
    %1817 = vmatprep.subr.mxu0 0.0
    %1818 = vmatpush1.xpose.msra.mxu0 0.0
    %1819 = vmatprep.subr.mxu0 0.0
    %1820 = vmatpush1.xpose.msra.mxu0 0.0
    %1821 = vmatprep.subr.mxu0 0.0
    %1822 = vmatpush1.xpose.msra.mxu0 0.0
    %1823 = vmatprep.subr.mxu0 0.0
    %1824 = vmatpush1.xpose.msra.mxu0 0.0
    %1825 = vmatprep.subr.mxu0 0.0
    %1826 = vmatpush1.xpose.msra.mxu0 0.0
    %1827 = vmatprep.subr.mxu0 0.0
    %1828 = vmatpush1.xpose.msra.mxu0 0.0
    %1829 = vmatprep.subr.mxu0 0.0
    %1830 = vmatpush1.xpose.msra.mxu0 0.0
    %1831 = vmatprep.subr.mxu0 0.0
    %1832 = vmatpush1.xpose.msra.mxu0 0.0
    %1833 = vmatprep.subr.mxu0 0.0
    %1834 = vmatpush1.xpose.msra.mxu0 0.0
    %1835 = vmatprep.subr.mxu0 0.0
    %1836 = vmatpush1.xpose.msra.mxu0 0.0
    %1837 = vmatprep.subr.mxu0 0.0
    %1838 = vmatpush1.xpose.msra.mxu0 0.0
    %1839 = vmatprep.subr.mxu0 0.0
    %1840 = vmatpush1.xpose.msra.mxu0 %v1807
    %1841 = vmatprep.subr.mxu0 0.0
    %1842 = vmatpush2.xpose.msra.mxu0 0.0
    %1843 = vmatprep.subr.mxu0 0.0
    %1844 = vmatpush2.xpose.msra.mxu0 0.0
    %1845 = vmatprep.subr.mxu0 0.0
    %1846 = vmatpush2.xpose.msra.mxu0 0.0
    %1847 = vmatprep.subr.mxu0 0.0
    %1848 = vmatpush2.xpose.msra.mxu0 0.0
    %1849 = vmatprep.subr.mxu0 0.0
    %1850 = vmatpush2.xpose.msra.mxu0 0.0
    %1851 = vmatprep.subr.mxu0 0.0
    %1852 = vmatpush2.xpose.msra.mxu0 0.0
    %1853 = vmatprep.subr.mxu0 0.0
    %1854 = vmatpush2.xpose.msra.mxu0 0.0
    %1855 = vmatprep.subr.mxu0 0.0
    %1856 = vmatpush2.xpose.msra.mxu0 0.0
    %1857 = vmatprep.subr.mxu0 0.0
    %1858 = vmatpush2.xpose.msra.mxu0 0.0
    %1859 = vmatprep.subr.mxu0 0.0
    %1860 = vmatpush2.xpose.msra.mxu0 0.0
    %1861 = vmatprep.subr.mxu0 0.0
    %1862 = vmatpush2.xpose.msra.mxu0 0.0
    %1863 = vmatprep.subr.mxu0 0.0
    %1864 = vmatpush2.xpose.msra.mxu0 0.0
    %1865 = vmatprep.subr.mxu0 0.0
    %1866 = vmatpush2.xpose.msra.mxu0 0.0
    %1867 = vmatprep.subr.mxu0 0.0
    %1868 = vmatpush2.xpose.msra.mxu0 0.0
    %1869 = vmatprep.subr.mxu0 0.0
    %1870 = vmatpush2.xpose.msra.mxu0 0.0
    %1871 = vmatprep.subr.mxu0 0.0
    %1872 = vmatpush2.xpose.msra.mxu0 0.0
    %1873 = vmatprep.mubr.f32.mxu0 0.0
    %1874 = vmatmul.mubr.f32.gmra.mxu0 %v1805
    %v1875 = vpop.f32.mrf.mxu0
    %v1876 = vadd.f32 0.0, %v1875
    %v1877 = vpop.f32.mrf.mxu0
    %1878 = vdwg.mxu0
    %s1879 = sld [smem:[#allocation3]]
    %v1880 = vlaneseq
    %v1881 = vshrl.u32 %v1880, 7
    %v1882 = vsub.s32 0, %v1881
    %v1883 = vrot.slane %v1796, %v1882
    %v1884 = vsub.f32 %v1876, %v1883
    %v1885 = vstv %s1879
    %v1886 = vmul.f32 %v1885, %v1884
    %s1887 = sld [smem:[#allocation6]]
    %v1888 = vstv %s1887
    %v1889 = vmul.f32 %v1888, %v570
    %v1890 = vadd.f32 %v1886, %v1889
    %v1891 = vsel %vm659, %v1890, -inf
    %1892 = vmax.xlane.f32.xlu0 %v1891
    %v1893 = vpop.xlane.xlu0 %1892
    %v1894 = vsub.f32 %v1890, %v1893
    %v1895 = vmul.f32 %v1894, 1.442695
    %v1896 = vpow.pop %v1895
    %v1897 = vsel %vm659, %v1896, 0.0
    %1898 = vadd.xlane.f32.xlu0 %v1897
    %v1899 = vpop.xlane.xlu0 %1898
    %v1900 = vrcp.pop %v1899
    %v1901 = vmul.f32 %v1896, %v1900
    %s1902 = sld [smem:[#allocation8]]
    %v1903 = vstv %s1902
    %v1904 = vmul.f32 %v1903, %v1901
    %v1905 = vadd.f32 %v1904, 0.0
    %s1906 = sld [smem:[#allocation3 + $0x1]]
    %v1907 = vlaneseq
    %v1908 = vshrl.u32 %v1907, 7
    %v1909 = vsub.s32 1, %v1908
    %v1910 = vrot.slane %v1796, %v1909
    %v1911 = vsub.f32 %v1876, %v1910
    %v1912 = vstv %s1906
    %v1913 = vmul.f32 %v1912, %v1911
    %s1914 = sld [smem:[#allocation6 + $0x1]]
    %v1915 = vstv %s1914
    %v1916 = vmul.f32 %v1915, %v570
    %v1917 = vadd.f32 %v1913, %v1916
    %v1918 = vsel %vm659, %v1917, -inf
    %1919 = vmax.xlane.f32.xlu0 %v1918
    %v1920 = vpop.xlane.xlu0 %1919
    %v1921 = vsub.f32 %v1917, %v1920
    %v1922 = vmul.f32 %v1921, 1.442695
    %v1923 = vpow.pop %v1922
    %v1924 = vsel %vm659, %v1923, 0.0
    %1925 = vadd.xlane.f32.xlu0 %v1924
    %v1926 = vpop.xlane.xlu0 %1925
    %v1927 = vrcp.pop %v1926
    %v1928 = vmul.f32 %v1923, %v1927
    %s1929 = sld [smem:[#allocation8 + $0x1]]
    %v1930 = vstv %s1929
    %v1931 = vmul.f32 %v1930, %v1928
    %v1932 = vadd.f32 %v1905, %v1931
    %s1933 = sld [smem:[#allocation3 + $0x2]]
    %v1934 = vlaneseq
    %v1935 = vshrl.u32 %v1934, 7
    %v1936 = vsub.s32 2, %v1935
    %v1937 = vrot.slane %v1796, %v1936
    %v1938 = vsub.f32 %v1876, %v1937
    %v1939 = vstv %s1933
    %v1940 = vmul.f32 %v1939, %v1938
    %s1941 = sld [smem:[#allocation6 + $0x2]]
    %v1942 = vstv %s1941
    %v1943 = vmul.f32 %v1942, %v570
    %v1944 = vadd.f32 %v1940, %v1943
    %v1945 = vsel %vm659, %v1944, -inf
    %1946 = vmax.xlane.f32.xlu0 %v1945
    %v1947 = vpop.xlane.xlu0 %1946
    %v1948 = vsub.f32 %v1944, %v1947
    %v1949 = vmul.f32 %v1948, 1.442695
    %v1950 = vpow.pop %v1949
    %v1951 = vsel %vm659, %v1950, 0.0
    %1952 = vadd.xlane.f32.xlu0 %v1951
    %v1953 = vpop.xlane.xlu0 %1952
    %v1954 = vrcp.pop %v1953
    %v1955 = vmul.f32 %v1950, %v1954
    %s1956 = sld [smem:[#allocation8 + $0x2]]
    %v1957 = vstv %s1956
    %v1958 = vmul.f32 %v1957, %v1955
    %v1959 = vadd.f32 %v1932, %v1958
    %s1960 = sld [smem:[#allocation3 + $0x3]]
    %v1961 = vlaneseq
    %v1962 = vshrl.u32 %v1961, 7
    %v1963 = vsub.s32 3, %v1962
    %v1964 = vrot.slane %v1796, %v1963
    %v1965 = vsub.f32 %v1876, %v1964
    %v1966 = vstv %s1960
    %v1967 = vmul.f32 %v1966, %v1965
    %s1968 = sld [smem:[#allocation6 + $0x3]]
    %v1969 = vstv %s1968
    %v1970 = vmul.f32 %v1969, %v570
    %v1971 = vadd.f32 %v1967, %v1970
    %v1972 = vsel %vm659, %v1971, -inf
    %1973 = vmax.xlane.f32.xlu0 %v1972
    %v1974 = vpop.xlane.xlu0 %1973
    %v1975 = vsub.f32 %v1971, %v1974
    %v1976 = vmul.f32 %v1975, 1.442695
    %v1977 = vpow.pop %v1976
    %v1978 = vsel %vm659, %v1977, 0.0
    %1979 = vadd.xlane.f32.xlu0 %v1978
    %v1980 = vpop.xlane.xlu0 %1979
    %v1981 = vrcp.pop %v1980
    %v1982 = vmul.f32 %v1977, %v1981
    %s1983 = sld [smem:[#allocation8 + $0x3]]
    %v1984 = vstv %s1983
    %v1985 = vmul.f32 %v1984, %v1982
    %v1986 = vadd.f32 %v1959, %v1985
    %1987 = vrot.lane.b32.xlu0 %v173, 64
    %v1988 = vpop.permute.xlu0 %1987
    %v1991 = vsel %vm659, %v1986, 0
    %1993 = vmatprep.subr.mxu0 0.0
    %1994 = vmatpush1.msra.mxu0 0.0
    %1995 = vmatprep.subr.mxu0 0.0
    %1996 = vmatpush1.msra.mxu0 0.0
    %1997 = vmatprep.subr.mxu0 0.0
    %1998 = vmatpush1.msra.mxu0 0.0
    %1999 = vmatprep.subr.mxu0 0.0
    %2000 = vmatpush1.msra.mxu0 0.0
    %2001 = vmatprep.subr.mxu0 0.0
    %2002 = vmatpush1.msra.mxu0 0.0
    %2003 = vmatprep.subr.mxu0 0.0
    %2004 = vmatpush1.msra.mxu0 0.0
    %2005 = vmatprep.subr.mxu0 0.0
    %2006 = vmatpush1.msra.mxu0 0.0
    %2007 = vmatprep.subr.mxu0 0.0
    %2008 = vmatpush1.msra.mxu0 0.0
    %2009 = vmatprep.subr.mxu0 0.0
    %2010 = vmatpush1.msra.mxu0 0.0
    %2011 = vmatprep.subr.mxu0 0.0
    %2012 = vmatpush1.msra.mxu0 0.0
    %2013 = vmatprep.subr.mxu0 0.0
    %2014 = vmatpush1.msra.mxu0 0.0
    %2015 = vmatprep.subr.mxu0 0.0
    %2016 = vmatpush1.msra.mxu0 0.0
    %2017 = vmatprep.subr.mxu0 0.0
    %2018 = vmatpush1.msra.mxu0 0.0
    %2019 = vmatprep.subr.mxu0 0.0
    %2020 = vmatpush1.msra.mxu0 0.0
    %2021 = vmatprep.subr.mxu0 0.0
    %2022 = vmatpush1.msra.mxu0 0.0
    %2023 = vmatprep.subr.mxu0 0.0
    %2024 = vmatpush1.msra.mxu0 %v1988
    %2025 = vmatprep.subr.mxu0 0.0
    %2026 = vmatpush2.msra.mxu0 0.0
    %2027 = vmatprep.subr.mxu0 0.0
    %2028 = vmatpush2.msra.mxu0 0.0
    %2029 = vmatprep.subr.mxu0 0.0
    %2030 = vmatpush2.msra.mxu0 0.0
    %2031 = vmatprep.subr.mxu0 0.0
    %2032 = vmatpush2.msra.mxu0 0.0
    %2033 = vmatprep.subr.mxu0 0.0
    %2034 = vmatpush2.msra.mxu0 0.0
    %2035 = vmatprep.subr.mxu0 0.0
    %2036 = vmatpush2.msra.mxu0 0.0
    %2037 = vmatprep.subr.mxu0 0.0
    %2038 = vmatpush2.msra.mxu0 0.0
    %2039 = vmatprep.subr.mxu0 0.0
    %2040 = vmatpush2.msra.mxu0 0.0
    %2041 = vmatprep.subr.mxu0 0.0
    %2042 = vmatpush2.msra.mxu0 0.0
    %2043 = vmatprep.subr.mxu0 0.0
    %2044 = vmatpush2.msra.mxu0 0.0
    %2045 = vmatprep.subr.mxu0 0.0
    %2046 = vmatpush2.msra.mxu0 0.0
    %2047 = vmatprep.subr.mxu0 0.0
    %2048 = vmatpush2.msra.mxu0 0.0
    %2049 = vmatprep.subr.mxu0 0.0
    %2050 = vmatpush2.msra.mxu0 0.0
    %2051 = vmatprep.subr.mxu0 0.0
    %2052 = vmatpush2.msra.mxu0 0.0
    %2053 = vmatprep.subr.mxu0 0.0
    %2054 = vmatpush2.msra.mxu0 0.0
    %2055 = vmatprep.subr.mxu0 0.0
    %2056 = vmatpush2.msra.mxu0 0.0
    %2057 = vmatprep.mubr.f32.mxu0 0.0
    %2058 = vmatmul.mubr.f32.gmra.mxu0 %v1991
    %v2059 = vpop.f32.mrf.mxu0
    %v2060 = vadd.f32 0.0, %v2059
    %v2061 = vpop.f32.mrf.mxu0
    %2062 = vdwg.mxu0
    %2063 = vst.msk [vmem:[#allocation2 + $0x8] sm:$0xff] %vm659, %v2060
    %2064 = vrot.lane.b32.xlu0 %v367, 120
    %v2065 = vpop.permute.xlu0 %2064
    %2066 = vrot.lane.b32.xlu0 %v569, 88
    %v2067 = vpop.permute.xlu0 %2066
    %v2068 = vsel %vm659, %v2065, 0
    %v2070 = vsel %vm659, %v2067, 0
    %2072 = vmatprep.subr.mxu0 0.0
    %2073 = vmatpush1.xpose.msra.mxu0 0.0
    %2074 = vmatprep.subr.mxu0 0.0
    %2075 = vmatpush1.xpose.msra.mxu0 0.0
    %2076 = vmatprep.subr.mxu0 0.0
    %2077 = vmatpush1.xpose.msra.mxu0 0.0
    %2078 = vmatprep.subr.mxu0 0.0
    %2079 = vmatpush1.xpose.msra.mxu0 0.0
    %2080 = vmatprep.subr.mxu0 0.0
    %2081 = vmatpush1.xpose.msra.mxu0 0.0
    %2082 = vmatprep.subr.mxu0 0.0
    %2083 = vmatpush1.xpose.msra.mxu0 0.0
    %2084 = vmatprep.subr.mxu0 0.0
    %2085 = vmatpush1.xpose.msra.mxu0 0.0
    %2086 = vmatprep.subr.mxu0 0.0
    %2087 = vmatpush1.xpose.msra.mxu0 0.0
    %2088 = vmatprep.subr.mxu0 0.0
    %2089 = vmatpush1.xpose.msra.mxu0 0.0
    %2090 = vmatprep.subr.mxu0 0.0
    %2091 = vmatpush1.xpose.msra.mxu0 0.0
    %2092 = vmatprep.subr.mxu0 0.0
    %2093 = vmatpush1.xpose.msra.mxu0 0.0
    %2094 = vmatprep.subr.mxu0 0.0
    %2095 = vmatpush1.xpose.msra.mxu0 0.0
    %2096 = vmatprep.subr.mxu0 0.0
    %2097 = vmatpush1.xpose.msra.mxu0 0.0
    %2098 = vmatprep.subr.mxu0 0.0
    %2099 = vmatpush1.xpose.msra.mxu0 0.0
    %2100 = vmatprep.subr.mxu0 0.0
    %2101 = vmatpush1.xpose.msra.mxu0 0.0
    %2102 = vmatprep.subr.mxu0 0.0
    %2103 = vmatpush1.xpose.msra.mxu0 %v2070
    %2104 = vmatprep.subr.mxu0 0.0
    %2105 = vmatpush2.xpose.msra.mxu0 0.0
    %2106 = vmatprep.subr.mxu0 0.0
    %2107 = vmatpush2.xpose.msra.mxu0 0.0
    %2108 = vmatprep.subr.mxu0 0.0
    %2109 = vmatpush2.xpose.msra.mxu0 0.0
    %2110 = vmatprep.subr.mxu0 0.0
    %2111 = vmatpush2.xpose.msra.mxu0 0.0
    %2112 = vmatprep.subr.mxu0 0.0
    %2113 = vmatpush2.xpose.msra.mxu0 0.0
    %2114 = vmatprep.subr.mxu0 0.0
    %2115 = vmatpush2.xpose.msra.mxu0 0.0
    %2116 = vmatprep.subr.mxu0 0.0
    %2117 = vmatpush2.xpose.msra.mxu0 0.0
    %2118 = vmatprep.subr.mxu0 0.0
    %2119 = vmatpush2.xpose.msra.mxu0 0.0
    %2120 = vmatprep.subr.mxu0 0.0
    %2121 = vmatpush2.xpose.msra.mxu0 0.0
    %2122 = vmatprep.subr.mxu0 0.0
    %2123 = vmatpush2.xpose.msra.mxu0 0.0
    %2124 = vmatprep.subr.mxu0 0.0
    %2125 = vmatpush2.xpose.msra.mxu0 0.0
    %2126 = vmatprep.subr.mxu0 0.0
    %2127 = vmatpush2.xpose.msra.mxu0 0.0
    %2128 = vmatprep.subr.mxu0 0.0
    %2129 = vmatpush2.xpose.msra.mxu0 0.0
    %2130 = vmatprep.subr.mxu0 0.0
    %2131 = vmatpush2.xpose.msra.mxu0 0.0
    %2132 = vmatprep.subr.mxu0 0.0
    %2133 = vmatpush2.xpose.msra.mxu0 0.0
    %2134 = vmatprep.subr.mxu0 0.0
    %2135 = vmatpush2.xpose.msra.mxu0 0.0
    %2136 = vmatprep.mubr.f32.mxu0 0.0
    %2137 = vmatmul.mubr.f32.gmra.mxu0 %v2068
    %v2138 = vpop.f32.mrf.mxu0
    %v2139 = vadd.f32 0.0, %v2138
    %v2140 = vpop.f32.mrf.mxu0
    %2141 = vdwg.mxu0
    %s2142 = sld [smem:[#allocation3 + $0x4]]
    %v2143 = vlaneseq
    %v2144 = vshrl.u32 %v2143, 7
    %v2145 = vsub.s32 4, %v2144
    %v2146 = vrot.slane %v1796, %v2145
    %v2147 = vsub.f32 %v2139, %v2146
    %v2148 = vstv %s2142
    %v2149 = vmul.f32 %v2148, %v2147
    %s2150 = sld [smem:[#allocation6 + $0x4]]
    %v2151 = vstv %s2150
    %v2152 = vmul.f32 %v2151, %v570
    %v2153 = vadd.f32 %v2149, %v2152
    %v2154 = vsel %vm659, %v2153, -inf
    %2155 = vmax.xlane.f32.xlu0 %v2154
    %v2156 = vpop.xlane.xlu0 %2155
    %v2157 = vsub.f32 %v2153, %v2156
    %v2158 = vmul.f32 %v2157, 1.442695
    %v2159 = vpow.pop %v2158
    %v2160 = vsel %vm659, %v2159, 0.0
    %2161 = vadd.xlane.f32.xlu0 %v2160
    %v2162 = vpop.xlane.xlu0 %2161
    %v2163 = vrcp.pop %v2162
    %v2164 = vmul.f32 %v2159, %v2163
    %s2165 = sld [smem:[#allocation8 + $0x4]]
    %v2166 = vstv %s2165
    %v2167 = vmul.f32 %v2166, %v2164
    %v2168 = vadd.f32 %v2167, 0.0
    %s2169 = sld [smem:[#allocation3 + $0x5]]
    %v2170 = vlaneseq
    %v2171 = vshrl.u32 %v2170, 7
    %v2172 = vsub.s32 5, %v2171
    %v2173 = vrot.slane %v1796, %v2172
    %v2174 = vsub.f32 %v2139, %v2173
    %v2175 = vstv %s2169
    %v2176 = vmul.f32 %v2175, %v2174
    %s2177 = sld [smem:[#allocation6 + $0x5]]
    %v2178 = vstv %s2177
    %v2179 = vmul.f32 %v2178, %v570
    %v2180 = vadd.f32 %v2176, %v2179
    %v2181 = vsel %vm659, %v2180, -inf
    %2182 = vmax.xlane.f32.xlu0 %v2181
    %v2183 = vpop.xlane.xlu0 %2182
    %v2184 = vsub.f32 %v2180, %v2183
    %v2185 = vmul.f32 %v2184, 1.442695
    %v2186 = vpow.pop %v2185
    %v2187 = vsel %vm659, %v2186, 0.0
    %2188 = vadd.xlane.f32.xlu0 %v2187
    %v2189 = vpop.xlane.xlu0 %2188
    %v2190 = vrcp.pop %v2189
    %v2191 = vmul.f32 %v2186, %v2190
    %s2192 = sld [smem:[#allocation8 + $0x5]]
    %v2193 = vstv %s2192
    %v2194 = vmul.f32 %v2193, %v2191
    %v2195 = vadd.f32 %v2168, %v2194
    %s2196 = sld [smem:[#allocation3 + $0x6]]
    %v2197 = vlaneseq
    %v2198 = vshrl.u32 %v2197, 7
    %v2199 = vsub.s32 6, %v2198
    %v2200 = vrot.slane %v1796, %v2199
    %v2201 = vsub.f32 %v2139, %v2200
    %v2202 = vstv %s2196
    %v2203 = vmul.f32 %v2202, %v2201
    %s2204 = sld [smem:[#allocation6 + $0x6]]
    %v2205 = vstv %s2204
    %v2206 = vmul.f32 %v2205, %v570
    %v2207 = vadd.f32 %v2203, %v2206
    %v2208 = vsel %vm659, %v2207, -inf
    %2209 = vmax.xlane.f32.xlu0 %v2208
    %v2210 = vpop.xlane.xlu0 %2209
    %v2211 = vsub.f32 %v2207, %v2210
    %v2212 = vmul.f32 %v2211, 1.442695
    %v2213 = vpow.pop %v2212
    %v2214 = vsel %vm659, %v2213, 0.0
    %2215 = vadd.xlane.f32.xlu0 %v2214
    %v2216 = vpop.xlane.xlu0 %2215
    %v2217 = vrcp.pop %v2216
    %v2218 = vmul.f32 %v2213, %v2217
    %s2219 = sld [smem:[#allocation8 + $0x6]]
    %v2220 = vstv %s2219
    %v2221 = vmul.f32 %v2220, %v2218
    %v2222 = vadd.f32 %v2195, %v2221
    %s2223 = sld [smem:[#allocation3 + $0x7]]
    %v2224 = vlaneseq
    %v2225 = vshrl.u32 %v2224, 7
    %v2226 = vsub.s32 7, %v2225
    %v2227 = vrot.slane %v1796, %v2226
    %v2228 = vsub.f32 %v2139, %v2227
    %v2229 = vstv %s2223
    %v2230 = vmul.f32 %v2229, %v2228
    %s2231 = sld [smem:[#allocation6 + $0x7]]
    %v2232 = vstv %s2231
    %v2233 = vmul.f32 %v2232, %v570
    %v2234 = vadd.f32 %v2230, %v2233
    %v2235 = vsel %vm659, %v2234, -inf
    %2236 = vmax.xlane.f32.xlu0 %v2235
    %v2237 = vpop.xlane.xlu0 %2236
    %v2238 = vsub.f32 %v2234, %v2237
    %v2239 = vmul.f32 %v2238, 1.442695
    %v2240 = vpow.pop %v2239
    %v2241 = vsel %vm659, %v2240, 0.0
    %2242 = vadd.xlane.f32.xlu0 %v2241
    %v2243 = vpop.xlane.xlu0 %2242
    %v2244 = vrcp.pop %v2243
    %v2245 = vmul.f32 %v2240, %v2244
    %s2246 = sld [smem:[#allocation8 + $0x7]]
    %v2247 = vstv %s2246
    %v2248 = vmul.f32 %v2247, %v2245
    %v2249 = vadd.f32 %v2222, %v2248
    %2250 = vrot.lane.b32.xlu0 %v173, 56
    %v2251 = vpop.permute.xlu0 %2250
    %v2254 = vsel %vm659, %v2249, 0
    %2256 = vmatprep.subr.mxu0 0.0
    %2257 = vmatpush1.msra.mxu0 0.0
    %2258 = vmatprep.subr.mxu0 0.0
    %2259 = vmatpush1.msra.mxu0 0.0
    %2260 = vmatprep.subr.mxu0 0.0
    %2261 = vmatpush1.msra.mxu0 0.0
    %2262 = vmatprep.subr.mxu0 0.0
    %2263 = vmatpush1.msra.mxu0 0.0
    %2264 = vmatprep.subr.mxu0 0.0
    %2265 = vmatpush1.msra.mxu0 0.0
    %2266 = vmatprep.subr.mxu0 0.0
    %2267 = vmatpush1.msra.mxu0 0.0
    %2268 = vmatprep.subr.mxu0 0.0
    %2269 = vmatpush1.msra.mxu0 0.0
    %2270 = vmatprep.subr.mxu0 0.0
    %2271 = vmatpush1.msra.mxu0 0.0
    %2272 = vmatprep.subr.mxu0 0.0
    %2273 = vmatpush1.msra.mxu0 0.0
    %2274 = vmatprep.subr.mxu0 0.0
    %2275 = vmatpush1.msra.mxu0 0.0
    %2276 = vmatprep.subr.mxu0 0.0
    %2277 = vmatpush1.msra.mxu0 0.0
    %2278 = vmatprep.subr.mxu0 0.0
    %2279 = vmatpush1.msra.mxu0 0.0
    %2280 = vmatprep.subr.mxu0 0.0
    %2281 = vmatpush1.msra.mxu0 0.0
    %2282 = vmatprep.subr.mxu0 0.0
    %2283 = vmatpush1.msra.mxu0 0.0
    %2284 = vmatprep.subr.mxu0 0.0
    %2285 = vmatpush1.msra.mxu0 0.0
    %2286 = vmatprep.subr.mxu0 0.0
    %2287 = vmatpush1.msra.mxu0 %v2251
    %2288 = vmatprep.subr.mxu0 0.0
    %2289 = vmatpush2.msra.mxu0 0.0
    %2290 = vmatprep.subr.mxu0 0.0
    %2291 = vmatpush2.msra.mxu0 0.0
    %2292 = vmatprep.subr.mxu0 0.0
    %2293 = vmatpush2.msra.mxu0 0.0
    %2294 = vmatprep.subr.mxu0 0.0
    %2295 = vmatpush2.msra.mxu0 0.0
    %2296 = vmatprep.subr.mxu0 0.0
    %2297 = vmatpush2.msra.mxu0 0.0
    %2298 = vmatprep.subr.mxu0 0.0
    %2299 = vmatpush2.msra.mxu0 0.0
    %2300 = vmatprep.subr.mxu0 0.0
    %2301 = vmatpush2.msra.mxu0 0.0
    %2302 = vmatprep.subr.mxu0 0.0
    %2303 = vmatpush2.msra.mxu0 0.0
    %2304 = vmatprep.subr.mxu0 0.0
    %2305 = vmatpush2.msra.mxu0 0.0
    %2306 = vmatprep.subr.mxu0 0.0
    %2307 = vmatpush2.msra.mxu0 0.0
    %2308 = vmatprep.subr.mxu0 0.0
    %2309 = vmatpush2.msra.mxu0 0.0
    %2310 = vmatprep.subr.mxu0 0.0
    %2311 = vmatpush2.msra.mxu0 0.0
    %2312 = vmatprep.subr.mxu0 0.0
    %2313 = vmatpush2.msra.mxu0 0.0
    %2314 = vmatprep.subr.mxu0 0.0
    %2315 = vmatpush2.msra.mxu0 0.0
    %2316 = vmatprep.subr.mxu0 0.0
    %2317 = vmatpush2.msra.mxu0 0.0
    %2318 = vmatprep.subr.mxu0 0.0
    %2319 = vmatpush2.msra.mxu0 0.0
    %2320 = vmatprep.mubr.f32.mxu0 0.0
    %2321 = vmatmul.mubr.f32.gmra.mxu0 %v2254
    %v2322 = vpop.f32.mrf.mxu0
    %v2323 = vadd.f32 0.0, %v2322
    %v2324 = vpop.f32.mrf.mxu0
    %2325 = vdwg.mxu0
    %2327 = vrot.lane.b32.xlu0 %v2323, 8
    %v2328 = vpop.permute.xlu0 %2327
    %2330 = vst.msk [vmem:[#allocation2 + $0x8] sm:$0xff] %vm1186, %v2328
    %2331 = vrot.lane.b32.xlu0 %v367, 112
    %v2332 = vpop.permute.xlu0 %2331
    %2333 = vrot.lane.b32.xlu0 %v569, 80
    %v2334 = vpop.permute.xlu0 %2333
    %v2335 = vsel %vm659, %v2332, 0
    %v2337 = vsel %vm659, %v2334, 0
    %2339 = vmatprep.subr.mxu0 0.0
    %2340 = vmatpush1.xpose.msra.mxu0 0.0
    %2341 = vmatprep.subr.mxu0 0.0
    %2342 = vmatpush1.xpose.msra.mxu0 0.0
    %2343 = vmatprep.subr.mxu0 0.0
    %2344 = vmatpush1.xpose.msra.mxu0 0.0
    %2345 = vmatprep.subr.mxu0 0.0
    %2346 = vmatpush1.xpose.msra.mxu0 0.0
    %2347 = vmatprep.subr.mxu0 0.0
    %2348 = vmatpush1.xpose.msra.mxu0 0.0
    %2349 = vmatprep.subr.mxu0 0.0
    %2350 = vmatpush1.xpose.msra.mxu0 0.0
    %2351 = vmatprep.subr.mxu0 0.0
    %2352 = vmatpush1.xpose.msra.mxu0 0.0
    %2353 = vmatprep.subr.mxu0 0.0
    %2354 = vmatpush1.xpose.msra.mxu0 0.0
    %2355 = vmatprep.subr.mxu0 0.0
    %2356 = vmatpush1.xpose.msra.mxu0 0.0
    %2357 = vmatprep.subr.mxu0 0.0
    %2358 = vmatpush1.xpose.msra.mxu0 0.0
    %2359 = vmatprep.subr.mxu0 0.0
    %2360 = vmatpush1.xpose.msra.mxu0 0.0
    %2361 = vmatprep.subr.mxu0 0.0
    %2362 = vmatpush1.xpose.msra.mxu0 0.0
    %2363 = vmatprep.subr.mxu0 0.0
    %2364 = vmatpush1.xpose.msra.mxu0 0.0
    %2365 = vmatprep.subr.mxu0 0.0
    %2366 = vmatpush1.xpose.msra.mxu0 0.0
    %2367 = vmatprep.subr.mxu0 0.0
    %2368 = vmatpush1.xpose.msra.mxu0 0.0
    %2369 = vmatprep.subr.mxu0 0.0
    %2370 = vmatpush1.xpose.msra.mxu0 %v2337
    %2371 = vmatprep.subr.mxu0 0.0
    %2372 = vmatpush2.xpose.msra.mxu0 0.0
    %2373 = vmatprep.subr.mxu0 0.0
    %2374 = vmatpush2.xpose.msra.mxu0 0.0
    %2375 = vmatprep.subr.mxu0 0.0
    %2376 = vmatpush2.xpose.msra.mxu0 0.0
    %2377 = vmatprep.subr.mxu0 0.0
    %2378 = vmatpush2.xpose.msra.mxu0 0.0
    %2379 = vmatprep.subr.mxu0 0.0
    %2380 = vmatpush2.xpose.msra.mxu0 0.0
    %2381 = vmatprep.subr.mxu0 0.0
    %2382 = vmatpush2.xpose.msra.mxu0 0.0
    %2383 = vmatprep.subr.mxu0 0.0
    %2384 = vmatpush2.xpose.msra.mxu0 0.0
    %2385 = vmatprep.subr.mxu0 0.0
    %2386 = vmatpush2.xpose.msra.mxu0 0.0
    %2387 = vmatprep.subr.mxu0 0.0
    %2388 = vmatpush2.xpose.msra.mxu0 0.0
    %2389 = vmatprep.subr.mxu0 0.0
    %2390 = vmatpush2.xpose.msra.mxu0 0.0
    %2391 = vmatprep.subr.mxu0 0.0
    %2392 = vmatpush2.xpose.msra.mxu0 0.0
    %2393 = vmatprep.subr.mxu0 0.0
    %2394 = vmatpush2.xpose.msra.mxu0 0.0
    %2395 = vmatprep.subr.mxu0 0.0
    %2396 = vmatpush2.xpose.msra.mxu0 0.0
    %2397 = vmatprep.subr.mxu0 0.0
    %2398 = vmatpush2.xpose.msra.mxu0 0.0
    %2399 = vmatprep.subr.mxu0 0.0
    %2400 = vmatpush2.xpose.msra.mxu0 0.0
    %2401 = vmatprep.subr.mxu0 0.0
    %2402 = vmatpush2.xpose.msra.mxu0 0.0
    %2403 = vmatprep.mubr.f32.mxu0 0.0
    %2404 = vmatmul.mubr.f32.gmra.mxu0 %v2335
    %v2405 = vpop.f32.mrf.mxu0
    %v2406 = vadd.f32 0.0, %v2405
    %v2407 = vpop.f32.mrf.mxu0
    %2408 = vdwg.mxu0
    %s2409 = sld [smem:[#allocation3 + $0x8]]
    %v2410 = vlaneseq
    %v2411 = vshrl.u32 %v2410, 7
    %v2412 = vsub.s32 0, %v2411
    %v2413 = vrot.slane %v1801, %v2412
    %v2414 = vsub.f32 %v2406, %v2413
    %v2415 = vstv %s2409
    %v2416 = vmul.f32 %v2415, %v2414
    %s2417 = sld [smem:[#allocation6 + $0x8]]
    %v2418 = vstv %s2417
    %v2419 = vmul.f32 %v2418, %v570
    %v2420 = vadd.f32 %v2416, %v2419
    %v2421 = vsel %vm659, %v2420, -inf
    %2422 = vmax.xlane.f32.xlu0 %v2421
    %v2423 = vpop.xlane.xlu0 %2422
    %v2424 = vsub.f32 %v2420, %v2423
    %v2425 = vmul.f32 %v2424, 1.442695
    %v2426 = vpow.pop %v2425
    %v2427 = vsel %vm659, %v2426, 0.0
    %2428 = vadd.xlane.f32.xlu0 %v2427
    %v2429 = vpop.xlane.xlu0 %2428
    %v2430 = vrcp.pop %v2429
    %v2431 = vmul.f32 %v2426, %v2430
    %s2432 = sld [smem:[#allocation8 + $0x8]]
    %v2433 = vstv %s2432
    %v2434 = vmul.f32 %v2433, %v2431
    %v2435 = vadd.f32 %v2434, 0.0
    %s2436 = sld [smem:[#allocation3 + $0x9]]
    %v2437 = vlaneseq
    %v2438 = vshrl.u32 %v2437, 7
    %v2439 = vsub.s32 1, %v2438
    %v2440 = vrot.slane %v1801, %v2439
    %v2441 = vsub.f32 %v2406, %v2440
    %v2442 = vstv %s2436
    %v2443 = vmul.f32 %v2442, %v2441
    %s2444 = sld [smem:[#allocation6 + $0x9]]
    %v2445 = vstv %s2444
    %v2446 = vmul.f32 %v2445, %v570
    %v2447 = vadd.f32 %v2443, %v2446
    %v2448 = vsel %vm659, %v2447, -inf
    %2449 = vmax.xlane.f32.xlu0 %v2448
    %v2450 = vpop.xlane.xlu0 %2449
    %v2451 = vsub.f32 %v2447, %v2450
    %v2452 = vmul.f32 %v2451, 1.442695
    %v2453 = vpow.pop %v2452
    %v2454 = vsel %vm659, %v2453, 0.0
    %2455 = vadd.xlane.f32.xlu0 %v2454
    %v2456 = vpop.xlane.xlu0 %2455
    %v2457 = vrcp.pop %v2456
    %v2458 = vmul.f32 %v2453, %v2457
    %s2459 = sld [smem:[#allocation8 + $0x9]]
    %v2460 = vstv %s2459
    %v2461 = vmul.f32 %v2460, %v2458
    %v2462 = vadd.f32 %v2435, %v2461
    %s2463 = sld [smem:[#allocation3 + $0xa]]
    %v2464 = vlaneseq
    %v2465 = vshrl.u32 %v2464, 7
    %v2466 = vsub.s32 2, %v2465
    %v2467 = vrot.slane %v1801, %v2466
    %v2468 = vsub.f32 %v2406, %v2467
    %v2469 = vstv %s2463
    %v2470 = vmul.f32 %v2469, %v2468
    %s2471 = sld [smem:[#allocation6 + $0xa]]
    %v2472 = vstv %s2471
    %v2473 = vmul.f32 %v2472, %v570
    %v2474 = vadd.f32 %v2470, %v2473
    %v2475 = vsel %vm659, %v2474, -inf
    %2476 = vmax.xlane.f32.xlu0 %v2475
    %v2477 = vpop.xlane.xlu0 %2476
    %v2478 = vsub.f32 %v2474, %v2477
    %v2479 = vmul.f32 %v2478, 1.442695
    %v2480 = vpow.pop %v2479
    %v2481 = vsel %vm659, %v2480, 0.0
    %2482 = vadd.xlane.f32.xlu0 %v2481
    %v2483 = vpop.xlane.xlu0 %2482
    %v2484 = vrcp.pop %v2483
    %v2485 = vmul.f32 %v2480, %v2484
    %s2486 = sld [smem:[#allocation8 + $0xa]]
    %v2487 = vstv %s2486
    %v2488 = vmul.f32 %v2487, %v2485
    %v2489 = vadd.f32 %v2462, %v2488
    %s2490 = sld [smem:[#allocation3 + $0xb]]
    %v2491 = vlaneseq
    %v2492 = vshrl.u32 %v2491, 7
    %v2493 = vsub.s32 3, %v2492
    %v2494 = vrot.slane %v1801, %v2493
    %v2495 = vsub.f32 %v2406, %v2494
    %v2496 = vstv %s2490
    %v2497 = vmul.f32 %v2496, %v2495
    %s2498 = sld [smem:[#allocation6 + $0xb]]
    %v2499 = vstv %s2498
    %v2500 = vmul.f32 %v2499, %v570
    %v2501 = vadd.f32 %v2497, %v2500
    %v2502 = vsel %vm659, %v2501, -inf
    %2503 = vmax.xlane.f32.xlu0 %v2502
    %v2504 = vpop.xlane.xlu0 %2503
    %v2505 = vsub.f32 %v2501, %v2504
    %v2506 = vmul.f32 %v2505, 1.442695
    %v2507 = vpow.pop %v2506
    %v2508 = vsel %vm659, %v2507, 0.0
    %2509 = vadd.xlane.f32.xlu0 %v2508
    %v2510 = vpop.xlane.xlu0 %2509
    %v2511 = vrcp.pop %v2510
    %v2512 = vmul.f32 %v2507, %v2511
    %s2513 = sld [smem:[#allocation8 + $0xb]]
    %v2514 = vstv %s2513
    %v2515 = vmul.f32 %v2514, %v2512
    %v2516 = vadd.f32 %v2489, %v2515
    %2517 = vrot.lane.b32.xlu0 %v173, 48
    %v2518 = vpop.permute.xlu0 %2517
    %v2521 = vsel %vm659, %v2516, 0
    %2523 = vmatprep.subr.mxu0 0.0
    %2524 = vmatpush1.msra.mxu0 0.0
    %2525 = vmatprep.subr.mxu0 0.0
    %2526 = vmatpush1.msra.mxu0 0.0
    %2527 = vmatprep.subr.mxu0 0.0
    %2528 = vmatpush1.msra.mxu0 0.0
    %2529 = vmatprep.subr.mxu0 0.0
    %2530 = vmatpush1.msra.mxu0 0.0
    %2531 = vmatprep.subr.mxu0 0.0
    %2532 = vmatpush1.msra.mxu0 0.0
    %2533 = vmatprep.subr.mxu0 0.0
    %2534 = vmatpush1.msra.mxu0 0.0
    %2535 = vmatprep.subr.mxu0 0.0
    %2536 = vmatpush1.msra.mxu0 0.0
    %2537 = vmatprep.subr.mxu0 0.0
    %2538 = vmatpush1.msra.mxu0 0.0
    %2539 = vmatprep.subr.mxu0 0.0
    %2540 = vmatpush1.msra.mxu0 0.0
    %2541 = vmatprep.subr.mxu0 0.0
    %2542 = vmatpush1.msra.mxu0 0.0
    %2543 = vmatprep.subr.mxu0 0.0
    %2544 = vmatpush1.msra.mxu0 0.0
    %2545 = vmatprep.subr.mxu0 0.0
    %2546 = vmatpush1.msra.mxu0 0.0
    %2547 = vmatprep.subr.mxu0 0.0
    %2548 = vmatpush1.msra.mxu0 0.0
    %2549 = vmatprep.subr.mxu0 0.0
    %2550 = vmatpush1.msra.mxu0 0.0
    %2551 = vmatprep.subr.mxu0 0.0
    %2552 = vmatpush1.msra.mxu0 0.0
    %2553 = vmatprep.subr.mxu0 0.0
    %2554 = vmatpush1.msra.mxu0 %v2518
    %2555 = vmatprep.subr.mxu0 0.0
    %2556 = vmatpush2.msra.mxu0 0.0
    %2557 = vmatprep.subr.mxu0 0.0
    %2558 = vmatpush2.msra.mxu0 0.0
    %2559 = vmatprep.subr.mxu0 0.0
    %2560 = vmatpush2.msra.mxu0 0.0
    %2561 = vmatprep.subr.mxu0 0.0
    %2562 = vmatpush2.msra.mxu0 0.0
    %2563 = vmatprep.subr.mxu0 0.0
    %2564 = vmatpush2.msra.mxu0 0.0
    %2565 = vmatprep.subr.mxu0 0.0
    %2566 = vmatpush2.msra.mxu0 0.0
    %2567 = vmatprep.subr.mxu0 0.0
    %2568 = vmatpush2.msra.mxu0 0.0
    %2569 = vmatprep.subr.mxu0 0.0
    %2570 = vmatpush2.msra.mxu0 0.0
    %2571 = vmatprep.subr.mxu0 0.0
    %2572 = vmatpush2.msra.mxu0 0.0
    %2573 = vmatprep.subr.mxu0 0.0
    %2574 = vmatpush2.msra.mxu0 0.0
    %2575 = vmatprep.subr.mxu0 0.0
    %2576 = vmatpush2.msra.mxu0 0.0
    %2577 = vmatprep.subr.mxu0 0.0
    %2578 = vmatpush2.msra.mxu0 0.0
    %2579 = vmatprep.subr.mxu0 0.0
    %2580 = vmatpush2.msra.mxu0 0.0
    %2581 = vmatprep.subr.mxu0 0.0
    %2582 = vmatpush2.msra.mxu0 0.0
    %2583 = vmatprep.subr.mxu0 0.0
    %2584 = vmatpush2.msra.mxu0 0.0
    %2585 = vmatprep.subr.mxu0 0.0
    %2586 = vmatpush2.msra.mxu0 0.0
    %2587 = vmatprep.mubr.f32.mxu0 0.0
    %2588 = vmatmul.mubr.f32.gmra.mxu0 %v2521
    %v2589 = vpop.f32.mrf.mxu0
    %v2590 = vadd.f32 0.0, %v2589
    %v2591 = vpop.f32.mrf.mxu0
    %2592 = vdwg.mxu0
    %2594 = vrot.lane.b32.xlu0 %v2590, 16
    %v2595 = vpop.permute.xlu0 %2594
    %2597 = vst.msk [vmem:[#allocation2 + $0x8] sm:$0xff] %vm1454, %v2595
    %2598 = vrot.lane.b32.xlu0 %v367, 104
    %v2599 = vpop.permute.xlu0 %2598
    %2600 = vrot.lane.b32.xlu0 %v569, 72
    %v2601 = vpop.permute.xlu0 %2600
    %v2602 = vsel %vm659, %v2599, 0
    %v2604 = vsel %vm659, %v2601, 0
    %2606 = vmatprep.subr.mxu0 0.0
    %2607 = vmatpush1.xpose.msra.mxu0 0.0
    %2608 = vmatprep.subr.mxu0 0.0
    %2609 = vmatpush1.xpose.msra.mxu0 0.0
    %2610 = vmatprep.subr.mxu0 0.0
    %2611 = vmatpush1.xpose.msra.mxu0 0.0
    %2612 = vmatprep.subr.mxu0 0.0
    %2613 = vmatpush1.xpose.msra.mxu0 0.0
    %2614 = vmatprep.subr.mxu0 0.0
    %2615 = vmatpush1.xpose.msra.mxu0 0.0
    %2616 = vmatprep.subr.mxu0 0.0
    %2617 = vmatpush1.xpose.msra.mxu0 0.0
    %2618 = vmatprep.subr.mxu0 0.0
    %2619 = vmatpush1.xpose.msra.mxu0 0.0
    %2620 = vmatprep.subr.mxu0 0.0
    %2621 = vmatpush1.xpose.msra.mxu0 0.0
    %2622 = vmatprep.subr.mxu0 0.0
    %2623 = vmatpush1.xpose.msra.mxu0 0.0
    %2624 = vmatprep.subr.mxu0 0.0
    %2625 = vmatpush1.xpose.msra.mxu0 0.0
    %2626 = vmatprep.subr.mxu0 0.0
    %2627 = vmatpush1.xpose.msra.mxu0 0.0
    %2628 = vmatprep.subr.mxu0 0.0
    %2629 = vmatpush1.xpose.msra.mxu0 0.0
    %2630 = vmatprep.subr.mxu0 0.0
    %2631 = vmatpush1.xpose.msra.mxu0 0.0
    %2632 = vmatprep.subr.mxu0 0.0
    %2633 = vmatpush1.xpose.msra.mxu0 0.0
    %2634 = vmatprep.subr.mxu0 0.0
    %2635 = vmatpush1.xpose.msra.mxu0 0.0
    %2636 = vmatprep.subr.mxu0 0.0
    %2637 = vmatpush1.xpose.msra.mxu0 %v2604
    %2638 = vmatprep.subr.mxu0 0.0
    %2639 = vmatpush2.xpose.msra.mxu0 0.0
    %2640 = vmatprep.subr.mxu0 0.0
    %2641 = vmatpush2.xpose.msra.mxu0 0.0
    %2642 = vmatprep.subr.mxu0 0.0
    %2643 = vmatpush2.xpose.msra.mxu0 0.0
    %2644 = vmatprep.subr.mxu0 0.0
    %2645 = vmatpush2.xpose.msra.mxu0 0.0
    %2646 = vmatprep.subr.mxu0 0.0
    %2647 = vmatpush2.xpose.msra.mxu0 0.0
    %2648 = vmatprep.subr.mxu0 0.0
    %2649 = vmatpush2.xpose.msra.mxu0 0.0
    %2650 = vmatprep.subr.mxu0 0.0
    %2651 = vmatpush2.xpose.msra.mxu0 0.0
    %2652 = vmatprep.subr.mxu0 0.0
    %2653 = vmatpush2.xpose.msra.mxu0 0.0
    %2654 = vmatprep.subr.mxu0 0.0
    %2655 = vmatpush2.xpose.msra.mxu0 0.0
    %2656 = vmatprep.subr.mxu0 0.0
    %2657 = vmatpush2.xpose.msra.mxu0 0.0
    %2658 = vmatprep.subr.mxu0 0.0
    %2659 = vmatpush2.xpose.msra.mxu0 0.0
    %2660 = vmatprep.subr.mxu0 0.0
    %2661 = vmatpush2.xpose.msra.mxu0 0.0
    %2662 = vmatprep.subr.mxu0 0.0
    %2663 = vmatpush2.xpose.msra.mxu0 0.0
    %2664 = vmatprep.subr.mxu0 0.0
    %2665 = vmatpush2.xpose.msra.mxu0 0.0
    %2666 = vmatprep.subr.mxu0 0.0
    %2667 = vmatpush2.xpose.msra.mxu0 0.0
    %2668 = vmatprep.subr.mxu0 0.0
    %2669 = vmatpush2.xpose.msra.mxu0 0.0
    %2670 = vmatprep.mubr.f32.mxu0 0.0
    %2671 = vmatmul.mubr.f32.gmra.mxu0 %v2602
    %v2672 = vpop.f32.mrf.mxu0
    %v2673 = vadd.f32 0.0, %v2672
    %v2674 = vpop.f32.mrf.mxu0
    %2675 = vdwg.mxu0
    %s2676 = sld [smem:[#allocation3 + $0xc]]
    %v2677 = vlaneseq
    %v2678 = vshrl.u32 %v2677, 7
    %v2679 = vsub.s32 4, %v2678
    %v2680 = vrot.slane %v1801, %v2679
    %v2681 = vsub.f32 %v2673, %v2680
    %v2682 = vstv %s2676
    %v2683 = vmul.f32 %v2682, %v2681
    %s2684 = sld [smem:[#allocation6 + $0xc]]
    %v2685 = vstv %s2684
    %v2686 = vmul.f32 %v2685, %v570
    %v2687 = vadd.f32 %v2683, %v2686
    %v2688 = vsel %vm659, %v2687, -inf
    %2689 = vmax.xlane.f32.xlu0 %v2688
    %v2690 = vpop.xlane.xlu0 %2689
    %v2691 = vsub.f32 %v2687, %v2690
    %v2692 = vmul.f32 %v2691, 1.442695
    %v2693 = vpow.pop %v2692
    %v2694 = vsel %vm659, %v2693, 0.0
    %2695 = vadd.xlane.f32.xlu0 %v2694
    %v2696 = vpop.xlane.xlu0 %2695
    %v2697 = vrcp.pop %v2696
    %v2698 = vmul.f32 %v2693, %v2697
    %s2699 = sld [smem:[#allocation8 + $0xc]]
    %v2700 = vstv %s2699
    %v2701 = vmul.f32 %v2700, %v2698
    %v2702 = vadd.f32 %v2701, 0.0
    %s2703 = sld [smem:[#allocation3 + $0xd]]
    %v2704 = vlaneseq
    %v2705 = vshrl.u32 %v2704, 7
    %v2706 = vsub.s32 5, %v2705
    %v2707 = vrot.slane %v1801, %v2706
    %v2708 = vsub.f32 %v2673, %v2707
    %v2709 = vstv %s2703
    %v2710 = vmul.f32 %v2709, %v2708
    %s2711 = sld [smem:[#allocation6 + $0xd]]
    %v2712 = vstv %s2711
    %v2713 = vmul.f32 %v2712, %v570
    %v2714 = vadd.f32 %v2710, %v2713
    %v2715 = vsel %vm659, %v2714, -inf
    %2716 = vmax.xlane.f32.xlu0 %v2715
    %v2717 = vpop.xlane.xlu0 %2716
    %v2718 = vsub.f32 %v2714, %v2717
    %v2719 = vmul.f32 %v2718, 1.442695
    %v2720 = vpow.pop %v2719
    %v2721 = vsel %vm659, %v2720, 0.0
    %2722 = vadd.xlane.f32.xlu0 %v2721
    %v2723 = vpop.xlane.xlu0 %2722
    %v2724 = vrcp.pop %v2723
    %v2725 = vmul.f32 %v2720, %v2724
    %s2726 = sld [smem:[#allocation8 + $0xd]]
    %v2727 = vstv %s2726
    %v2728 = vmul.f32 %v2727, %v2725
    %v2729 = vadd.f32 %v2702, %v2728
    %s2730 = sld [smem:[#allocation3 + $0xe]]
    %v2731 = vlaneseq
    %v2732 = vshrl.u32 %v2731, 7
    %v2733 = vsub.s32 6, %v2732
    %v2734 = vrot.slane %v1801, %v2733
    %v2735 = vsub.f32 %v2673, %v2734
    %v2736 = vstv %s2730
    %v2737 = vmul.f32 %v2736, %v2735
    %s2738 = sld [smem:[#allocation6 + $0xe]]
    %v2739 = vstv %s2738
    %v2740 = vmul.f32 %v2739, %v570
    %v2741 = vadd.f32 %v2737, %v2740
    %v2742 = vsel %vm659, %v2741, -inf
    %2743 = vmax.xlane.f32.xlu0 %v2742
    %v2744 = vpop.xlane.xlu0 %2743
    %v2745 = vsub.f32 %v2741, %v2744
    %v2746 = vmul.f32 %v2745, 1.442695
    %v2747 = vpow.pop %v2746
    %v2748 = vsel %vm659, %v2747, 0.0
    %2749 = vadd.xlane.f32.xlu0 %v2748
    %v2750 = vpop.xlane.xlu0 %2749
    %v2751 = vrcp.pop %v2750
    %v2752 = vmul.f32 %v2747, %v2751
    %s2753 = sld [smem:[#allocation8 + $0xe]]
    %v2754 = vstv %s2753
    %v2755 = vmul.f32 %v2754, %v2752
    %v2756 = vadd.f32 %v2729, %v2755
    %s2757 = sld [smem:[#allocation3 + $0xf]]
    %v2758 = vlaneseq
    %v2759 = vshrl.u32 %v2758, 7
    %v2760 = vsub.s32 7, %v2759
    %v2761 = vrot.slane %v1801, %v2760
    %v2762 = vsub.f32 %v2673, %v2761
    %v2763 = vstv %s2757
    %v2764 = vmul.f32 %v2763, %v2762
    %s2765 = sld [smem:[#allocation6 + $0xf]]
    %v2766 = vstv %s2765
    %v2767 = vmul.f32 %v2766, %v570
    %v2768 = vadd.f32 %v2764, %v2767
    %v2769 = vsel %vm659, %v2768, -inf
    %2770 = vmax.xlane.f32.xlu0 %v2769
    %v2771 = vpop.xlane.xlu0 %2770
    %v2772 = vsub.f32 %v2768, %v2771
    %v2773 = vmul.f32 %v2772, 1.442695
    %v2774 = vpow.pop %v2773
    %v2775 = vsel %vm659, %v2774, 0.0
    %2776 = vadd.xlane.f32.xlu0 %v2775
    %v2777 = vpop.xlane.xlu0 %2776
    %v2778 = vrcp.pop %v2777
    %v2779 = vmul.f32 %v2774, %v2778
    %s2780 = sld [smem:[#allocation8 + $0xf]]
    %v2781 = vstv %s2780
    %v2782 = vmul.f32 %v2781, %v2779
    %v2783 = vadd.f32 %v2756, %v2782
    %2784 = vrot.lane.b32.xlu0 %v173, 40
    %v2785 = vpop.permute.xlu0 %2784
    %v2788 = vsel %vm659, %v2783, 0
    %2790 = vmatprep.subr.mxu0 0.0
    %2791 = vmatpush1.msra.mxu0 0.0
    %2792 = vmatprep.subr.mxu0 0.0
    %2793 = vmatpush1.msra.mxu0 0.0
    %2794 = vmatprep.subr.mxu0 0.0
    %2795 = vmatpush1.msra.mxu0 0.0
    %2796 = vmatprep.subr.mxu0 0.0
    %2797 = vmatpush1.msra.mxu0 0.0
    %2798 = vmatprep.subr.mxu0 0.0
    %2799 = vmatpush1.msra.mxu0 0.0
    %2800 = vmatprep.subr.mxu0 0.0
    %2801 = vmatpush1.msra.mxu0 0.0
    %2802 = vmatprep.subr.mxu0 0.0
    %2803 = vmatpush1.msra.mxu0 0.0
    %2804 = vmatprep.subr.mxu0 0.0
    %2805 = vmatpush1.msra.mxu0 0.0
    %2806 = vmatprep.subr.mxu0 0.0
    %2807 = vmatpush1.msra.mxu0 0.0
    %2808 = vmatprep.subr.mxu0 0.0
    %2809 = vmatpush1.msra.mxu0 0.0
    %2810 = vmatprep.subr.mxu0 0.0
    %2811 = vmatpush1.msra.mxu0 0.0
    %2812 = vmatprep.subr.mxu0 0.0
    %2813 = vmatpush1.msra.mxu0 0.0
    %2814 = vmatprep.subr.mxu0 0.0
    %2815 = vmatpush1.msra.mxu0 0.0
    %2816 = vmatprep.subr.mxu0 0.0
    %2817 = vmatpush1.msra.mxu0 0.0
    %2818 = vmatprep.subr.mxu0 0.0
    %2819 = vmatpush1.msra.mxu0 0.0
    %2820 = vmatprep.subr.mxu0 0.0
    %2821 = vmatpush1.msra.mxu0 %v2785
    %2822 = vmatprep.subr.mxu0 0.0
    %2823 = vmatpush2.msra.mxu0 0.0
    %2824 = vmatprep.subr.mxu0 0.0
    %2825 = vmatpush2.msra.mxu0 0.0
    %2826 = vmatprep.subr.mxu0 0.0
    %2827 = vmatpush2.msra.mxu0 0.0
    %2828 = vmatprep.subr.mxu0 0.0
    %2829 = vmatpush2.msra.mxu0 0.0
    %2830 = vmatprep.subr.mxu0 0.0
    %2831 = vmatpush2.msra.mxu0 0.0
    %2832 = vmatprep.subr.mxu0 0.0
    %2833 = vmatpush2.msra.mxu0 0.0
    %2834 = vmatprep.subr.mxu0 0.0
    %2835 = vmatpush2.msra.mxu0 0.0
    %2836 = vmatprep.subr.mxu0 0.0
    %2837 = vmatpush2.msra.mxu0 0.0
    %2838 = vmatprep.subr.mxu0 0.0
    %2839 = vmatpush2.msra.mxu0 0.0
    %2840 = vmatprep.subr.mxu0 0.0
    %2841 = vmatpush2.msra.mxu0 0.0
    %2842 = vmatprep.subr.mxu0 0.0
    %2843 = vmatpush2.msra.mxu0 0.0
    %2844 = vmatprep.subr.mxu0 0.0
    %2845 = vmatpush2.msra.mxu0 0.0
    %2846 = vmatprep.subr.mxu0 0.0
    %2847 = vmatpush2.msra.mxu0 0.0
    %2848 = vmatprep.subr.mxu0 0.0
    %2849 = vmatpush2.msra.mxu0 0.0
    %2850 = vmatprep.subr.mxu0 0.0
    %2851 = vmatpush2.msra.mxu0 0.0
    %2852 = vmatprep.subr.mxu0 0.0
    %2853 = vmatpush2.msra.mxu0 0.0
    %2854 = vmatprep.mubr.f32.mxu0 0.0
    %2855 = vmatmul.mubr.f32.gmra.mxu0 %v2788
    %v2856 = vpop.f32.mrf.mxu0
    %v2857 = vadd.f32 0.0, %v2856
    %v2858 = vpop.f32.mrf.mxu0
    %2859 = vdwg.mxu0
    %2861 = vrot.lane.b32.xlu0 %v2857, 24
    %v2862 = vpop.permute.xlu0 %2861
    %2864 = vst.msk [vmem:[#allocation2 + $0x8] sm:$0xff] %vm1722, %v2862
    %v2865 = vld [vmem:[#allocation2] sm:$0xff]
    %v2866 = vld [vmem:[#allocation2 + $0x8] sm:$0xff]
    %v2867 = vld [vmem:[%s11] sm:$0xff]
    %v2868 = vld [vmem:[%s11 + $0x8] sm:$0xff]
    %v2869 = vld [vmem:[%s11 + $0x10] sm:$0xff]
    %v2870 = vld [vmem:[%s11 + $0x18] sm:$0xff]
    %v2871 = vld [vmem:[%s12] sm:$0x1]
    %v2873 = vlaneseq
    %v2874 = vshrl.u32 %v2873, 7
    %v2875 = vsub.s32 0, %v2874
    %v2876 = vrot.slane %v2871, %v2875
    %v2879 = vsel %vm94, %v2865, 0
    %v2882 = vsel %vm94, %v2866, 0
    %2884 = vmatprep.subr.mxu0 0.0
    %2885 = vmatpush1.msra.mxu0 0.0
    %2886 = vmatprep.subr.mxu0 0.0
    %2887 = vmatpush1.msra.mxu0 0.0
    %2888 = vmatprep.subr.mxu0 0.0
    %2889 = vmatpush1.msra.mxu0 0.0
    %2890 = vmatprep.subr.mxu0 0.0
    %2891 = vmatpush1.msra.mxu0 0.0
    %2892 = vmatprep.subr.mxu0 0.0
    %2893 = vmatpush1.msra.mxu0 0.0
    %2894 = vmatprep.subr.mxu0 0.0
    %2895 = vmatpush1.msra.mxu0 0.0
    %2896 = vmatprep.subr.mxu0 0.0
    %2897 = vmatpush1.msra.mxu0 0.0
    %2898 = vmatprep.subr.mxu0 0.0
    %2899 = vmatpush1.msra.mxu0 0.0
    %2900 = vmatprep.subr.mxu0 0.0
    %2901 = vmatpush1.msra.mxu0 0.0
    %2902 = vmatprep.subr.mxu0 0.0
    %2903 = vmatpush1.msra.mxu0 0.0
    %2904 = vmatprep.subr.mxu0 0.0
    %2905 = vmatpush1.msra.mxu0 0.0
    %2906 = vmatprep.subr.mxu0 0.0
    %2907 = vmatpush1.msra.mxu0 0.0
    %2908 = vmatprep.subr.mxu0 0.0
    %2909 = vmatpush1.msra.mxu0 %v2870
    %2910 = vmatprep.subr.mxu0 0.0
    %2911 = vmatpush1.msra.mxu0 %v2869
    %2912 = vmatprep.subr.mxu0 0.0
    %2913 = vmatpush1.msra.mxu0 %v2868
    %2914 = vmatprep.subr.mxu0 0.0
    %2915 = vmatpush1.msra.mxu0 %v2867
    %2916 = vmatprep.subr.mxu0 0.0
    %2917 = vmatpush2.msra.mxu0 0.0
    %2918 = vmatprep.subr.mxu0 0.0
    %2919 = vmatpush2.msra.mxu0 0.0
    %2920 = vmatprep.subr.mxu0 0.0
    %2921 = vmatpush2.msra.mxu0 0.0
    %2922 = vmatprep.subr.mxu0 0.0
    %2923 = vmatpush2.msra.mxu0 0.0
    %2924 = vmatprep.subr.mxu0 0.0
    %2925 = vmatpush2.msra.mxu0 0.0
    %2926 = vmatprep.subr.mxu0 0.0
    %2927 = vmatpush2.msra.mxu0 0.0
    %2928 = vmatprep.subr.mxu0 0.0
    %2929 = vmatpush2.msra.mxu0 0.0
    %2930 = vmatprep.subr.mxu0 0.0
    %2931 = vmatpush2.msra.mxu0 0.0
    %2932 = vmatprep.subr.mxu0 0.0
    %2933 = vmatpush2.msra.mxu0 0.0
    %2934 = vmatprep.subr.mxu0 0.0
    %2935 = vmatpush2.msra.mxu0 0.0
    %2936 = vmatprep.subr.mxu0 0.0
    %2937 = vmatpush2.msra.mxu0 0.0
    %2938 = vmatprep.subr.mxu0 0.0
    %2939 = vmatpush2.msra.mxu0 0.0
    %2940 = vmatprep.subr.mxu0 0.0
    %2941 = vmatpush2.msra.mxu0 0.0
    %2942 = vmatprep.subr.mxu0 0.0
    %2943 = vmatpush2.msra.mxu0 0.0
    %2944 = vmatprep.subr.mxu0 0.0
    %2945 = vmatpush2.msra.mxu0 0.0
    %2946 = vmatprep.subr.mxu0 0.0
    %2947 = vmatpush2.msra.mxu0 0.0
    %2948 = vmatprep.mubr.f32.mxu0 0.0
    %2949 = vmatmul.mubr.f32.gmra.mxu0 %v2879
    %v2950 = vpop.f32.mrf.mxu0
    %v2951 = vadd.f32 %v2876, %v2950
    %v2952 = vpop.f32.mrf.mxu0
    %2953 = vmatprep.mubr.f32.mxu0 0.0
    %2954 = vmatmul.mubr.f32.gmra.mxu0 %v2882
    %v2955 = vpop.f32.mrf.mxu0
    %v2956 = vadd.f32 %v2876, %v2955
    %v2957 = vpop.f32.mrf.mxu0
    %2958 = vdwg.mxu0
    %2959 = vst.msk [vmem:[#allocation9] sm:$0xff] %vm94, %v2951
    %2960 = vst.msk [vmem:[#allocation9 + $0x8] sm:$0xff] %vm94, %v2956
    // Predicated region
    $region66: #{gsa_attention_forward.1} parent=1 // pred_check
      _
    $region67: #{gsa_attention_forward.1} parent=1 // pred_check_branch
      %2962 = sbr.rel (0) target = $region69
    $region68: #{gsa_attention_forward.1} parent=1 // pred_region
      %s2964 = ssub.s32 256, 256
      %2965 = vsyncadd [#allocation4], %s2964
      %s2966 = sshll.u32 [#allocation9], 4
      %s2967 = int_to_ptr.vmem [resolvable:$true] %s2966
      %2972 = dma.vmem_to_hbm [thread:$0]  %s2967, 256, %s13, [#allocation4], 128, 128, 8
    $region69: #{gsa_attention_forward.1} parent=1 // pred_fallthru
      _
    // Predicated region
    $region70: #{gsa_attention_forward.1} parent=1 // pred_check
      _
    $region71: #{gsa_attention_forward.1} parent=1 // pred_check_branch
      %2974 = sbr.rel (0) target = $region73
    $region72: #{gsa_attention_forward.1} parent=1 // pred_region
      %2975 = dma.done [#allocation4], 256
    $region73: #{gsa_attention_forward.1} parent=1 // pred_fallthru
      _
    %2976 = vsyncpa [#allocation4], 1
    %2977 = vsyncpa [#allocation5], 1
    %2978 = vsyncpa [#allocation7], 1

</llo_original>
